<compile_context>
chip_gen: v7x
topology: tpu7x:2x2x1
jax: 0.10.0
libtpu: 0.0.40
codegen_flags: <defaults>
</compile_context>

<pallas_src>
import jax
import jax.numpy as jnp
from jax.experimental import pallas as pl
from jax.experimental.pallas import tpu as pltpu

LANE = 128                              # lane width: pad channel/feature dims to this
MXU_INPUT_DTYPE = jnp.bfloat16          # MXU operand dtype (accumulation stays f32)
VMEM_LIMIT_BYTES = 32 * 1024 * 1024     # scoped-VMEM cap, safe on v5e/v6e/v7x


# ----------------------------------------------------------------------------
# small padding helpers (JAX glue)
# ----------------------------------------------------------------------------
def _round_up(n, m):
    return -(-n // m) * m


def _pad_last(x, target):
    pad = target - x.shape[-1]
    if pad <= 0:
        return x
    cfg = [(0, 0)] * (x.ndim - 1) + [(0, pad)]
    return jnp.pad(x, cfg)


def _pad_to(x, shape):
    pads = [(0, t - s) for s, t in zip(x.shape, shape)]
    return jnp.pad(x, pads)


# ----------------------------------------------------------------------------
# Kernel 1/2: conv + bias + ReLU + 2x2 max-pool (TB images per grid step)
# ----------------------------------------------------------------------------
def _conv_pool_kernel(p_ref, w_ref, b_ref, o_ref):
    # p_ref: [4, TB, P, KKCp] pooled-order patches (block q = 2*a + b holds the
    #        conv inputs of pool-window member (a, b))
    # w_ref: [KKCp, OCp]   b_ref: [1, OCp] (f32)   o_ref: [TB, P, OCp] (f32)
    TB, P, OCp = o_ref.shape
    KKCp = p_ref.shape[-1]
    w = w_ref[...]
    b = b_ref[...]

    def member(q):  # conv output of pool-window member q, bias + ReLU in f32
        x = p_ref[q].reshape(TB * P, KKCp)
        acc = jnp.dot(x, w, preferred_element_type=jnp.float32)
        return jnp.maximum(acc + b, 0.0)

    # Running max (not a tree): at most 2 live [TB*P, OCp] f32 accumulators.
    pooled = member(0)
    for q in range(1, 4):
        pooled = jnp.maximum(pooled, member(q))
    o_ref[...] = pooled.reshape(TB, P, OCp).astype(o_ref.dtype)


def conv_relu_pool(x_nhwc, w_oihw, bias, *, oc_pad=LANE):
    """Fused valid conv (stride 1) + bias + ReLU + 2x2/stride-2 max pool.

    x_nhwc : [B, H, W, C] f32; C may be lane-padded (only the first IC_real
             channels are used for the contraction).
    w_oihw : [OC, IC_real, KH, KW] PyTorch conv weight, IC_real <= C.
    returns: [B, OH//2, OW//2, oc_pad] f32 (channels >= OC are zero).
    """
    B, H, W, C = x_nhwc.shape
    OC, ic_real, KH, KW = w_oihw.shape
    assert ic_real <= C
    OH, OW = H - KH + 1, W - KW + 1
    assert OH % 2 == 0 and OW % 2 == 0, "pool assumes even conv output"
    PH, PW = OH // 2, OW // 2
    P = PH * PW

    # Contract only over the real input channels (perf: conv2 KKC 3200 -> 500).
    x = x_nhwc[..., :ic_real]
    KKC = KH * KW * ic_real
    KKC_pad = _round_up(KKC, LANE) if KKC > LANE else KKC   # conv1: 25, conv2: 512

    # Batch block so each matmul has ~256 rows (TB * P), padding B if needed.
    TB = min(B, max(1, -(-256 // P)))
    Bp = _round_up(B, TB)

    # ---- glue: pooled-order im2col -> [4, Bp, P, KKC_pad] -------------------
    blocks = []
    for a in range(2):
        for bb in range(2):
            taps = []
            for kh in range(KH):
                for kw in range(KW):
                    v = x[:, a + kh::2, bb + kw::2, :][:, :PH, :PW, :]
                    taps.append(v)                      # [B, PH, PW, ic_real]
            blk = jnp.stack(taps, axis=3)               # [B, PH, PW, KH*KW, ic]
            blocks.append(blk.reshape(B, P, KKC))
    patches = jnp.stack(blocks, axis=0)                 # [4, B, P, KKC]
    patches = _pad_last(patches, KKC_pad)
    if Bp > B:
        patches = jnp.pad(patches, ((0, 0), (0, Bp - B), (0, 0), (0, 0)))
    patches = patches.astype(MXU_INPUT_DTYPE)

    # ---- glue: weight as [KKC_pad, oc_pad], row order (kh, kw, c) -----------
    w_mat = jnp.transpose(w_oihw, (2, 3, 1, 0)).reshape(KKC, OC)
    w_mat = _pad_to(w_mat, (KKC_pad, oc_pad)).astype(MXU_INPUT_DTYPE)
    b_vec = _pad_last(bias.reshape(1, OC).astype(jnp.float32), oc_pad)

    out = pl.pallas_call(
        _conv_pool_kernel,
        out_shape=jax.ShapeDtypeStruct((Bp, P, oc_pad), jnp.float32),
        grid=(Bp // TB,),
        in_specs=[
            pl.BlockSpec((4, TB, P, KKC_pad), lambda i: (0, i, 0, 0)),
            pl.BlockSpec((KKC_pad, oc_pad), lambda i: (0, 0)),   # resident weight
            pl.BlockSpec((1, oc_pad), lambda i: (0, 0)),         # resident bias
        ],
        out_specs=pl.BlockSpec((TB, P, oc_pad), lambda i: (i, 0, 0)),
        compiler_params=pltpu.CompilerParams(
            dimension_semantics=("parallel",),
            vmem_limit_bytes=VMEM_LIMIT_BYTES),
    )(patches, w_mat, b_vec)

    return out[:B].reshape(B, PH, PW, oc_pad)


# ----------------------------------------------------------------------------
# Kernel 3: fc1 + ReLU -> fc2 + ReLU -> fc3, all in one kernel
# ----------------------------------------------------------------------------
def _fc_chain_kernel(x_ref, w1_ref, b1_ref, w2_ref, b2_ref, w3_ref, b3_ref, o_ref):
    h = jnp.dot(x_ref[...], w1_ref[...], preferred_element_type=jnp.float32)
    h = jnp.maximum(h + b1_ref[...], 0.0)
    h = jnp.dot(h.astype(MXU_INPUT_DTYPE), w2_ref[...],
                preferred_element_type=jnp.float32)
    h = jnp.maximum(h + b2_ref[...], 0.0)
    h = jnp.dot(h.astype(MXU_INPUT_DTYPE), w3_ref[...],
                preferred_element_type=jnp.float32)
    o_ref[...] = (h + b3_ref[...]).astype(o_ref.dtype)


def fc_stack(x, w1, b1, w2, b2, w3, b3):
    """x:[M,K1] @ w1[K1,N1] -> relu -> @ w2[N1,N2] -> relu -> @ w3[N2,N3] + biases."""
    M, K1 = x.shape
    N1, N2, N3 = w1.shape[1], w2.shape[1], w3.shape[1]
    # Single block at small batch; 512-row tiles (megacore-parallel) when the
    # batch grows.  Pallas masks the boundary block if M % tm != 0.
    tm = M if M <= 512 else 512
    grid = (pl.cdiv(M, tm),)
    return pl.pallas_call(
        _fc_chain_kernel,
        out_shape=jax.ShapeDtypeStruct((M, N3), jnp.float32),
        grid=grid,
        in_specs=[
            pl.BlockSpec((tm, K1), lambda i: (i, 0)),
            pl.BlockSpec((K1, N1), lambda i: (0, 0)),   # weights/biases resident
            pl.BlockSpec((1, N1), lambda i: (0, 0)),
            pl.BlockSpec((N1, N2), lambda i: (0, 0)),
            pl.BlockSpec((1, N2), lambda i: (0, 0)),
            pl.BlockSpec((N2, N3), lambda i: (0, 0)),
            pl.BlockSpec((1, N3), lambda i: (0, 0)),
        ],
        out_specs=pl.BlockSpec((tm, N3), lambda i: (i, 0)),
        compiler_params=pltpu.CompilerParams(
            dimension_semantics=("parallel",),
            vmem_limit_bytes=VMEM_LIMIT_BYTES),
    )(x.astype(MXU_INPUT_DTYPE), w1, b1, w2, b2, w3, b3)


# ----------------------------------------------------------------------------
# LeNet forward (MNIST variant: conv1 1->20, conv2 20->50, fc 800->120->84->nc)
# ----------------------------------------------------------------------------
def init_params(key, num_classes=10):
    ks = jax.random.split(key, 10)
    scale = 0.1

    def rnd(k, shape):
        return (scale * jax.random.normal(k, shape)).astype(jnp.float32)

    return {
        "conv1_w": rnd(ks[0], (20, 1, 5, 5)),  "conv1_b": rnd(ks[1], (20,)),
        "conv2_w": rnd(ks[2], (50, 20, 5, 5)), "conv2_b": rnd(ks[3], (50,)),
        "fc1_w":   rnd(ks[4], (120, 800)),     "fc1_b":   rnd(ks[5], (120,)),
        "fc2_w":   rnd(ks[6], (84, 120)),      "fc2_b":   rnd(ks[7], (84,)),
        "fc3_w":   rnd(ks[8], (num_classes, 84)),
        "fc3_b":   rnd(ks[9], (num_classes,)),
    }


def lenet_forward(params, x_nchw):
    num_classes = params["fc3_b"].shape[0]
    B = x_nchw.shape[0]
    x = jnp.transpose(x_nchw, (0, 2, 3, 1)).astype(jnp.float32)   # NHWC [B,28,28,1]

    # conv1 + ReLU + pool : [B,28,28,1] -> [B,12,12,128]  (20 real channels)
    h = conv_relu_pool(x, params["conv1_w"], params["conv1_b"])
    # conv2 + ReLU + pool : [B,12,12,128] -> [B,4,4,128]  (50 real channels;
    # the contraction inside uses only the 20 real input channels)
    h = conv_relu_pool(h, params["conv2_w"], params["conv2_b"])

    PH, PW = h.shape[1], h.shape[2]
    S = PH * PW                                                    # 16
    oc2 = params["conv2_w"].shape[0]                               # 50

    # Slice to the 50 real channels before flattening; flat index = s*oc2 + c.
    flat = h[..., :oc2].reshape(B, S * oc2)                        # [B, 800]
    K1 = _round_up(S * oc2, LANE)                                  # 896
    flat = _pad_last(flat, K1)

    # Fold PyTorch's NCHW flatten (index c*S + s) + the lane padding into fc1_w.
    nf1 = params["fc1_w"].shape[0]                                 # 120
    w1 = params["fc1_w"].reshape(nf1, oc2, S)                      # (n, c, s)
    w1 = jnp.transpose(w1, (2, 1, 0)).reshape(S * oc2, nf1)        # row = s*oc2 + c
    w1 = _pad_to(w1, (K1, LANE))                                   # [896, 128]

    w2 = _pad_to(params["fc2_w"].T, (LANE, LANE))                  # [128, 128]
    w3 = _pad_to(params["fc3_w"].T, (LANE, LANE))                  # [128, 128]
    b1 = _pad_last(params["fc1_b"].reshape(1, -1).astype(jnp.float32), LANE)
    b2 = _pad_last(params["fc2_b"].reshape(1, -1).astype(jnp.float32), LANE)
    b3 = _pad_last(params["fc3_b"].reshape(1, -1).astype(jnp.float32), LANE)

    out = fc_stack(flat,
                   w1.astype(MXU_INPUT_DTYPE), b1,
                   w2.astype(MXU_INPUT_DTYPE), b2,
                   w3.astype(MXU_INPUT_DTYPE), b3)                 # [B, 128]
    return out[:, :num_classes]


if __name__ == "__main__":
    num_classes = 10
    key = jax.random.PRNGKey(0)
    pkey, xkey = jax.random.split(key)

    params = init_params(pkey, num_classes=num_classes)
    # MNIST-style input implied by fc1 = Linear(4*4*50, 120): 28x28, 1 channel
    x = jax.random.normal(xkey, (2, 1, 28, 28), dtype=jnp.float32)

    y = jax.jit(lenet_forward)(params, x)
    y = jax.block_until_ready(y)
    assert y.shape == (2, num_classes), y.shape
    print("KERNEL_OK")
</pallas_src>

<mosaic_0001>
module attributes {stable_mosaic.version = 11 : i64} {
  func.func @_conv_pool_kernel(%arg0: i32, %arg1: memref<4x2x144x25xbf16, #tpu.memory_space<vmem>>, %arg2: memref<25x128xbf16, #tpu.memory_space<vmem>>, %arg3: memref<1x128xf32, #tpu.memory_space<vmem>>, %arg4: memref<2x144x128xf32, #tpu.memory_space<vmem>>) attributes {dimension_semantics = [#tpu.dimension_semantics<parallel>], iteration_bounds = array<i64: 1>, scalar_prefetch = 0 : i64, scratch_operands = 0 : i64, tpu.core_type = #tpu.core_type<tc>, window_params = [{transform_indices = @transform_0, window_bounds = array<i64: 4, 2, 144, 25>}, {pipeline_mode = #tpu.pipeline_mode<synchronous>, transform_indices = @transform_1, window_bounds = array<i64: 25, 128>}, {pipeline_mode = #tpu.pipeline_mode<synchronous>, transform_indices = @transform_2, window_bounds = array<i64: 1, 128>}, {transform_indices = @transform_3, window_bounds = array<i64: 2, 144, 128>}]} {
    %c0 = arith.constant 0 : index
    %c0_0 = arith.constant 0 : index
    %0 = vector.load %arg2[%c0, %c0_0] : memref<25x128xbf16, #tpu.memory_space<vmem>>, vector<25x128xbf16>
    %c0_1 = arith.constant 0 : index
    %c0_2 = arith.constant 0 : index
    %1 = vector.load %arg3[%c0_1, %c0_2] : memref<1x128xf32, #tpu.memory_space<vmem>>, vector<1x128xf32>
    %c0_3 = arith.constant 0 : index
    %c0_4 = arith.constant 0 : index
    %c0_5 = arith.constant 0 : index
    %c0_6 = arith.constant 0 : index
    %2 = vector.load %arg1[%c0_3, %c0_4, %c0_5, %c0_6] : memref<4x2x144x25xbf16, #tpu.memory_space<vmem>>, vector<1x2x144x25xbf16>
    %3 = vector.shape_cast %2 : vector<1x2x144x25xbf16> to vector<2x144x25xbf16>
    %4 = vector.shape_cast %3 : vector<2x144x25xbf16> to vector<288x25xbf16>
    %cst = arith.constant dense<0.000000e+00> : vector<288x128xf32>
    %5 = tpu.matmul %4, %0, %cst {dimension_numbers = #tpu.dot_dimension_numbers<[1], [0], [0], [1], [0, 0, 1, 1], [], []>} : vector<288x25xbf16>, vector<25x128xbf16>, vector<288x128xf32> -> vector<288x128xf32>
    %6 = vector.broadcast %1 : vector<1x128xf32> to vector<288x128xf32>
    %7 = arith.addf %5, %6 : vector<288x128xf32>
    %cst_7 = arith.constant 0.000000e+00 : f32
    %8 = vector.broadcast %cst_7 : f32 to vector<288x128xf32>
    %9 = arith.maximumf %7, %8 : vector<288x128xf32>
    %c1 = arith.constant 1 : index
    %c0_8 = arith.constant 0 : index
    %c0_9 = arith.constant 0 : index
    %c0_10 = arith.constant 0 : index
    %10 = vector.load %arg1[%c1, %c0_8, %c0_9, %c0_10] : memref<4x2x144x25xbf16, #tpu.memory_space<vmem>>, vector<1x2x144x25xbf16>
    %11 = vector.shape_cast %10 : vector<1x2x144x25xbf16> to vector<2x144x25xbf16>
    %12 = vector.shape_cast %11 : vector<2x144x25xbf16> to vector<288x25xbf16>
    %cst_11 = arith.constant dense<0.000000e+00> : vector<288x128xf32>
    %13 = tpu.matmul %12, %0, %cst_11 {dimension_numbers = #tpu.dot_dimension_numbers<[1], [0], [0], [1], [0, 0, 1, 1], [], []>} : vector<288x25xbf16>, vector<25x128xbf16>, vector<288x128xf32> -> vector<288x128xf32>
    %14 = vector.broadcast %1 : vector<1x128xf32> to vector<288x128xf32>
    %15 = arith.addf %13, %14 : vector<288x128xf32>
    %cst_12 = arith.constant 0.000000e+00 : f32
    %16 = vector.broadcast %cst_12 : f32 to vector<288x128xf32>
    %17 = arith.maximumf %15, %16 : vector<288x128xf32>
    %18 = arith.maximumf %9, %17 : vector<288x128xf32>
    %c2 = arith.constant 2 : index
    %c0_13 = arith.constant 0 : index
    %c0_14 = arith.constant 0 : index
    %c0_15 = arith.constant 0 : index
    %19 = vector.load %arg1[%c2, %c0_13, %c0_14, %c0_15] : memref<4x2x144x25xbf16, #tpu.memory_space<vmem>>, vector<1x2x144x25xbf16>
    %20 = vector.shape_cast %19 : vector<1x2x144x25xbf16> to vector<2x144x25xbf16>
    %21 = vector.shape_cast %20 : vector<2x144x25xbf16> to vector<288x25xbf16>
    %cst_16 = arith.constant dense<0.000000e+00> : vector<288x128xf32>
    %22 = tpu.matmul %21, %0, %cst_16 {dimension_numbers = #tpu.dot_dimension_numbers<[1], [0], [0], [1], [0, 0, 1, 1], [], []>} : vector<288x25xbf16>, vector<25x128xbf16>, vector<288x128xf32> -> vector<288x128xf32>
    %23 = vector.broadcast %1 : vector<1x128xf32> to vector<288x128xf32>
    %24 = arith.addf %22, %23 : vector<288x128xf32>
    %cst_17 = arith.constant 0.000000e+00 : f32
    %25 = vector.broadcast %cst_17 : f32 to vector<288x128xf32>
    %26 = arith.maximumf %24, %25 : vector<288x128xf32>
    %27 = arith.maximumf %18, %26 : vector<288x128xf32>
    %c3 = arith.constant 3 : index
    %c0_18 = arith.constant 0 : index
    %c0_19 = arith.constant 0 : index
    %c0_20 = arith.constant 0 : index
    %28 = vector.load %arg1[%c3, %c0_18, %c0_19, %c0_20] : memref<4x2x144x25xbf16, #tpu.memory_space<vmem>>, vector<1x2x144x25xbf16>
    %29 = vector.shape_cast %28 : vector<1x2x144x25xbf16> to vector<2x144x25xbf16>
    %30 = vector.shape_cast %29 : vector<2x144x25xbf16> to vector<288x25xbf16>
    %cst_21 = arith.constant dense<0.000000e+00> : vector<288x128xf32>
    %31 = tpu.matmul %30, %0, %cst_21 {dimension_numbers = #tpu.dot_dimension_numbers<[1], [0], [0], [1], [0, 0, 1, 1], [], []>} : vector<288x25xbf16>, vector<25x128xbf16>, vector<288x128xf32> -> vector<288x128xf32>
    %32 = vector.broadcast %1 : vector<1x128xf32> to vector<288x128xf32>
    %33 = arith.addf %31, %32 : vector<288x128xf32>
    %cst_22 = arith.constant 0.000000e+00 : f32
    %34 = vector.broadcast %cst_22 : f32 to vector<288x128xf32>
    %35 = arith.maximumf %33, %34 : vector<288x128xf32>
    %36 = arith.maximumf %27, %35 : vector<288x128xf32>
    %37 = vector.shape_cast %36 : vector<288x128xf32> to vector<2x144x128xf32>
    %c0_23 = arith.constant 0 : index
    %c0_24 = arith.constant 0 : index
    %c0_25 = arith.constant 0 : index
    %38 = vector.load %arg4[%c0_23, %c0_24, %c0_25] : memref<2x144x128xf32, #tpu.memory_space<vmem>>, vector<2x144x128xf32>
    tpu.vector_store %arg4[%c0_23, %c0_24, %c0_25], %37 {strides = array<i32>} : memref<2x144x128xf32, #tpu.memory_space<vmem>>, vector<2x144x128xf32>,
    return
  }
  func.func @transform_0(%arg0: i32) -> (i32, i32, i32, i32) {
    %c0_i32 = arith.constant 0 : i32
    %c0_i32_0 = arith.constant 0 : i32
    %c0_i32_1 = arith.constant 0 : i32
    %c0_i32_2 = arith.constant 0 : i32
    return %c0_i32, %arg0, %c0_i32_0, %c0_i32_1 : i32, i32, i32, i32
  }
  func.func @transform_1(%arg0: i32) -> (i32, i32) {
    %c0_i32 = arith.constant 0 : i32
    %c0_i32_0 = arith.constant 0 : i32
    %c0_i32_1 = arith.constant 0 : i32
    return %c0_i32, %c0_i32_0 : i32, i32
  }
  func.func @transform_2(%arg0: i32) -> (i32, i32) {
    %c0_i32 = arith.constant 0 : i32
    %c0_i32_0 = arith.constant 0 : i32
    %c0_i32_1 = arith.constant 0 : i32
    return %c0_i32, %c0_i32_0 : i32, i32
  }
  func.func @transform_3(%arg0: i32) -> (i32, i32, i32) {
    %c0_i32 = arith.constant 0 : i32
    %c0_i32_0 = arith.constant 0 : i32
    %c0_i32_1 = arith.constant 0 : i32
    return %arg0, %c0_i32, %c0_i32_0 : i32, i32, i32
  }
}

module attributes {stable_mosaic.version = 11 : i64} {
  func.func @_conv_pool_kernel(%arg0: i32, %arg1: memref<4x2x16x512xbf16, #tpu.memory_space<vmem>>, %arg2: memref<512x128xbf16, #tpu.memory_space<vmem>>, %arg3: memref<1x128xf32, #tpu.memory_space<vmem>>, %arg4: memref<2x16x128xf32, #tpu.memory_space<vmem>>) attributes {dimension_semantics = [#tpu.dimension_semantics<parallel>], iteration_bounds = array<i64: 1>, scalar_prefetch = 0 : i64, scratch_operands = 0 : i64, tpu.core_type = #tpu.core_type<tc>, window_params = [{transform_indices = @transform_0, window_bounds = array<i64: 4, 2, 16, 512>}, {pipeline_mode = #tpu.pipeline_mode<synchronous>, transform_indices = @transform_1, window_bounds = array<i64: 512, 128>}, {pipeline_mode = #tpu.pipeline_mode<synchronous>, transform_indices = @transform_2, window_bounds = array<i64: 1, 128>}, {transform_indices = @transform_3, window_bounds = array<i64: 2, 16, 128>}]} {
    %c0 = arith.constant 0 : index
    %c0_0 = arith.constant 0 : index
    %0 = vector.load %arg2[%c0, %c0_0] : memref<512x128xbf16, #tpu.memory_space<vmem>>, vector<512x128xbf16>
    %c0_1 = arith.constant 0 : index
    %c0_2 = arith.constant 0 : index
    %1 = vector.load %arg3[%c0_1, %c0_2] : memref<1x128xf32, #tpu.memory_space<vmem>>, vector<1x128xf32>
    %c0_3 = arith.constant 0 : index
    %c0_4 = arith.constant 0 : index
    %c0_5 = arith.constant 0 : index
    %c0_6 = arith.constant 0 : index
    %2 = vector.load %arg1[%c0_3, %c0_4, %c0_5, %c0_6] : memref<4x2x16x512xbf16, #tpu.memory_space<vmem>>, vector<1x2x16x512xbf16>
    %3 = vector.shape_cast %2 : vector<1x2x16x512xbf16> to vector<2x16x512xbf16>
    %4 = vector.shape_cast %3 : vector<2x16x512xbf16> to vector<32x512xbf16>
    %cst = arith.constant dense<0.000000e+00> : vector<32x128xf32>
    %5 = tpu.matmul %4, %0, %cst {dimension_numbers = #tpu.dot_dimension_numbers<[1], [0], [0], [1], [0, 0, 1, 1], [], []>} : vector<32x512xbf16>, vector<512x128xbf16>, vector<32x128xf32> -> vector<32x128xf32>
    %6 = vector.broadcast %1 : vector<1x128xf32> to vector<32x128xf32>
    %7 = arith.addf %5, %6 : vector<32x128xf32>
    %cst_7 = arith.constant 0.000000e+00 : f32
    %8 = vector.broadcast %cst_7 : f32 to vector<32x128xf32>
    %9 = arith.maximumf %7, %8 : vector<32x128xf32>
    %c1 = arith.constant 1 : index
    %c0_8 = arith.constant 0 : index
    %c0_9 = arith.constant 0 : index
    %c0_10 = arith.constant 0 : index
    %10 = vector.load %arg1[%c1, %c0_8, %c0_9, %c0_10] : memref<4x2x16x512xbf16, #tpu.memory_space<vmem>>, vector<1x2x16x512xbf16>
    %11 = vector.shape_cast %10 : vector<1x2x16x512xbf16> to vector<2x16x512xbf16>
    %12 = vector.shape_cast %11 : vector<2x16x512xbf16> to vector<32x512xbf16>
    %cst_11 = arith.constant dense<0.000000e+00> : vector<32x128xf32>
    %13 = tpu.matmul %12, %0, %cst_11 {dimension_numbers = #tpu.dot_dimension_numbers<[1], [0], [0], [1], [0, 0, 1, 1], [], []>} : vector<32x512xbf16>, vector<512x128xbf16>, vector<32x128xf32> -> vector<32x128xf32>
    %14 = vector.broadcast %1 : vector<1x128xf32> to vector<32x128xf32>
    %15 = arith.addf %13, %14 : vector<32x128xf32>
    %cst_12 = arith.constant 0.000000e+00 : f32
    %16 = vector.broadcast %cst_12 : f32 to vector<32x128xf32>
    %17 = arith.maximumf %15, %16 : vector<32x128xf32>
    %18 = arith.maximumf %9, %17 : vector<32x128xf32>
    %c2 = arith.constant 2 : index
    %c0_13 = arith.constant 0 : index
    %c0_14 = arith.constant 0 : index
    %c0_15 = arith.constant 0 : index
    %19 = vector.load %arg1[%c2, %c0_13, %c0_14, %c0_15] : memref<4x2x16x512xbf16, #tpu.memory_space<vmem>>, vector<1x2x16x512xbf16>
    %20 = vector.shape_cast %19 : vector<1x2x16x512xbf16> to vector<2x16x512xbf16>
    %21 = vector.shape_cast %20 : vector<2x16x512xbf16> to vector<32x512xbf16>
    %cst_16 = arith.constant dense<0.000000e+00> : vector<32x128xf32>
    %22 = tpu.matmul %21, %0, %cst_16 {dimension_numbers = #tpu.dot_dimension_numbers<[1], [0], [0], [1], [0, 0, 1, 1], [], []>} : vector<32x512xbf16>, vector<512x128xbf16>, vector<32x128xf32> -> vector<32x128xf32>
    %23 = vector.broadcast %1 : vector<1x128xf32> to vector<32x128xf32>
    %24 = arith.addf %22, %23 : vector<32x128xf32>
    %cst_17 = arith.constant 0.000000e+00 : f32
    %25 = vector.broadcast %cst_17 : f32 to vector<32x128xf32>
    %26 = arith.maximumf %24, %25 : vector<32x128xf32>
    %27 = arith.maximumf %18, %26 : vector<32x128xf32>
    %c3 = arith.constant 3 : index
    %c0_18 = arith.constant 0 : index
    %c0_19 = arith.constant 0 : index
    %c0_20 = arith.constant 0 : index
    %28 = vector.load %arg1[%c3, %c0_18, %c0_19, %c0_20] : memref<4x2x16x512xbf16, #tpu.memory_space<vmem>>, vector<1x2x16x512xbf16>
    %29 = vector.shape_cast %28 : vector<1x2x16x512xbf16> to vector<2x16x512xbf16>
    %30 = vector.shape_cast %29 : vector<2x16x512xbf16> to vector<32x512xbf16>
    %cst_21 = arith.constant dense<0.000000e+00> : vector<32x128xf32>
    %31 = tpu.matmul %30, %0, %cst_21 {dimension_numbers = #tpu.dot_dimension_numbers<[1], [0], [0], [1], [0, 0, 1, 1], [], []>} : vector<32x512xbf16>, vector<512x128xbf16>, vector<32x128xf32> -> vector<32x128xf32>
    %32 = vector.broadcast %1 : vector<1x128xf32> to vector<32x128xf32>
    %33 = arith.addf %31, %32 : vector<32x128xf32>
    %cst_22 = arith.constant 0.000000e+00 : f32
    %34 = vector.broadcast %cst_22 : f32 to vector<32x128xf32>
    %35 = arith.maximumf %33, %34 : vector<32x128xf32>
    %36 = arith.maximumf %27, %35 : vector<32x128xf32>
    %37 = vector.shape_cast %36 : vector<32x128xf32> to vector<2x16x128xf32>
    %c0_23 = arith.constant 0 : index
    %c0_24 = arith.constant 0 : index
    %c0_25 = arith.constant 0 : index
    %38 = vector.load %arg4[%c0_23, %c0_24, %c0_25] : memref<2x16x128xf32, #tpu.memory_space<vmem>>, vector<2x16x128xf32>
    tpu.vector_store %arg4[%c0_23, %c0_24, %c0_25], %37 {strides = array<i32>} : memref<2x16x128xf32, #tpu.memory_space<vmem>>, vector<2x16x128xf32>,
    return
  }
  func.func @transform_0(%arg0: i32) -> (i32, i32, i32, i32) {
    %c0_i32 = arith.constant 0 : i32
    %c0_i32_0 = arith.constant 0 : i32
    %c0_i32_1 = arith.constant 0 : i32
    %c0_i32_2 = arith.constant 0 : i32
    return %c0_i32, %arg0, %c0_i32_0, %c0_i32_1 : i32, i32, i32, i32
  }
  func.func @transform_1(%arg0: i32) -> (i32, i32) {
    %c0_i32 = arith.constant 0 : i32
    %c0_i32_0 = arith.constant 0 : i32
    %c0_i32_1 = arith.constant 0 : i32
    return %c0_i32, %c0_i32_0 : i32, i32
  }
  func.func @transform_2(%arg0: i32) -> (i32, i32) {
    %c0_i32 = arith.constant 0 : i32
    %c0_i32_0 = arith.constant 0 : i32
    %c0_i32_1 = arith.constant 0 : i32
    return %c0_i32, %c0_i32_0 : i32, i32
  }
  func.func @transform_3(%arg0: i32) -> (i32, i32, i32) {
    %c0_i32 = arith.constant 0 : i32
    %c0_i32_0 = arith.constant 0 : i32
    %c0_i32_1 = arith.constant 0 : i32
    return %arg0, %c0_i32, %c0_i32_0 : i32, i32, i32
  }
}

module attributes {stable_mosaic.version = 11 : i64} {
  func.func @_fc_chain_kernel(%arg0: i32, %arg1: memref<2x896xbf16, #tpu.memory_space<vmem>>, %arg2: memref<896x128xbf16, #tpu.memory_space<vmem>>, %arg3: memref<1x128xf32, #tpu.memory_space<vmem>>, %arg4: memref<128x128xbf16, #tpu.memory_space<vmem>>, %arg5: memref<1x128xf32, #tpu.memory_space<vmem>>, %arg6: memref<128x128xbf16, #tpu.memory_space<vmem>>, %arg7: memref<1x128xf32, #tpu.memory_space<vmem>>, %arg8: memref<2x128xf32, #tpu.memory_space<vmem>>) attributes {dimension_semantics = [#tpu.dimension_semantics<parallel>], iteration_bounds = array<i64: 1>, scalar_prefetch = 0 : i64, scratch_operands = 0 : i64, tpu.core_type = #tpu.core_type<tc>, window_params = [{transform_indices = @transform_0, window_bounds = array<i64: 2, 896>}, {pipeline_mode = #tpu.pipeline_mode<synchronous>, transform_indices = @transform_1, window_bounds = array<i64: 896, 128>}, {pipeline_mode = #tpu.pipeline_mode<synchronous>, transform_indices = @transform_2, window_bounds = array<i64: 1, 128>}, {pipeline_mode = #tpu.pipeline_mode<synchronous>, transform_indices = @transform_3, window_bounds = array<i64: 128, 128>}, {pipeline_mode = #tpu.pipeline_mode<synchronous>, transform_indices = @transform_4, window_bounds = array<i64: 1, 128>}, {pipeline_mode = #tpu.pipeline_mode<synchronous>, transform_indices = @transform_5, window_bounds = array<i64: 128, 128>}, {pipeline_mode = #tpu.pipeline_mode<synchronous>, transform_indices = @transform_6, window_bounds = array<i64: 1, 128>}, {transform_indices = @transform_7, window_bounds = array<i64: 2, 128>}]} {
    %c0 = arith.constant 0 : index
    %c0_0 = arith.constant 0 : index
    %0 = vector.load %arg1[%c0, %c0_0] : memref<2x896xbf16, #tpu.memory_space<vmem>>, vector<2x896xbf16>
    %c0_1 = arith.constant 0 : index
    %c0_2 = arith.constant 0 : index
    %1 = vector.load %arg2[%c0_1, %c0_2] : memref<896x128xbf16, #tpu.memory_space<vmem>>, vector<896x128xbf16>
    %cst = arith.constant dense<0.000000e+00> : vector<2x128xf32>
    %2 = tpu.matmul %0, %1, %cst {dimension_numbers = #tpu.dot_dimension_numbers<[1], [0], [0], [1], [0, 0, 1, 1], [], []>} : vector<2x896xbf16>, vector<896x128xbf16>, vector<2x128xf32> -> vector<2x128xf32>
    %c0_3 = arith.constant 0 : index
    %c0_4 = arith.constant 0 : index
    %3 = vector.load %arg3[%c0_3, %c0_4] : memref<1x128xf32, #tpu.memory_space<vmem>>, vector<1x128xf32>
    %4 = vector.broadcast %3 : vector<1x128xf32> to vector<2x128xf32>
    %5 = arith.addf %2, %4 : vector<2x128xf32>
    %cst_5 = arith.constant 0.000000e+00 : f32
    %6 = vector.broadcast %cst_5 : f32 to vector<2x128xf32>
    %7 = arith.maximumf %5, %6 : vector<2x128xf32>
    %8 = arith.truncf %7 : vector<2x128xf32> to vector<2x128xbf16>
    %c0_6 = arith.constant 0 : index
    %c0_7 = arith.constant 0 : index
    %9 = vector.load %arg4[%c0_6, %c0_7] : memref<128x128xbf16, #tpu.memory_space<vmem>>, vector<128x128xbf16>
    %cst_8 = arith.constant dense<0.000000e+00> : vector<2x128xf32>
    %10 = tpu.matmul %8, %9, %cst_8 {dimension_numbers = #tpu.dot_dimension_numbers<[1], [0], [0], [1], [0, 0, 1, 1], [], []>} : vector<2x128xbf16>, vector<128x128xbf16>, vector<2x128xf32> -> vector<2x128xf32>
    %c0_9 = arith.constant 0 : index
    %c0_10 = arith.constant 0 : index
    %11 = vector.load %arg5[%c0_9, %c0_10] : memref<1x128xf32, #tpu.memory_space<vmem>>, vector<1x128xf32>
    %12 = vector.broadcast %11 : vector<1x128xf32> to vector<2x128xf32>
    %13 = arith.addf %10, %12 : vector<2x128xf32>
    %cst_11 = arith.constant 0.000000e+00 : f32
    %14 = vector.broadcast %cst_11 : f32 to vector<2x128xf32>
    %15 = arith.maximumf %13, %14 : vector<2x128xf32>
    %16 = arith.truncf %15 : vector<2x128xf32> to vector<2x128xbf16>
    %c0_12 = arith.constant 0 : index
    %c0_13 = arith.constant 0 : index
    %17 = vector.load %arg6[%c0_12, %c0_13] : memref<128x128xbf16, #tpu.memory_space<vmem>>, vector<128x128xbf16>
    %cst_14 = arith.constant dense<0.000000e+00> : vector<2x128xf32>
    %18 = tpu.matmul %16, %17, %cst_14 {dimension_numbers = #tpu.dot_dimension_numbers<[1], [0], [0], [1], [0, 0, 1, 1], [], []>} : vector<2x128xbf16>, vector<128x128xbf16>, vector<2x128xf32> -> vector<2x128xf32>
    %c0_15 = arith.constant 0 : index
    %c0_16 = arith.constant 0 : index
    %19 = vector.load %arg7[%c0_15, %c0_16] : memref<1x128xf32, #tpu.memory_space<vmem>>, vector<1x128xf32>
    %20 = vector.broadcast %19 : vector<1x128xf32> to vector<2x128xf32>
    %21 = arith.addf %18, %20 : vector<2x128xf32>
    %c0_17 = arith.constant 0 : index
    %c0_18 = arith.constant 0 : index
    %22 = vector.load %arg8[%c0_17, %c0_18] : memref<2x128xf32, #tpu.memory_space<vmem>>, vector<2x128xf32>
    tpu.vector_store %arg8[%c0_17, %c0_18], %21 {strides = array<i32>} : memref<2x128xf32, #tpu.memory_space<vmem>>, vector<2x128xf32>,
    return
  }
  func.func @transform_0(%arg0: i32) -> (i32, i32) {
    %c0_i32 = arith.constant 0 : i32
    %c0_i32_0 = arith.constant 0 : i32
    return %arg0, %c0_i32 : i32, i32
  }
  func.func @transform_1(%arg0: i32) -> (i32, i32) {
    %c0_i32 = arith.constant 0 : i32
    %c0_i32_0 = arith.constant 0 : i32
    %c0_i32_1 = arith.constant 0 : i32
    return %c0_i32, %c0_i32_0 : i32, i32
  }
  func.func @transform_2(%arg0: i32) -> (i32, i32) {
    %c0_i32 = arith.constant 0 : i32
    %c0_i32_0 = arith.constant 0 : i32
    %c0_i32_1 = arith.constant 0 : i32
    return %c0_i32, %c0_i32_0 : i32, i32
  }
  func.func @transform_3(%arg0: i32) -> (i32, i32) {
    %c0_i32 = arith.constant 0 : i32
    %c0_i32_0 = arith.constant 0 : i32
    %c0_i32_1 = arith.constant 0 : i32
    return %c0_i32, %c0_i32_0 : i32, i32
  }
  func.func @transform_4(%arg0: i32) -> (i32, i32) {
    %c0_i32 = arith.constant 0 : i32
    %c0_i32_0 = arith.constant 0 : i32
    %c0_i32_1 = arith.constant 0 : i32
    return %c0_i32, %c0_i32_0 : i32, i32
  }
  func.func @transform_5(%arg0: i32) -> (i32, i32) {
    %c0_i32 = arith.constant 0 : i32
    %c0_i32_0 = arith.constant 0 : i32
    %c0_i32_1 = arith.constant 0 : i32
    return %c0_i32, %c0_i32_0 : i32, i32
  }
  func.func @transform_6(%arg0: i32) -> (i32, i32) {
    %c0_i32 = arith.constant 0 : i32
    %c0_i32_0 = arith.constant 0 : i32
    %c0_i32_1 = arith.constant 0 : i32
    return %c0_i32, %c0_i32_0 : i32, i32
  }
  func.func @transform_7(%arg0: i32) -> (i32, i32) {
    %c0_i32 = arith.constant 0 : i32
    %c0_i32_0 = arith.constant 0 : i32
    return %arg0, %c0_i32 : i32, i32
  }
}

</mosaic_0001>

<llo_original>
// kernel: lenet_forward.3
$region0: #{lenet_forward.3}
  #allocation0 [shape = 'u32[]', space=smem, size = 0x4, offset = 0x4, fixed_abs, tag = 'smem constant byte address 0x4 - core index']
  #allocation1 [shape = 'u32[144,128]{1,0:T(1,128)}', space=vmem, size = 0x12000, scoped, tag = 'internal scratch']
  %s0 = inlined_call_operand.vmem [shape: bf16[4,2,144,25], index: 0, kind: input, shape index: {}]
  %s1 = inlined_call_operand.vmem [shape: bf16[25,128], index: 1, kind: input, shape index: {}]
  %s2 = inlined_call_operand.vmem [shape: f32[1,128], index: 2, kind: input, shape index: {}]
  %s3 = inlined_call_operand.vmem [shape: f32[2,144,128], index: 3, kind: output, shape index: {}]
  %s4 = sld [smem:[#allocation0]]
  $region22: #{lenet_forward.3} parent=0
    _
  %s6 = ssub.s32 1, %s4
  %s7 = scalar_select 0, %s6, %s4
  // Predicated region
  $region2: #{lenet_forward.3} parent=0 // pred_check
    _
  $region3: #{lenet_forward.3} parent=0 // pred_check_branch
    %9 = sbr.rel (0) target = $region5
  $region4: #{lenet_forward.3} parent=0 // pred_region
    _
  $region5: #{lenet_forward.3} parent=0 // pred_fallthru
    _
  // Predicated region
  $region6: #{lenet_forward.3} parent=0 // pred_check
    _
  $region7: #{lenet_forward.3} parent=0 // pred_check_branch
    %11 = sbr.rel (0) target = $region9
  $region8: #{lenet_forward.3} parent=0 // pred_region
    _
  $region9: #{lenet_forward.3} parent=0 // pred_fallthru
    _
  // Predicated region
  $region10: #{lenet_forward.3} parent=0 // pred_check
    _
  $region11: #{lenet_forward.3} parent=0 // pred_check_branch
    %13 = sbr.rel (0) target = $region13
  $region12: #{lenet_forward.3} parent=0 // pred_region
    _
  $region13: #{lenet_forward.3} parent=0 // pred_fallthru
    _
  %v15 = vld [vmem:[%s1] sm:$0xf]
  %v16 = vld [vmem:[%s1 + $0x4] sm:$0xf]
  %v17 = vld [vmem:[%s1 + $0x8] sm:$0xf]
  %v18 = vld [vmem:[%s1 + $0xc] sm:$0x1]
  %v19 = vld [vmem:[%s2] sm:$0x1]
  %v20 = vld [vmem:[%s0] sm:$0xf]
  %v21 = vld [vmem:[%s0 + $0x4] sm:$0xf]
  %v22 = vld [vmem:[%s0 + $0x8] sm:$0xf]
  %v23 = vld [vmem:[%s0 + $0xc] sm:$0xf]
  %v24 = vld [vmem:[%s0 + $0x10] sm:$0xf]
  %v25 = vld [vmem:[%s0 + $0x14] sm:$0xf]
  %v26 = vld [vmem:[%s0 + $0x18] sm:$0xf]
  %v27 = vld [vmem:[%s0 + $0x1c] sm:$0xf]
  %v28 = vld [vmem:[%s0 + $0x20] sm:$0xf]
  %v29 = vld [vmem:[%s0 + $0x24] sm:$0xf]
  %v30 = vld [vmem:[%s0 + $0x28] sm:$0xf]
  %v31 = vld [vmem:[%s0 + $0x2c] sm:$0xf]
  %v32 = vld [vmem:[%s0 + $0x30] sm:$0xf]
  %v33 = vld [vmem:[%s0 + $0x34] sm:$0xf]
  %v34 = vld [vmem:[%s0 + $0x38] sm:$0xf]
  %v35 = vld [vmem:[%s0 + $0x3c] sm:$0xf]
  %v36 = vld [vmem:[%s0 + $0x40] sm:$0xf]
  %v37 = vld [vmem:[%s0 + $0x44] sm:$0xf]
  %v38 = vld [vmem:[%s0 + $0x48] sm:$0xf]
  %v39 = vld [vmem:[%s0 + $0x4c] sm:$0xf]
  %v40 = vld [vmem:[%s0 + $0x50] sm:$0xf]
  %v41 = vld [vmem:[%s0 + $0x54] sm:$0xf]
  %v42 = vld [vmem:[%s0 + $0x58] sm:$0xf]
  %v43 = vld [vmem:[%s0 + $0x5c] sm:$0xf]
  %v44 = vld [vmem:[%s0 + $0x60] sm:$0xf]
  %v45 = vld [vmem:[%s0 + $0x64] sm:$0xf]
  %v46 = vld [vmem:[%s0 + $0x68] sm:$0xf]
  %v47 = vld [vmem:[%s0 + $0x6c] sm:$0xf]
  %v48 = vld [vmem:[%s0 + $0x70] sm:$0xf]
  %v49 = vld [vmem:[%s0 + $0x74] sm:$0xf]
  %v50 = vld [vmem:[%s0 + $0x78] sm:$0xf]
  %v51 = vld [vmem:[%s0 + $0x7c] sm:$0xf]
  %v52 = vld [vmem:[%s0 + $0x80] sm:$0xf]
  %v53 = vld [vmem:[%s0 + $0x84] sm:$0xf]
  %v54 = vld [vmem:[%s0 + $0x88] sm:$0xf]
  %v55 = vld [vmem:[%s0 + $0x8c] sm:$0xf]
  %v57 = vlaneseq
  %v58 = vshrl.u32 %v57, 7
  %v59 = vsub.s32 0, %v58
  %v60 = vrot.slane %v19, %v59
  %v98 = vunpack.c.l.b16 %v20
  %v99 = vunpack.c.l.b16 %v21
  %v100 = vunpack.c.l.b16 %v22
  %v101 = vunpack.c.l.b16 %v23
  %v102 = vunpack.c.l.b16 %v24
  %v103 = vunpack.c.l.b16 %v25
  %v104 = vunpack.c.l.b16 %v26
  %v105 = vunpack.c.l.b16 %v27
  %v106 = vunpack.c.l.b16 %v28
  %v107 = vunpack.c.l.b16 %v29
  %v108 = vunpack.c.l.b16 %v30
  %v109 = vunpack.c.l.b16 %v31
  %v110 = vunpack.c.l.b16 %v32
  %v111 = vunpack.c.l.b16 %v33
  %v112 = vunpack.c.l.b16 %v34
  %v113 = vunpack.c.l.b16 %v35
  %v114 = vunpack.c.l.b16 %v36
  %v115 = vunpack.c.l.b16 %v37
  %v116 = vunpack.c.l.b16 %v38
  %v117 = vunpack.c.l.b16 %v39
  %v118 = vunpack.c.l.b16 %v40
  %v119 = vunpack.c.l.b16 %v41
  %v120 = vunpack.c.l.b16 %v42
  %v121 = vunpack.c.l.b16 %v43
  %v122 = vunpack.c.l.b16 %v44
  %v123 = vunpack.c.l.b16 %v45
  %v124 = vunpack.c.l.b16 %v46
  %v125 = vunpack.c.l.b16 %v47
  %v126 = vunpack.c.l.b16 %v48
  %v127 = vunpack.c.l.b16 %v49
  %v128 = vunpack.c.l.b16 %v50
  %v129 = vunpack.c.l.b16 %v51
  %v130 = vunpack.c.l.b16 %v52
  %v131 = vunpack.c.l.b16 %v53
  %v132 = vunpack.c.l.b16 %v54
  %v133 = vunpack.c.l.b16 %v55
  %v134 = vpack.c.b16 %v99, %v98
  %v135 = vpack.c.b16 %v101, %v100
  %v136 = vpack.c.b16 %v103, %v102
  %v137 = vpack.c.b16 %v105, %v104
  %v138 = vpack.c.b16 %v107, %v106
  %v139 = vpack.c.b16 %v109, %v108
  %v140 = vpack.c.b16 %v111, %v110
  %v141 = vpack.c.b16 %v113, %v112
  %v142 = vpack.c.b16 %v115, %v114
  %v143 = vpack.c.b16 %v117, %v116
  %v144 = vpack.c.b16 %v119, %v118
  %v145 = vpack.c.b16 %v121, %v120
  %v146 = vpack.c.b16 %v123, %v122
  %v147 = vpack.c.b16 %v125, %v124
  %v148 = vpack.c.b16 %v127, %v126
  %v149 = vpack.c.b16 %v129, %v128
  %v150 = vpack.c.b16 %v131, %v130
  %v151 = vpack.c.b16 %v133, %v132
  %v156 = vunpack.c.l.b16 %v15
  %v157 = vunpack.c.l.b16 %v16
  %v158 = vunpack.c.l.b16 %v17
  %v159 = vunpack.c.l.b16 %v18
  %v160 = vpack.c.b16 %v157, %v156
  %v161 = vpack.c.b16 %v159, %v158
  %vm163 = vcmask 203776
  %v165 = vsel %vm163, %v134, 0
  %v168 = vsel %vm163, %v135, 0
  %v171 = vsel %vm163, %v136, 0
  %v174 = vsel %vm163, %v137, 0
  %v177 = vsel %vm163, %v138, 0
  %v180 = vsel %vm163, %v139, 0
  %v183 = vsel %vm163, %v140, 0
  %v186 = vsel %vm163, %v141, 0
  %v189 = vsel %vm163, %v142, 0
  %v192 = vsel %vm163, %v143, 0
  %v195 = vsel %vm163, %v144, 0
  %v198 = vsel %vm163, %v145, 0
  %v201 = vsel %vm163, %v146, 0
  %v204 = vsel %vm163, %v147, 0
  %v207 = vsel %vm163, %v148, 0
  %v210 = vsel %vm163, %v149, 0
  %v213 = vsel %vm163, %v150, 0
  %v216 = vsel %vm163, %v151, 0
  %vm218 = vcmask 1043456
  %vm219 = vcmask 1044480
  %v220 = vsel %vm218, 4294967295, 65535
  %v221 = vsel %vm219, %v220, 0
  %v223 = vand.u32 %v161, %v221
  %225 = vmatprep.subr.bf16.mxu0 0
  %226 = vmatpush1.bf16.msra.mxu0 %v160
  %227 = vmatprep.subr.bf16.mxu0 0
  %228 = vmatpush1.bf16.msra.mxu0 %v223
  %229 = vmatprep.subr.bf16.mxu0 0
  %230 = vmatpush1.bf16.msra.mxu0 0
  %231 = vmatprep.subr.bf16.mxu0 0
  %232 = vmatpush1.bf16.msra.mxu0 0
  %233 = vmatprep.subr.bf16.mxu0 0
  %234 = vmatpush1.bf16.msra.mxu0 0
  %235 = vmatprep.subr.bf16.mxu0 0
  %236 = vmatpush1.bf16.msra.mxu0 0
  %237 = vmatprep.subr.bf16.mxu0 0
  %238 = vmatpush1.bf16.msra.mxu0 0
  %239 = vmatprep.subr.bf16.mxu0 0
  %240 = vmatpush1.bf16.msra.mxu0 0
  %241 = vmatprep.subr.bf16.mxu0 0
  %242 = vmatpush1.bf16.msra.mxu0 0
  %243 = vmatprep.subr.bf16.mxu0 0
  %244 = vmatpush1.bf16.msra.mxu0 0
  %245 = vmatprep.subr.bf16.mxu0 0
  %246 = vmatpush1.bf16.msra.mxu0 0
  %247 = vmatprep.subr.bf16.mxu0 0
  %248 = vmatpush1.bf16.msra.mxu0 0
  %249 = vmatprep.subr.bf16.mxu0 0
  %250 = vmatpush1.bf16.msra.mxu0 0
  %251 = vmatprep.subr.bf16.mxu0 0
  %252 = vmatpush1.bf16.msra.mxu0 0
  %253 = vmatprep.subr.bf16.mxu0 0
  %254 = vmatpush1.bf16.msra.mxu0 0
  %255 = vmatprep.subr.bf16.mxu0 0
  %256 = vmatpush1.bf16.msra.mxu0 0
  %257 = vmatprep.mubr.bf16.mxu0 0
  %258 = vmatmul.mubr.bf16.gmra.mrb[0].mxu0 %v165
  %v259 = vpop.f32.mrb[0].mxu0
  %v260 = vadd.f32 %v60, %v259
  %v261 = vpop.f32.mrb[0].mxu0
  %v262 = vpop.f32.mrb[0].mxu0
  %v263 = vadd.f32 %v60, %v262
  %v264 = vpop.f32.mrb[0].mxu0
  %265 = vmatprep.mubr.bf16.mxu0 0
  %266 = vmatmul.mubr.bf16.gmra.mrb[0].mxu0 %v168
  %v267 = vpop.f32.mrb[0].mxu0
  %v268 = vadd.f32 %v60, %v267
  %v269 = vpop.f32.mrb[0].mxu0
  %v270 = vpop.f32.mrb[0].mxu0
  %v271 = vadd.f32 %v60, %v270
  %v272 = vpop.f32.mrb[0].mxu0
  %273 = vmatprep.mubr.bf16.mxu0 0
  %274 = vmatmul.mubr.bf16.gmra.mrb[0].mxu0 %v171
  %v275 = vpop.f32.mrb[0].mxu0
  %v276 = vadd.f32 %v60, %v275
  %v277 = vpop.f32.mrb[0].mxu0
  %v278 = vpop.f32.mrb[0].mxu0
  %v279 = vadd.f32 %v60, %v278
  %v280 = vpop.f32.mrb[0].mxu0
  %281 = vmatprep.mubr.bf16.mxu0 0
  %282 = vmatmul.mubr.bf16.gmra.mrb[0].mxu0 %v174
  %v283 = vpop.f32.mrb[0].mxu0
  %v284 = vadd.f32 %v60, %v283
  %v285 = vpop.f32.mrb[0].mxu0
  %v286 = vpop.f32.mrb[0].mxu0
  %v287 = vadd.f32 %v60, %v286
  %v288 = vpop.f32.mrb[0].mxu0
  %289 = vmatprep.mubr.bf16.mxu0 0
  %290 = vmatmul.mubr.bf16.gmra.mrb[0].mxu0 %v177
  %v291 = vpop.f32.mrb[0].mxu0
  %v292 = vadd.f32 %v60, %v291
  %v293 = vpop.f32.mrb[0].mxu0
  %v294 = vpop.f32.mrb[0].mxu0
  %v295 = vadd.f32 %v60, %v294
  %v296 = vpop.f32.mrb[0].mxu0
  %297 = vmatprep.mubr.bf16.mxu0 0
  %298 = vmatmul.mubr.bf16.gmra.mrb[0].mxu0 %v180
  %v299 = vpop.f32.mrb[0].mxu0
  %v300 = vadd.f32 %v60, %v299
  %v301 = vpop.f32.mrb[0].mxu0
  %v302 = vpop.f32.mrb[0].mxu0
  %v303 = vadd.f32 %v60, %v302
  %v304 = vpop.f32.mrb[0].mxu0
  %305 = vmatprep.mubr.bf16.mxu0 0
  %306 = vmatmul.mubr.bf16.gmra.mrb[0].mxu0 %v183
  %v307 = vpop.f32.mrb[0].mxu0
  %v308 = vadd.f32 %v60, %v307
  %v309 = vpop.f32.mrb[0].mxu0
  %v310 = vpop.f32.mrb[0].mxu0
  %v311 = vadd.f32 %v60, %v310
  %v312 = vpop.f32.mrb[0].mxu0
  %313 = vmatprep.mubr.bf16.mxu0 0
  %314 = vmatmul.mubr.bf16.gmra.mrb[0].mxu0 %v186
  %v315 = vpop.f32.mrb[0].mxu0
  %v316 = vadd.f32 %v60, %v315
  %v317 = vpop.f32.mrb[0].mxu0
  %v318 = vpop.f32.mrb[0].mxu0
  %v319 = vadd.f32 %v60, %v318
  %v320 = vpop.f32.mrb[0].mxu0
  %321 = vmatprep.mubr.bf16.mxu0 0
  %322 = vmatmul.mubr.bf16.gmra.mrb[0].mxu0 %v189
  %v323 = vpop.f32.mrb[0].mxu0
  %v324 = vadd.f32 %v60, %v323
  %v325 = vpop.f32.mrb[0].mxu0
  %v326 = vpop.f32.mrb[0].mxu0
  %v327 = vadd.f32 %v60, %v326
  %v328 = vpop.f32.mrb[0].mxu0
  %329 = vmatprep.mubr.bf16.mxu0 0
  %330 = vmatmul.mubr.bf16.gmra.mrb[0].mxu0 %v192
  %v331 = vpop.f32.mrb[0].mxu0
  %v332 = vadd.f32 %v60, %v331
  %v333 = vpop.f32.mrb[0].mxu0
  %v334 = vpop.f32.mrb[0].mxu0
  %v335 = vadd.f32 %v60, %v334
  %v336 = vpop.f32.mrb[0].mxu0
  %337 = vmatprep.mubr.bf16.mxu0 0
  %338 = vmatmul.mubr.bf16.gmra.mrb[0].mxu0 %v195
  %v339 = vpop.f32.mrb[0].mxu0
  %v340 = vadd.f32 %v60, %v339
  %v341 = vpop.f32.mrb[0].mxu0
  %v342 = vpop.f32.mrb[0].mxu0
  %v343 = vadd.f32 %v60, %v342
  %v344 = vpop.f32.mrb[0].mxu0
  %345 = vmatprep.mubr.bf16.mxu0 0
  %346 = vmatmul.mubr.bf16.gmra.mrb[0].mxu0 %v198
  %v347 = vpop.f32.mrb[0].mxu0
  %v348 = vadd.f32 %v60, %v347
  %v349 = vpop.f32.mrb[0].mxu0
  %v350 = vpop.f32.mrb[0].mxu0
  %v351 = vadd.f32 %v60, %v350
  %v352 = vpop.f32.mrb[0].mxu0
  %353 = vmatprep.mubr.bf16.mxu0 0
  %354 = vmatmul.mubr.bf16.gmra.mrb[0].mxu0 %v201
  %v355 = vpop.f32.mrb[0].mxu0
  %v356 = vadd.f32 %v60, %v355
  %v357 = vpop.f32.mrb[0].mxu0
  %v358 = vpop.f32.mrb[0].mxu0
  %v359 = vadd.f32 %v60, %v358
  %v360 = vpop.f32.mrb[0].mxu0
  %361 = vmatprep.mubr.bf16.mxu0 0
  %362 = vmatmul.mubr.bf16.gmra.mrb[0].mxu0 %v204
  %v363 = vpop.f32.mrb[0].mxu0
  %v364 = vadd.f32 %v60, %v363
  %v365 = vpop.f32.mrb[0].mxu0
  %v366 = vpop.f32.mrb[0].mxu0
  %v367 = vadd.f32 %v60, %v366
  %v368 = vpop.f32.mrb[0].mxu0
  %369 = vmatprep.mubr.bf16.mxu0 0
  %370 = vmatmul.mubr.bf16.gmra.mrb[0].mxu0 %v207
  %v371 = vpop.f32.mrb[0].mxu0
  %v372 = vadd.f32 %v60, %v371
  %v373 = vpop.f32.mrb[0].mxu0
  %v374 = vpop.f32.mrb[0].mxu0
  %v375 = vadd.f32 %v60, %v374
  %v376 = vpop.f32.mrb[0].mxu0
  %377 = vmatprep.mubr.bf16.mxu0 0
  %378 = vmatmul.mubr.bf16.gmra.mrb[0].mxu0 %v210
  %v379 = vpop.f32.mrb[0].mxu0
  %v380 = vadd.f32 %v60, %v379
  %v381 = vpop.f32.mrb[0].mxu0
  %v382 = vpop.f32.mrb[0].mxu0
  %v383 = vadd.f32 %v60, %v382
  %v384 = vpop.f32.mrb[0].mxu0
  %385 = vmatprep.mubr.bf16.mxu0 0
  %386 = vmatmul.mubr.bf16.gmra.mrb[0].mxu0 %v213
  %v387 = vpop.f32.mrb[0].mxu0
  %v388 = vadd.f32 %v60, %v387
  %v389 = vpop.f32.mrb[0].mxu0
  %v390 = vpop.f32.mrb[0].mxu0
  %v391 = vadd.f32 %v60, %v390
  %v392 = vpop.f32.mrb[0].mxu0
  %393 = vmatprep.mubr.bf16.mxu0 0
  %394 = vmatmul.mubr.bf16.gmra.mrb[0].mxu0 %v216
  %v395 = vpop.f32.mrb[0].mxu0
  %v396 = vadd.f32 %v60, %v395
  %v397 = vpop.f32.mrb[0].mxu0
  %v398 = vpop.f32.mrb[0].mxu0
  %v399 = vadd.f32 %v60, %v398
  %v400 = vpop.f32.mrb[0].mxu0
  %401 = vdwg.mxu0
  %v402 = vmax.f32 %v260, 0.0
  %v403 = vmax.f32 %v263, 0.0
  %v404 = vmax.f32 %v268, 0.0
  %v405 = vmax.f32 %v271, 0.0
  %v406 = vmax.f32 %v276, 0.0
  %v407 = vmax.f32 %v279, 0.0
  %v408 = vmax.f32 %v284, 0.0
  %v409 = vmax.f32 %v287, 0.0
  %v410 = vmax.f32 %v292, 0.0
  %v411 = vmax.f32 %v295, 0.0
  %v412 = vmax.f32 %v300, 0.0
  %v413 = vmax.f32 %v303, 0.0
  %v414 = vmax.f32 %v308, 0.0
  %v415 = vmax.f32 %v311, 0.0
  %v416 = vmax.f32 %v316, 0.0
  %v417 = vmax.f32 %v319, 0.0
  %v418 = vmax.f32 %v324, 0.0
  %v419 = vmax.f32 %v327, 0.0
  %v420 = vmax.f32 %v332, 0.0
  %v421 = vmax.f32 %v335, 0.0
  %v422 = vmax.f32 %v340, 0.0
  %v423 = vmax.f32 %v343, 0.0
  %v424 = vmax.f32 %v348, 0.0
  %v425 = vmax.f32 %v351, 0.0
  %v426 = vmax.f32 %v356, 0.0
  %v427 = vmax.f32 %v359, 0.0
  %v428 = vmax.f32 %v364, 0.0
  %v429 = vmax.f32 %v367, 0.0
  %v430 = vmax.f32 %v372, 0.0
  %v431 = vmax.f32 %v375, 0.0
  %v432 = vmax.f32 %v380, 0.0
  %v433 = vmax.f32 %v383, 0.0
  %v434 = vmax.f32 %v388, 0.0
  %v435 = vmax.f32 %v391, 0.0
  %v436 = vmax.f32 %v396, 0.0
  %v437 = vmax.f32 %v399, 0.0
  %s438 = scalar_lea.vmem %s0, 144
  %v439 = vld [vmem:[%s438] sm:$0xf]
  %v440 = vld [vmem:[%s438 + $0x4] sm:$0xf]
  %v441 = vld [vmem:[%s438 + $0x8] sm:$0xf]
  %v442 = vld [vmem:[%s438 + $0xc] sm:$0xf]
  %v443 = vld [vmem:[%s438 + $0x10] sm:$0xf]
  %v444 = vld [vmem:[%s438 + $0x14] sm:$0xf]
  %v445 = vld [vmem:[%s438 + $0x18] sm:$0xf]
  %v446 = vld [vmem:[%s438 + $0x1c] sm:$0xf]
  %v447 = vld [vmem:[%s438 + $0x20] sm:$0xf]
  %v448 = vld [vmem:[%s438 + $0x24] sm:$0xf]
  %v449 = vld [vmem:[%s438 + $0x28] sm:$0xf]
  %v450 = vld [vmem:[%s438 + $0x2c] sm:$0xf]
  %v451 = vld [vmem:[%s438 + $0x30] sm:$0xf]
  %v452 = vld [vmem:[%s438 + $0x34] sm:$0xf]
  %v453 = vld [vmem:[%s438 + $0x38] sm:$0xf]
  %v454 = vld [vmem:[%s438 + $0x3c] sm:$0xf]
  %v455 = vld [vmem:[%s438 + $0x40] sm:$0xf]
  %v456 = vld [vmem:[%s438 + $0x44] sm:$0xf]
  %v457 = vld [vmem:[%s438 + $0x48] sm:$0xf]
  %v458 = vld [vmem:[%s438 + $0x4c] sm:$0xf]
  %v459 = vld [vmem:[%s438 + $0x50] sm:$0xf]
  %v460 = vld [vmem:[%s438 + $0x54] sm:$0xf]
  %v461 = vld [vmem:[%s438 + $0x58] sm:$0xf]
  %v462 = vld [vmem:[%s438 + $0x5c] sm:$0xf]
  %v463 = vld [vmem:[%s438 + $0x60] sm:$0xf]
  %v464 = vld [vmem:[%s438 + $0x64] sm:$0xf]
  %v465 = vld [vmem:[%s438 + $0x68] sm:$0xf]
  %v466 = vld [vmem:[%s438 + $0x6c] sm:$0xf]
  %v467 = vld [vmem:[%s438 + $0x70] sm:$0xf]
  %v468 = vld [vmem:[%s438 + $0x74] sm:$0xf]
  %v469 = vld [vmem:[%s438 + $0x78] sm:$0xf]
  %v470 = vld [vmem:[%s438 + $0x7c] sm:$0xf]
  %v471 = vld [vmem:[%s438 + $0x80] sm:$0xf]
  %v472 = vld [vmem:[%s438 + $0x84] sm:$0xf]
  %v473 = vld [vmem:[%s438 + $0x88] sm:$0xf]
  %v474 = vld [vmem:[%s438 + $0x8c] sm:$0xf]
  %v511 = vunpack.c.l.b16 %v439
  %v512 = vunpack.c.l.b16 %v440
  %v513 = vunpack.c.l.b16 %v441
  %v514 = vunpack.c.l.b16 %v442
  %v515 = vunpack.c.l.b16 %v443
  %v516 = vunpack.c.l.b16 %v444
  %v517 = vunpack.c.l.b16 %v445
  %v518 = vunpack.c.l.b16 %v446
  %v519 = vunpack.c.l.b16 %v447
  %v520 = vunpack.c.l.b16 %v448
  %v521 = vunpack.c.l.b16 %v449
  %v522 = vunpack.c.l.b16 %v450
  %v523 = vunpack.c.l.b16 %v451
  %v524 = vunpack.c.l.b16 %v452
  %v525 = vunpack.c.l.b16 %v453
  %v526 = vunpack.c.l.b16 %v454
  %v527 = vunpack.c.l.b16 %v455
  %v528 = vunpack.c.l.b16 %v456
  %v529 = vunpack.c.l.b16 %v457
  %v530 = vunpack.c.l.b16 %v458
  %v531 = vunpack.c.l.b16 %v459
  %v532 = vunpack.c.l.b16 %v460
  %v533 = vunpack.c.l.b16 %v461
  %v534 = vunpack.c.l.b16 %v462
  %v535 = vunpack.c.l.b16 %v463
  %v536 = vunpack.c.l.b16 %v464
  %v537 = vunpack.c.l.b16 %v465
  %v538 = vunpack.c.l.b16 %v466
  %v539 = vunpack.c.l.b16 %v467
  %v540 = vunpack.c.l.b16 %v468
  %v541 = vunpack.c.l.b16 %v469
  %v542 = vunpack.c.l.b16 %v470
  %v543 = vunpack.c.l.b16 %v471
  %v544 = vunpack.c.l.b16 %v472
  %v545 = vunpack.c.l.b16 %v473
  %v546 = vunpack.c.l.b16 %v474
  %v547 = vpack.c.b16 %v512, %v511
  %v548 = vpack.c.b16 %v514, %v513
  %v549 = vpack.c.b16 %v516, %v515
  %v550 = vpack.c.b16 %v518, %v517
  %v551 = vpack.c.b16 %v520, %v519
  %v552 = vpack.c.b16 %v522, %v521
  %v553 = vpack.c.b16 %v524, %v523
  %v554 = vpack.c.b16 %v526, %v525
  %v555 = vpack.c.b16 %v528, %v527
  %v556 = vpack.c.b16 %v530, %v529
  %v557 = vpack.c.b16 %v532, %v531
  %v558 = vpack.c.b16 %v534, %v533
  %v559 = vpack.c.b16 %v536, %v535
  %v560 = vpack.c.b16 %v538, %v537
  %v561 = vpack.c.b16 %v540, %v539
  %v562 = vpack.c.b16 %v542, %v541
  %v563 = vpack.c.b16 %v544, %v543
  %v564 = vpack.c.b16 %v546, %v545
  %v566 = vsel %vm163, %v547, 0
  %v569 = vsel %vm163, %v548, 0
  %v572 = vsel %vm163, %v549, 0
  %v575 = vsel %vm163, %v550, 0
  %v578 = vsel %vm163, %v551, 0
  %v581 = vsel %vm163, %v552, 0
  %v584 = vsel %vm163, %v553, 0
  %v587 = vsel %vm163, %v554, 0
  %v590 = vsel %vm163, %v555, 0
  %v593 = vsel %vm163, %v556, 0
  %v596 = vsel %vm163, %v557, 0
  %v599 = vsel %vm163, %v558, 0
  %v602 = vsel %vm163, %v559, 0
  %v605 = vsel %vm163, %v560, 0
  %v608 = vsel %vm163, %v561, 0
  %v611 = vsel %vm163, %v562, 0
  %v614 = vsel %vm163, %v563, 0
  %v617 = vsel %vm163, %v564, 0
  %619 = vmatprep.subr.bf16.mxu0 0
  %620 = vmatpush1.bf16.msra.mxu0 %v160
  %621 = vmatprep.subr.bf16.mxu0 0
  %622 = vmatpush1.bf16.msra.mxu0 %v223
  %623 = vmatprep.subr.bf16.mxu0 0
  %624 = vmatpush1.bf16.msra.mxu0 0
  %625 = vmatprep.subr.bf16.mxu0 0
  %626 = vmatpush1.bf16.msra.mxu0 0
  %627 = vmatprep.subr.bf16.mxu0 0
  %628 = vmatpush1.bf16.msra.mxu0 0
  %629 = vmatprep.subr.bf16.mxu0 0
  %630 = vmatpush1.bf16.msra.mxu0 0
  %631 = vmatprep.subr.bf16.mxu0 0
  %632 = vmatpush1.bf16.msra.mxu0 0
  %633 = vmatprep.subr.bf16.mxu0 0
  %634 = vmatpush1.bf16.msra.mxu0 0
  %635 = vmatprep.subr.bf16.mxu0 0
  %636 = vmatpush1.bf16.msra.mxu0 0
  %637 = vmatprep.subr.bf16.mxu0 0
  %638 = vmatpush1.bf16.msra.mxu0 0
  %639 = vmatprep.subr.bf16.mxu0 0
  %640 = vmatpush1.bf16.msra.mxu0 0
  %641 = vmatprep.subr.bf16.mxu0 0
  %642 = vmatpush1.bf16.msra.mxu0 0
  %643 = vmatprep.subr.bf16.mxu0 0
  %644 = vmatpush1.bf16.msra.mxu0 0
  %645 = vmatprep.subr.bf16.mxu0 0
  %646 = vmatpush1.bf16.msra.mxu0 0
  %647 = vmatprep.subr.bf16.mxu0 0
  %648 = vmatpush1.bf16.msra.mxu0 0
  %649 = vmatprep.subr.bf16.mxu0 0
  %650 = vmatpush1.bf16.msra.mxu0 0
  %651 = vmatprep.mubr.bf16.mxu0 0
  %652 = vmatmul.mubr.bf16.gmra.mrb[0].mxu0 %v566
  %v653 = vpop.f32.mrb[0].mxu0
  %v654 = vadd.f32 %v60, %v653
  %v655 = vpop.f32.mrb[0].mxu0
  %v656 = vpop.f32.mrb[0].mxu0
  %v657 = vadd.f32 %v60, %v656
  %v658 = vpop.f32.mrb[0].mxu0
  %659 = vmatprep.mubr.bf16.mxu0 0
  %660 = vmatmul.mubr.bf16.gmra.mrb[0].mxu0 %v569
  %v661 = vpop.f32.mrb[0].mxu0
  %v662 = vadd.f32 %v60, %v661
  %v663 = vpop.f32.mrb[0].mxu0
  %v664 = vpop.f32.mrb[0].mxu0
  %v665 = vadd.f32 %v60, %v664
  %v666 = vpop.f32.mrb[0].mxu0
  %667 = vmatprep.mubr.bf16.mxu0 0
  %668 = vmatmul.mubr.bf16.gmra.mrb[0].mxu0 %v572
  %v669 = vpop.f32.mrb[0].mxu0
  %v670 = vadd.f32 %v60, %v669
  %v671 = vpop.f32.mrb[0].mxu0
  %v672 = vpop.f32.mrb[0].mxu0
  %v673 = vadd.f32 %v60, %v672
  %v674 = vpop.f32.mrb[0].mxu0
  %675 = vmatprep.mubr.bf16.mxu0 0
  %676 = vmatmul.mubr.bf16.gmra.mrb[0].mxu0 %v575
  %v677 = vpop.f32.mrb[0].mxu0
  %v678 = vadd.f32 %v60, %v677
  %v679 = vpop.f32.mrb[0].mxu0
  %v680 = vpop.f32.mrb[0].mxu0
  %v681 = vadd.f32 %v60, %v680
  %v682 = vpop.f32.mrb[0].mxu0
  %683 = vmatprep.mubr.bf16.mxu0 0
  %684 = vmatmul.mubr.bf16.gmra.mrb[0].mxu0 %v578
  %v685 = vpop.f32.mrb[0].mxu0
  %v686 = vadd.f32 %v60, %v685
  %v687 = vpop.f32.mrb[0].mxu0
  %v688 = vpop.f32.mrb[0].mxu0
  %v689 = vadd.f32 %v60, %v688
  %v690 = vpop.f32.mrb[0].mxu0
  %691 = vmatprep.mubr.bf16.mxu0 0
  %692 = vmatmul.mubr.bf16.gmra.mrb[0].mxu0 %v581
  %v693 = vpop.f32.mrb[0].mxu0
  %v694 = vadd.f32 %v60, %v693
  %v695 = vpop.f32.mrb[0].mxu0
  %v696 = vpop.f32.mrb[0].mxu0
  %v697 = vadd.f32 %v60, %v696
  %v698 = vpop.f32.mrb[0].mxu0
  %699 = vmatprep.mubr.bf16.mxu0 0
  %700 = vmatmul.mubr.bf16.gmra.mrb[0].mxu0 %v584
  %v701 = vpop.f32.mrb[0].mxu0
  %v702 = vadd.f32 %v60, %v701
  %v703 = vpop.f32.mrb[0].mxu0
  %v704 = vpop.f32.mrb[0].mxu0
  %v705 = vadd.f32 %v60, %v704
  %v706 = vpop.f32.mrb[0].mxu0
  %707 = vmatprep.mubr.bf16.mxu0 0
  %708 = vmatmul.mubr.bf16.gmra.mrb[0].mxu0 %v587
  %v709 = vpop.f32.mrb[0].mxu0
  %v710 = vadd.f32 %v60, %v709
  %v711 = vpop.f32.mrb[0].mxu0
  %v712 = vpop.f32.mrb[0].mxu0
  %v713 = vadd.f32 %v60, %v712
  %v714 = vpop.f32.mrb[0].mxu0
  %715 = vmatprep.mubr.bf16.mxu0 0
  %716 = vmatmul.mubr.bf16.gmra.mrb[0].mxu0 %v590
  %v717 = vpop.f32.mrb[0].mxu0
  %v718 = vadd.f32 %v60, %v717
  %v719 = vpop.f32.mrb[0].mxu0
  %v720 = vpop.f32.mrb[0].mxu0
  %v721 = vadd.f32 %v60, %v720
  %v722 = vpop.f32.mrb[0].mxu0
  %723 = vmatprep.mubr.bf16.mxu0 0
  %724 = vmatmul.mubr.bf16.gmra.mrb[0].mxu0 %v593
  %v725 = vpop.f32.mrb[0].mxu0
  %v726 = vadd.f32 %v60, %v725
  %v727 = vpop.f32.mrb[0].mxu0
  %v728 = vpop.f32.mrb[0].mxu0
  %v729 = vadd.f32 %v60, %v728
  %v730 = vpop.f32.mrb[0].mxu0
  %731 = vmatprep.mubr.bf16.mxu0 0
  %732 = vmatmul.mubr.bf16.gmra.mrb[0].mxu0 %v596
  %v733 = vpop.f32.mrb[0].mxu0
  %v734 = vadd.f32 %v60, %v733
  %v735 = vpop.f32.mrb[0].mxu0
  %v736 = vpop.f32.mrb[0].mxu0
  %v737 = vadd.f32 %v60, %v736
  %v738 = vpop.f32.mrb[0].mxu0
  %739 = vmatprep.mubr.bf16.mxu0 0
  %740 = vmatmul.mubr.bf16.gmra.mrb[0].mxu0 %v599
  %v741 = vpop.f32.mrb[0].mxu0
  %v742 = vadd.f32 %v60, %v741
  %v743 = vpop.f32.mrb[0].mxu0
  %v744 = vpop.f32.mrb[0].mxu0
  %v745 = vadd.f32 %v60, %v744
  %v746 = vpop.f32.mrb[0].mxu0
  %747 = vmatprep.mubr.bf16.mxu0 0
  %748 = vmatmul.mubr.bf16.gmra.mrb[0].mxu0 %v602
  %v749 = vpop.f32.mrb[0].mxu0
  %v750 = vadd.f32 %v60, %v749
  %v751 = vpop.f32.mrb[0].mxu0
  %v752 = vpop.f32.mrb[0].mxu0
  %v753 = vadd.f32 %v60, %v752
  %v754 = vpop.f32.mrb[0].mxu0
  %755 = vmatprep.mubr.bf16.mxu0 0
  %756 = vmatmul.mubr.bf16.gmra.mrb[0].mxu0 %v605
  %v757 = vpop.f32.mrb[0].mxu0
  %v758 = vadd.f32 %v60, %v757
  %v759 = vpop.f32.mrb[0].mxu0
  %v760 = vpop.f32.mrb[0].mxu0
  %v761 = vadd.f32 %v60, %v760
  %v762 = vpop.f32.mrb[0].mxu0
  %763 = vmatprep.mubr.bf16.mxu0 0
  %764 = vmatmul.mubr.bf16.gmra.mrb[0].mxu0 %v608
  %v765 = vpop.f32.mrb[0].mxu0
  %v766 = vadd.f32 %v60, %v765
  %v767 = vpop.f32.mrb[0].mxu0
  %v768 = vpop.f32.mrb[0].mxu0
  %v769 = vadd.f32 %v60, %v768
  %v770 = vpop.f32.mrb[0].mxu0
  %771 = vmatprep.mubr.bf16.mxu0 0
  %772 = vmatmul.mubr.bf16.gmra.mrb[0].mxu0 %v611
  %v773 = vpop.f32.mrb[0].mxu0
  %v774 = vadd.f32 %v60, %v773
  %v775 = vpop.f32.mrb[0].mxu0
  %v776 = vpop.f32.mrb[0].mxu0
  %v777 = vadd.f32 %v60, %v776
  %v778 = vpop.f32.mrb[0].mxu0
  %779 = vmatprep.mubr.bf16.mxu0 0
  %780 = vmatmul.mubr.bf16.gmra.mrb[0].mxu0 %v614
  %v781 = vpop.f32.mrb[0].mxu0
  %v782 = vadd.f32 %v60, %v781
  %v783 = vpop.f32.mrb[0].mxu0
  %v784 = vpop.f32.mrb[0].mxu0
  %v785 = vadd.f32 %v60, %v784
  %v786 = vpop.f32.mrb[0].mxu0
  %787 = vmatprep.mubr.bf16.mxu0 0
  %788 = vmatmul.mubr.bf16.gmra.mrb[0].mxu0 %v617
  %v789 = vpop.f32.mrb[0].mxu0
  %v790 = vadd.f32 %v60, %v789
  %v791 = vpop.f32.mrb[0].mxu0
  %v792 = vpop.f32.mrb[0].mxu0
  %v793 = vadd.f32 %v60, %v792
  %v794 = vpop.f32.mrb[0].mxu0
  %795 = vdwg.mxu0
  %v796 = vmax.f32 %v654, 0.0
  %v797 = vmax.f32 %v657, 0.0
  %v798 = vmax.f32 %v662, 0.0
  %v799 = vmax.f32 %v665, 0.0
  %v800 = vmax.f32 %v670, 0.0
  %v801 = vmax.f32 %v673, 0.0
  %v802 = vmax.f32 %v678, 0.0
  %v803 = vmax.f32 %v681, 0.0
  %v804 = vmax.f32 %v686, 0.0
  %v805 = vmax.f32 %v689, 0.0
  %v806 = vmax.f32 %v694, 0.0
  %v807 = vmax.f32 %v697, 0.0
  %v808 = vmax.f32 %v702, 0.0
  %v809 = vmax.f32 %v705, 0.0
  %v810 = vmax.f32 %v710, 0.0
  %v811 = vmax.f32 %v713, 0.0
  %v812 = vmax.f32 %v718, 0.0
  %v813 = vmax.f32 %v721, 0.0
  %v814 = vmax.f32 %v726, 0.0
  %v815 = vmax.f32 %v729, 0.0
  %v816 = vmax.f32 %v734, 0.0
  %v817 = vmax.f32 %v737, 0.0
  %v818 = vmax.f32 %v742, 0.0
  %v819 = vmax.f32 %v745, 0.0
  %v820 = vmax.f32 %v750, 0.0
  %v821 = vmax.f32 %v753, 0.0
  %v822 = vmax.f32 %v758, 0.0
  %v823 = vmax.f32 %v761, 0.0
  %v824 = vmax.f32 %v766, 0.0
  %v825 = vmax.f32 %v769, 0.0
  %v826 = vmax.f32 %v774, 0.0
  %v827 = vmax.f32 %v777, 0.0
  %v828 = vmax.f32 %v782, 0.0
  %v829 = vmax.f32 %v785, 0.0
  %v830 = vmax.f32 %v790, 0.0
  %v831 = vmax.f32 %v793, 0.0
  %v832 = vmax.f32 %v402, %v796
  %v833 = vmax.f32 %v403, %v797
  %v834 = vmax.f32 %v404, %v798
  %v835 = vmax.f32 %v405, %v799
  %v836 = vmax.f32 %v406, %v800
  %v837 = vmax.f32 %v407, %v801
  %v838 = vmax.f32 %v408, %v802
  %v839 = vmax.f32 %v409, %v803
  %v840 = vmax.f32 %v410, %v804
  %v841 = vmax.f32 %v411, %v805
  %v842 = vmax.f32 %v412, %v806
  %v843 = vmax.f32 %v413, %v807
  %v844 = vmax.f32 %v414, %v808
  %v845 = vmax.f32 %v415, %v809
  %v846 = vmax.f32 %v416, %v810
  %v847 = vmax.f32 %v417, %v811
  %v848 = vmax.f32 %v418, %v812
  %v849 = vmax.f32 %v419, %v813
  %v850 = vmax.f32 %v420, %v814
  %v851 = vmax.f32 %v421, %v815
  %v852 = vmax.f32 %v422, %v816
  %v853 = vmax.f32 %v423, %v817
  %v854 = vmax.f32 %v424, %v818
  %v855 = vmax.f32 %v425, %v819
  %v856 = vmax.f32 %v426, %v820
  %v857 = vmax.f32 %v427, %v821
  %v858 = vmax.f32 %v428, %v822
  %v859 = vmax.f32 %v429, %v823
  %v860 = vmax.f32 %v430, %v824
  %v861 = vmax.f32 %v431, %v825
  %v862 = vmax.f32 %v432, %v826
  %v863 = vmax.f32 %v433, %v827
  %v864 = vmax.f32 %v434, %v828
  %v865 = vmax.f32 %v435, %v829
  %v866 = vmax.f32 %v436, %v830
  %v867 = vmax.f32 %v437, %v831
  %s868 = scalar_lea.vmem %s0, 288
  %v869 = vld [vmem:[%s868] sm:$0xf]
  %v870 = vld [vmem:[%s868 + $0x4] sm:$0xf]
  %v871 = vld [vmem:[%s868 + $0x8] sm:$0xf]
  %v872 = vld [vmem:[%s868 + $0xc] sm:$0xf]
  %v873 = vld [vmem:[%s868 + $0x10] sm:$0xf]
  %v874 = vld [vmem:[%s868 + $0x14] sm:$0xf]
  %v875 = vld [vmem:[%s868 + $0x18] sm:$0xf]
  %v876 = vld [vmem:[%s868 + $0x1c] sm:$0xf]
  %v877 = vld [vmem:[%s868 + $0x20] sm:$0xf]
  %v878 = vld [vmem:[%s868 + $0x24] sm:$0xf]
  %v879 = vld [vmem:[%s868 + $0x28] sm:$0xf]
  %v880 = vld [vmem:[%s868 + $0x2c] sm:$0xf]
  %v881 = vld [vmem:[%s868 + $0x30] sm:$0xf]
  %v882 = vld [vmem:[%s868 + $0x34] sm:$0xf]
  %v883 = vld [vmem:[%s868 + $0x38] sm:$0xf]
  %v884 = vld [vmem:[%s868 + $0x3c] sm:$0xf]
  %v885 = vld [vmem:[%s868 + $0x40] sm:$0xf]
  %v886 = vld [vmem:[%s868 + $0x44] sm:$0xf]
  %v887 = vld [vmem:[%s868 + $0x48] sm:$0xf]
  %v888 = vld [vmem:[%s868 + $0x4c] sm:$0xf]
  %v889 = vld [vmem:[%s868 + $0x50] sm:$0xf]
  %v890 = vld [vmem:[%s868 + $0x54] sm:$0xf]
  %v891 = vld [vmem:[%s868 + $0x58] sm:$0xf]
  %v892 = vld [vmem:[%s868 + $0x5c] sm:$0xf]
  %v893 = vld [vmem:[%s868 + $0x60] sm:$0xf]
  %v894 = vld [vmem:[%s868 + $0x64] sm:$0xf]
  %v895 = vld [vmem:[%s868 + $0x68] sm:$0xf]
  %v896 = vld [vmem:[%s868 + $0x6c] sm:$0xf]
  %v897 = vld [vmem:[%s868 + $0x70] sm:$0xf]
  %v898 = vld [vmem:[%s868 + $0x74] sm:$0xf]
  %v899 = vld [vmem:[%s868 + $0x78] sm:$0xf]
  %v900 = vld [vmem:[%s868 + $0x7c] sm:$0xf]
  %v901 = vld [vmem:[%s868 + $0x80] sm:$0xf]
  %v902 = vld [vmem:[%s868 + $0x84] sm:$0xf]
  %v903 = vld [vmem:[%s868 + $0x88] sm:$0xf]
  %v904 = vld [vmem:[%s868 + $0x8c] sm:$0xf]
  %v941 = vunpack.c.l.b16 %v869
  %v942 = vunpack.c.l.b16 %v870
  %v943 = vunpack.c.l.b16 %v871
  %v944 = vunpack.c.l.b16 %v872
  %v945 = vunpack.c.l.b16 %v873
  %v946 = vunpack.c.l.b16 %v874
  %v947 = vunpack.c.l.b16 %v875
  %v948 = vunpack.c.l.b16 %v876
  %v949 = vunpack.c.l.b16 %v877
  %v950 = vunpack.c.l.b16 %v878
  %v951 = vunpack.c.l.b16 %v879
  %v952 = vunpack.c.l.b16 %v880
  %v953 = vunpack.c.l.b16 %v881
  %v954 = vunpack.c.l.b16 %v882
  %v955 = vunpack.c.l.b16 %v883
  %v956 = vunpack.c.l.b16 %v884
  %v957 = vunpack.c.l.b16 %v885
  %v958 = vunpack.c.l.b16 %v886
  %v959 = vunpack.c.l.b16 %v887
  %v960 = vunpack.c.l.b16 %v888
  %v961 = vunpack.c.l.b16 %v889
  %v962 = vunpack.c.l.b16 %v890
  %v963 = vunpack.c.l.b16 %v891
  %v964 = vunpack.c.l.b16 %v892
  %v965 = vunpack.c.l.b16 %v893
  %v966 = vunpack.c.l.b16 %v894
  %v967 = vunpack.c.l.b16 %v895
  %v968 = vunpack.c.l.b16 %v896
  %v969 = vunpack.c.l.b16 %v897
  %v970 = vunpack.c.l.b16 %v898
  %v971 = vunpack.c.l.b16 %v899
  %v972 = vunpack.c.l.b16 %v900
  %v973 = vunpack.c.l.b16 %v901
  %v974 = vunpack.c.l.b16 %v902
  %v975 = vunpack.c.l.b16 %v903
  %v976 = vunpack.c.l.b16 %v904
  %v977 = vpack.c.b16 %v942, %v941
  %v978 = vpack.c.b16 %v944, %v943
  %v979 = vpack.c.b16 %v946, %v945
  %v980 = vpack.c.b16 %v948, %v947
  %v981 = vpack.c.b16 %v950, %v949
  %v982 = vpack.c.b16 %v952, %v951
  %v983 = vpack.c.b16 %v954, %v953
  %v984 = vpack.c.b16 %v956, %v955
  %v985 = vpack.c.b16 %v958, %v957
  %v986 = vpack.c.b16 %v960, %v959
  %v987 = vpack.c.b16 %v962, %v961
  %v988 = vpack.c.b16 %v964, %v963
  %v989 = vpack.c.b16 %v966, %v965
  %v990 = vpack.c.b16 %v968, %v967
  %v991 = vpack.c.b16 %v970, %v969
  %v992 = vpack.c.b16 %v972, %v971
  %v993 = vpack.c.b16 %v974, %v973
  %v994 = vpack.c.b16 %v976, %v975
  %v996 = vsel %vm163, %v977, 0
  %v999 = vsel %vm163, %v978, 0
  %v1002 = vsel %vm163, %v979, 0
  %v1005 = vsel %vm163, %v980, 0
  %v1008 = vsel %vm163, %v981, 0
  %v1011 = vsel %vm163, %v982, 0
  %v1014 = vsel %vm163, %v983, 0
  %v1017 = vsel %vm163, %v984, 0
  %v1020 = vsel %vm163, %v985, 0
  %v1023 = vsel %vm163, %v986, 0
  %v1026 = vsel %vm163, %v987, 0
  %v1029 = vsel %vm163, %v988, 0
  %v1032 = vsel %vm163, %v989, 0
  %v1035 = vsel %vm163, %v990, 0
  %v1038 = vsel %vm163, %v991, 0
  %v1041 = vsel %vm163, %v992, 0
  %v1044 = vsel %vm163, %v993, 0
  %v1047 = vsel %vm163, %v994, 0
  %1049 = vmatprep.subr.bf16.mxu0 0
  %1050 = vmatpush1.bf16.msra.mxu0 %v160
  %1051 = vmatprep.subr.bf16.mxu0 0
  %1052 = vmatpush1.bf16.msra.mxu0 %v223
  %1053 = vmatprep.subr.bf16.mxu0 0
  %1054 = vmatpush1.bf16.msra.mxu0 0
  %1055 = vmatprep.subr.bf16.mxu0 0
  %1056 = vmatpush1.bf16.msra.mxu0 0
  %1057 = vmatprep.subr.bf16.mxu0 0
  %1058 = vmatpush1.bf16.msra.mxu0 0
  %1059 = vmatprep.subr.bf16.mxu0 0
  %1060 = vmatpush1.bf16.msra.mxu0 0
  %1061 = vmatprep.subr.bf16.mxu0 0
  %1062 = vmatpush1.bf16.msra.mxu0 0
  %1063 = vmatprep.subr.bf16.mxu0 0
  %1064 = vmatpush1.bf16.msra.mxu0 0
  %1065 = vmatprep.subr.bf16.mxu0 0
  %1066 = vmatpush1.bf16.msra.mxu0 0
  %1067 = vmatprep.subr.bf16.mxu0 0
  %1068 = vmatpush1.bf16.msra.mxu0 0
  %1069 = vmatprep.subr.bf16.mxu0 0
  %1070 = vmatpush1.bf16.msra.mxu0 0
  %1071 = vmatprep.subr.bf16.mxu0 0
  %1072 = vmatpush1.bf16.msra.mxu0 0
  %1073 = vmatprep.subr.bf16.mxu0 0
  %1074 = vmatpush1.bf16.msra.mxu0 0
  %1075 = vmatprep.subr.bf16.mxu0 0
  %1076 = vmatpush1.bf16.msra.mxu0 0
  %1077 = vmatprep.subr.bf16.mxu0 0
  %1078 = vmatpush1.bf16.msra.mxu0 0
  %1079 = vmatprep.subr.bf16.mxu0 0
  %1080 = vmatpush1.bf16.msra.mxu0 0
  %1081 = vmatprep.mubr.bf16.mxu0 0
  %1082 = vmatmul.mubr.bf16.gmra.mrb[0].mxu0 %v996
  %v1083 = vpop.f32.mrb[0].mxu0
  %v1084 = vadd.f32 %v60, %v1083
  %v1085 = vpop.f32.mrb[0].mxu0
  %v1086 = vpop.f32.mrb[0].mxu0
  %v1087 = vadd.f32 %v60, %v1086
  %v1088 = vpop.f32.mrb[0].mxu0
  %1089 = vmatprep.mubr.bf16.mxu0 0
  %1090 = vmatmul.mubr.bf16.gmra.mrb[0].mxu0 %v999
  %v1091 = vpop.f32.mrb[0].mxu0
  %v1092 = vadd.f32 %v60, %v1091
  %v1093 = vpop.f32.mrb[0].mxu0
  %v1094 = vpop.f32.mrb[0].mxu0
  %v1095 = vadd.f32 %v60, %v1094
  %v1096 = vpop.f32.mrb[0].mxu0
  %1097 = vmatprep.mubr.bf16.mxu0 0
  %1098 = vmatmul.mubr.bf16.gmra.mrb[0].mxu0 %v1002
  %v1099 = vpop.f32.mrb[0].mxu0
  %v1100 = vadd.f32 %v60, %v1099
  %v1101 = vpop.f32.mrb[0].mxu0
  %v1102 = vpop.f32.mrb[0].mxu0
  %v1103 = vadd.f32 %v60, %v1102
  %v1104 = vpop.f32.mrb[0].mxu0
  %1105 = vmatprep.mubr.bf16.mxu0 0
  %1106 = vmatmul.mubr.bf16.gmra.mrb[0].mxu0 %v1005
  %v1107 = vpop.f32.mrb[0].mxu0
  %v1108 = vadd.f32 %v60, %v1107
  %v1109 = vpop.f32.mrb[0].mxu0
  %v1110 = vpop.f32.mrb[0].mxu0
  %v1111 = vadd.f32 %v60, %v1110
  %v1112 = vpop.f32.mrb[0].mxu0
  %1113 = vmatprep.mubr.bf16.mxu0 0
  %1114 = vmatmul.mubr.bf16.gmra.mrb[0].mxu0 %v1008
  %v1115 = vpop.f32.mrb[0].mxu0
  %v1116 = vadd.f32 %v60, %v1115
  %v1117 = vpop.f32.mrb[0].mxu0
  %v1118 = vpop.f32.mrb[0].mxu0
  %v1119 = vadd.f32 %v60, %v1118
  %v1120 = vpop.f32.mrb[0].mxu0
  %1121 = vmatprep.mubr.bf16.mxu0 0
  %1122 = vmatmul.mubr.bf16.gmra.mrb[0].mxu0 %v1011
  %v1123 = vpop.f32.mrb[0].mxu0
  %v1124 = vadd.f32 %v60, %v1123
  %v1125 = vpop.f32.mrb[0].mxu0
  %v1126 = vpop.f32.mrb[0].mxu0
  %v1127 = vadd.f32 %v60, %v1126
  %v1128 = vpop.f32.mrb[0].mxu0
  %1129 = vmatprep.mubr.bf16.mxu0 0
  %1130 = vmatmul.mubr.bf16.gmra.mrb[0].mxu0 %v1014
  %v1131 = vpop.f32.mrb[0].mxu0
  %v1132 = vadd.f32 %v60, %v1131
  %v1133 = vpop.f32.mrb[0].mxu0
  %v1134 = vpop.f32.mrb[0].mxu0
  %v1135 = vadd.f32 %v60, %v1134
  %v1136 = vpop.f32.mrb[0].mxu0
  %1137 = vmatprep.mubr.bf16.mxu0 0
  %1138 = vmatmul.mubr.bf16.gmra.mrb[0].mxu0 %v1017
  %v1139 = vpop.f32.mrb[0].mxu0
  %v1140 = vadd.f32 %v60, %v1139
  %v1141 = vpop.f32.mrb[0].mxu0
  %v1142 = vpop.f32.mrb[0].mxu0
  %v1143 = vadd.f32 %v60, %v1142
  %v1144 = vpop.f32.mrb[0].mxu0
  %1145 = vmatprep.mubr.bf16.mxu0 0
  %1146 = vmatmul.mubr.bf16.gmra.mrb[0].mxu0 %v1020
  %v1147 = vpop.f32.mrb[0].mxu0
  %v1148 = vadd.f32 %v60, %v1147
  %v1149 = vpop.f32.mrb[0].mxu0
  %v1150 = vpop.f32.mrb[0].mxu0
  %v1151 = vadd.f32 %v60, %v1150
  %v1152 = vpop.f32.mrb[0].mxu0
  %1153 = vmatprep.mubr.bf16.mxu0 0
  %1154 = vmatmul.mubr.bf16.gmra.mrb[0].mxu0 %v1023
  %v1155 = vpop.f32.mrb[0].mxu0
  %v1156 = vadd.f32 %v60, %v1155
  %v1157 = vpop.f32.mrb[0].mxu0
  %v1158 = vpop.f32.mrb[0].mxu0
  %v1159 = vadd.f32 %v60, %v1158
  %v1160 = vpop.f32.mrb[0].mxu0
  %1161 = vmatprep.mubr.bf16.mxu0 0
  %1162 = vmatmul.mubr.bf16.gmra.mrb[0].mxu0 %v1026
  %v1163 = vpop.f32.mrb[0].mxu0
  %v1164 = vadd.f32 %v60, %v1163
  %v1165 = vpop.f32.mrb[0].mxu0
  %v1166 = vpop.f32.mrb[0].mxu0
  %v1167 = vadd.f32 %v60, %v1166
  %v1168 = vpop.f32.mrb[0].mxu0
  %1169 = vmatprep.mubr.bf16.mxu0 0
  %1170 = vmatmul.mubr.bf16.gmra.mrb[0].mxu0 %v1029
  %v1171 = vpop.f32.mrb[0].mxu0
  %v1172 = vadd.f32 %v60, %v1171
  %v1173 = vpop.f32.mrb[0].mxu0
  %v1174 = vpop.f32.mrb[0].mxu0
  %v1175 = vadd.f32 %v60, %v1174
  %v1176 = vpop.f32.mrb[0].mxu0
  %1177 = vmatprep.mubr.bf16.mxu0 0
  %1178 = vmatmul.mubr.bf16.gmra.mrb[0].mxu0 %v1032
  %v1179 = vpop.f32.mrb[0].mxu0
  %v1180 = vadd.f32 %v60, %v1179
  %v1181 = vpop.f32.mrb[0].mxu0
  %v1182 = vpop.f32.mrb[0].mxu0
  %v1183 = vadd.f32 %v60, %v1182
  %v1184 = vpop.f32.mrb[0].mxu0
  %1185 = vmatprep.mubr.bf16.mxu0 0
  %1186 = vmatmul.mubr.bf16.gmra.mrb[0].mxu0 %v1035
  %v1187 = vpop.f32.mrb[0].mxu0
  %v1188 = vadd.f32 %v60, %v1187
  %v1189 = vpop.f32.mrb[0].mxu0
  %v1190 = vpop.f32.mrb[0].mxu0
  %v1191 = vadd.f32 %v60, %v1190
  %v1192 = vpop.f32.mrb[0].mxu0
  %1193 = vmatprep.mubr.bf16.mxu0 0
  %1194 = vmatmul.mubr.bf16.gmra.mrb[0].mxu0 %v1038
  %v1195 = vpop.f32.mrb[0].mxu0
  %v1196 = vadd.f32 %v60, %v1195
  %v1197 = vpop.f32.mrb[0].mxu0
  %v1198 = vpop.f32.mrb[0].mxu0
  %v1199 = vadd.f32 %v60, %v1198
  %v1200 = vpop.f32.mrb[0].mxu0
  %1201 = vmatprep.mubr.bf16.mxu0 0
  %1202 = vmatmul.mubr.bf16.gmra.mrb[0].mxu0 %v1041
  %v1203 = vpop.f32.mrb[0].mxu0
  %v1204 = vadd.f32 %v60, %v1203
  %v1205 = vpop.f32.mrb[0].mxu0
  %v1206 = vpop.f32.mrb[0].mxu0
  %v1207 = vadd.f32 %v60, %v1206
  %v1208 = vpop.f32.mrb[0].mxu0
  %1209 = vmatprep.mubr.bf16.mxu0 0
  %1210 = vmatmul.mubr.bf16.gmra.mrb[0].mxu0 %v1044
  %v1211 = vpop.f32.mrb[0].mxu0
  %v1212 = vadd.f32 %v60, %v1211
  %v1213 = vpop.f32.mrb[0].mxu0
  %v1214 = vpop.f32.mrb[0].mxu0
  %v1215 = vadd.f32 %v60, %v1214
  %v1216 = vpop.f32.mrb[0].mxu0
  %1217 = vmatprep.mubr.bf16.mxu0 0
  %1218 = vmatmul.mubr.bf16.gmra.mrb[0].mxu0 %v1047
  %v1219 = vpop.f32.mrb[0].mxu0
  %v1220 = vadd.f32 %v60, %v1219
  %v1221 = vpop.f32.mrb[0].mxu0
  %v1222 = vpop.f32.mrb[0].mxu0
  %v1223 = vadd.f32 %v60, %v1222
  %v1224 = vpop.f32.mrb[0].mxu0
  %1225 = vdwg.mxu0
  %v1226 = vmax.f32 %v1084, 0.0
  %v1227 = vmax.f32 %v1087, 0.0
  %v1228 = vmax.f32 %v1092, 0.0
  %v1229 = vmax.f32 %v1095, 0.0
  %v1230 = vmax.f32 %v1100, 0.0
  %v1231 = vmax.f32 %v1103, 0.0
  %v1232 = vmax.f32 %v1108, 0.0
  %v1233 = vmax.f32 %v1111, 0.0
  %v1234 = vmax.f32 %v1116, 0.0
  %v1235 = vmax.f32 %v1119, 0.0
  %v1236 = vmax.f32 %v1124, 0.0
  %v1237 = vmax.f32 %v1127, 0.0
  %v1238 = vmax.f32 %v1132, 0.0
  %v1239 = vmax.f32 %v1135, 0.0
  %v1240 = vmax.f32 %v1140, 0.0
  %v1241 = vmax.f32 %v1143, 0.0
  %v1242 = vmax.f32 %v1148, 0.0
  %v1243 = vmax.f32 %v1151, 0.0
  %v1244 = vmax.f32 %v1156, 0.0
  %v1245 = vmax.f32 %v1159, 0.0
  %v1246 = vmax.f32 %v1164, 0.0
  %v1247 = vmax.f32 %v1167, 0.0
  %v1248 = vmax.f32 %v1172, 0.0
  %v1249 = vmax.f32 %v1175, 0.0
  %v1250 = vmax.f32 %v1180, 0.0
  %v1251 = vmax.f32 %v1183, 0.0
  %v1252 = vmax.f32 %v1188, 0.0
  %v1253 = vmax.f32 %v1191, 0.0
  %v1254 = vmax.f32 %v1196, 0.0
  %v1255 = vmax.f32 %v1199, 0.0
  %v1256 = vmax.f32 %v1204, 0.0
  %v1257 = vmax.f32 %v1207, 0.0
  %v1258 = vmax.f32 %v1212, 0.0
  %v1259 = vmax.f32 %v1215, 0.0
  %v1260 = vmax.f32 %v1220, 0.0
  %v1261 = vmax.f32 %v1223, 0.0
  %v1262 = vmax.f32 %v832, %v1226
  %v1263 = vmax.f32 %v833, %v1227
  %v1264 = vmax.f32 %v834, %v1228
  %v1265 = vmax.f32 %v835, %v1229
  %v1266 = vmax.f32 %v836, %v1230
  %v1267 = vmax.f32 %v837, %v1231
  %v1268 = vmax.f32 %v838, %v1232
  %v1269 = vmax.f32 %v839, %v1233
  %v1270 = vmax.f32 %v840, %v1234
  %v1271 = vmax.f32 %v841, %v1235
  %v1272 = vmax.f32 %v842, %v1236
  %v1273 = vmax.f32 %v843, %v1237
  %v1274 = vmax.f32 %v844, %v1238
  %v1275 = vmax.f32 %v845, %v1239
  %v1276 = vmax.f32 %v846, %v1240
  %v1277 = vmax.f32 %v847, %v1241
  %v1278 = vmax.f32 %v848, %v1242
  %v1279 = vmax.f32 %v849, %v1243
  %v1280 = vmax.f32 %v850, %v1244
  %v1281 = vmax.f32 %v851, %v1245
  %v1282 = vmax.f32 %v852, %v1246
  %v1283 = vmax.f32 %v853, %v1247
  %v1284 = vmax.f32 %v854, %v1248
  %v1285 = vmax.f32 %v855, %v1249
  %v1286 = vmax.f32 %v856, %v1250
  %v1287 = vmax.f32 %v857, %v1251
  %v1288 = vmax.f32 %v858, %v1252
  %v1289 = vmax.f32 %v859, %v1253
  %v1290 = vmax.f32 %v860, %v1254
  %v1291 = vmax.f32 %v861, %v1255
  %v1292 = vmax.f32 %v862, %v1256
  %v1293 = vmax.f32 %v863, %v1257
  %v1294 = vmax.f32 %v864, %v1258
  %v1295 = vmax.f32 %v865, %v1259
  %v1296 = vmax.f32 %v866, %v1260
  %v1297 = vmax.f32 %v867, %v1261
  %s1298 = scalar_lea.vmem %s0, 432
  %v1299 = vld [vmem:[%s1298] sm:$0xf]
  %v1300 = vld [vmem:[%s1298 + $0x4] sm:$0xf]
  %v1301 = vld [vmem:[%s1298 + $0x8] sm:$0xf]
  %v1302 = vld [vmem:[%s1298 + $0xc] sm:$0xf]
  %v1303 = vld [vmem:[%s1298 + $0x10] sm:$0xf]
  %v1304 = vld [vmem:[%s1298 + $0x14] sm:$0xf]
  %v1305 = vld [vmem:[%s1298 + $0x18] sm:$0xf]
  %v1306 = vld [vmem:[%s1298 + $0x1c] sm:$0xf]
  %v1307 = vld [vmem:[%s1298 + $0x20] sm:$0xf]
  %v1308 = vld [vmem:[%s1298 + $0x24] sm:$0xf]
  %v1309 = vld [vmem:[%s1298 + $0x28] sm:$0xf]
  %v1310 = vld [vmem:[%s1298 + $0x2c] sm:$0xf]
  %v1311 = vld [vmem:[%s1298 + $0x30] sm:$0xf]
  %v1312 = vld [vmem:[%s1298 + $0x34] sm:$0xf]
  %v1313 = vld [vmem:[%s1298 + $0x38] sm:$0xf]
  %v1314 = vld [vmem:[%s1298 + $0x3c] sm:$0xf]
  %v1315 = vld [vmem:[%s1298 + $0x40] sm:$0xf]
  %v1316 = vld [vmem:[%s1298 + $0x44] sm:$0xf]
  %v1317 = vld [vmem:[%s1298 + $0x48] sm:$0xf]
  %v1318 = vld [vmem:[%s1298 + $0x4c] sm:$0xf]
  %v1319 = vld [vmem:[%s1298 + $0x50] sm:$0xf]
  %v1320 = vld [vmem:[%s1298 + $0x54] sm:$0xf]
  %v1321 = vld [vmem:[%s1298 + $0x58] sm:$0xf]
  %v1322 = vld [vmem:[%s1298 + $0x5c] sm:$0xf]
  %v1323 = vld [vmem:[%s1298 + $0x60] sm:$0xf]
  %v1324 = vld [vmem:[%s1298 + $0x64] sm:$0xf]
  %v1325 = vld [vmem:[%s1298 + $0x68] sm:$0xf]
  %v1326 = vld [vmem:[%s1298 + $0x6c] sm:$0xf]
  %v1327 = vld [vmem:[%s1298 + $0x70] sm:$0xf]
  %v1328 = vld [vmem:[%s1298 + $0x74] sm:$0xf]
  %v1329 = vld [vmem:[%s1298 + $0x78] sm:$0xf]
  %v1330 = vld [vmem:[%s1298 + $0x7c] sm:$0xf]
  %v1331 = vld [vmem:[%s1298 + $0x80] sm:$0xf]
  %v1332 = vld [vmem:[%s1298 + $0x84] sm:$0xf]
  %v1333 = vld [vmem:[%s1298 + $0x88] sm:$0xf]
  %v1334 = vld [vmem:[%s1298 + $0x8c] sm:$0xf]
  %v1371 = vunpack.c.l.b16 %v1299
  %v1372 = vunpack.c.l.b16 %v1300
  %v1373 = vunpack.c.l.b16 %v1301
  %v1374 = vunpack.c.l.b16 %v1302
  %v1375 = vunpack.c.l.b16 %v1303
  %v1376 = vunpack.c.l.b16 %v1304
  %v1377 = vunpack.c.l.b16 %v1305
  %v1378 = vunpack.c.l.b16 %v1306
  %v1379 = vunpack.c.l.b16 %v1307
  %v1380 = vunpack.c.l.b16 %v1308
  %v1381 = vunpack.c.l.b16 %v1309
  %v1382 = vunpack.c.l.b16 %v1310
  %v1383 = vunpack.c.l.b16 %v1311
  %v1384 = vunpack.c.l.b16 %v1312
  %v1385 = vunpack.c.l.b16 %v1313
  %v1386 = vunpack.c.l.b16 %v1314
  %v1387 = vunpack.c.l.b16 %v1315
  %v1388 = vunpack.c.l.b16 %v1316
  %v1389 = vunpack.c.l.b16 %v1317
  %v1390 = vunpack.c.l.b16 %v1318
  %v1391 = vunpack.c.l.b16 %v1319
  %v1392 = vunpack.c.l.b16 %v1320
  %v1393 = vunpack.c.l.b16 %v1321
  %v1394 = vunpack.c.l.b16 %v1322
  %v1395 = vunpack.c.l.b16 %v1323
  %v1396 = vunpack.c.l.b16 %v1324
  %v1397 = vunpack.c.l.b16 %v1325
  %v1398 = vunpack.c.l.b16 %v1326
  %v1399 = vunpack.c.l.b16 %v1327
  %v1400 = vunpack.c.l.b16 %v1328
  %v1401 = vunpack.c.l.b16 %v1329
  %v1402 = vunpack.c.l.b16 %v1330
  %v1403 = vunpack.c.l.b16 %v1331
  %v1404 = vunpack.c.l.b16 %v1332
  %v1405 = vunpack.c.l.b16 %v1333
  %v1406 = vunpack.c.l.b16 %v1334
  %v1407 = vpack.c.b16 %v1372, %v1371
  %v1408 = vpack.c.b16 %v1374, %v1373
  %v1409 = vpack.c.b16 %v1376, %v1375
  %v1410 = vpack.c.b16 %v1378, %v1377
  %v1411 = vpack.c.b16 %v1380, %v1379
  %v1412 = vpack.c.b16 %v1382, %v1381
  %v1413 = vpack.c.b16 %v1384, %v1383
  %v1414 = vpack.c.b16 %v1386, %v1385
  %v1415 = vpack.c.b16 %v1388, %v1387
  %v1416 = vpack.c.b16 %v1390, %v1389
  %v1417 = vpack.c.b16 %v1392, %v1391
  %v1418 = vpack.c.b16 %v1394, %v1393
  %v1419 = vpack.c.b16 %v1396, %v1395
  %v1420 = vpack.c.b16 %v1398, %v1397
  %v1421 = vpack.c.b16 %v1400, %v1399
  %v1422 = vpack.c.b16 %v1402, %v1401
  %v1423 = vpack.c.b16 %v1404, %v1403
  %v1424 = vpack.c.b16 %v1406, %v1405
  %v1426 = vsel %vm163, %v1407, 0
  %v1429 = vsel %vm163, %v1408, 0
  %v1432 = vsel %vm163, %v1409, 0
  %v1435 = vsel %vm163, %v1410, 0
  %v1438 = vsel %vm163, %v1411, 0
  %v1441 = vsel %vm163, %v1412, 0
  %v1444 = vsel %vm163, %v1413, 0
  %v1447 = vsel %vm163, %v1414, 0
  %v1450 = vsel %vm163, %v1415, 0
  %v1453 = vsel %vm163, %v1416, 0
  %v1456 = vsel %vm163, %v1417, 0
  %v1459 = vsel %vm163, %v1418, 0
  %v1462 = vsel %vm163, %v1419, 0
  %v1465 = vsel %vm163, %v1420, 0
  %v1468 = vsel %vm163, %v1421, 0
  %v1471 = vsel %vm163, %v1422, 0
  %v1474 = vsel %vm163, %v1423, 0
  %v1477 = vsel %vm163, %v1424, 0
  %1479 = vmatprep.subr.bf16.mxu0 0
  %1480 = vmatpush1.bf16.msra.mxu0 %v160
  %1481 = vmatprep.subr.bf16.mxu0 0
  %1482 = vmatpush1.bf16.msra.mxu0 %v223
  %1483 = vmatprep.subr.bf16.mxu0 0
  %1484 = vmatpush1.bf16.msra.mxu0 0
  %1485 = vmatprep.subr.bf16.mxu0 0
  %1486 = vmatpush1.bf16.msra.mxu0 0
  %1487 = vmatprep.subr.bf16.mxu0 0
  %1488 = vmatpush1.bf16.msra.mxu0 0
  %1489 = vmatprep.subr.bf16.mxu0 0
  %1490 = vmatpush1.bf16.msra.mxu0 0
  %1491 = vmatprep.subr.bf16.mxu0 0
  %1492 = vmatpush1.bf16.msra.mxu0 0
  %1493 = vmatprep.subr.bf16.mxu0 0
  %1494 = vmatpush1.bf16.msra.mxu0 0
  %1495 = vmatprep.subr.bf16.mxu0 0
  %1496 = vmatpush1.bf16.msra.mxu0 0
  %1497 = vmatprep.subr.bf16.mxu0 0
  %1498 = vmatpush1.bf16.msra.mxu0 0
  %1499 = vmatprep.subr.bf16.mxu0 0
  %1500 = vmatpush1.bf16.msra.mxu0 0
  %1501 = vmatprep.subr.bf16.mxu0 0
  %1502 = vmatpush1.bf16.msra.mxu0 0
  %1503 = vmatprep.subr.bf16.mxu0 0
  %1504 = vmatpush1.bf16.msra.mxu0 0
  %1505 = vmatprep.subr.bf16.mxu0 0
  %1506 = vmatpush1.bf16.msra.mxu0 0
  %1507 = vmatprep.subr.bf16.mxu0 0
  %1508 = vmatpush1.bf16.msra.mxu0 0
  %1509 = vmatprep.subr.bf16.mxu0 0
  %1510 = vmatpush1.bf16.msra.mxu0 0
  %1511 = vmatprep.mubr.bf16.mxu0 0
  %1512 = vmatmul.mubr.bf16.gmra.mrb[0].mxu0 %v1426
  %v1513 = vpop.f32.mrb[0].mxu0
  %v1514 = vadd.f32 %v60, %v1513
  %v1515 = vpop.f32.mrb[0].mxu0
  %v1516 = vpop.f32.mrb[0].mxu0
  %v1517 = vadd.f32 %v60, %v1516
  %v1518 = vpop.f32.mrb[0].mxu0
  %1519 = vmatprep.mubr.bf16.mxu0 0
  %1520 = vmatmul.mubr.bf16.gmra.mrb[0].mxu0 %v1429
  %v1521 = vpop.f32.mrb[0].mxu0
  %v1522 = vadd.f32 %v60, %v1521
  %v1523 = vpop.f32.mrb[0].mxu0
  %v1524 = vpop.f32.mrb[0].mxu0
  %v1525 = vadd.f32 %v60, %v1524
  %v1526 = vpop.f32.mrb[0].mxu0
  %1527 = vmatprep.mubr.bf16.mxu0 0
  %1528 = vmatmul.mubr.bf16.gmra.mrb[0].mxu0 %v1432
  %v1529 = vpop.f32.mrb[0].mxu0
  %v1530 = vadd.f32 %v60, %v1529
  %v1531 = vpop.f32.mrb[0].mxu0
  %v1532 = vpop.f32.mrb[0].mxu0
  %v1533 = vadd.f32 %v60, %v1532
  %v1534 = vpop.f32.mrb[0].mxu0
  %1535 = vmatprep.mubr.bf16.mxu0 0
  %1536 = vmatmul.mubr.bf16.gmra.mrb[0].mxu0 %v1435
  %v1537 = vpop.f32.mrb[0].mxu0
  %v1538 = vadd.f32 %v60, %v1537
  %v1539 = vpop.f32.mrb[0].mxu0
  %v1540 = vpop.f32.mrb[0].mxu0
  %v1541 = vadd.f32 %v60, %v1540
  %v1542 = vpop.f32.mrb[0].mxu0
  %1543 = vmatprep.mubr.bf16.mxu0 0
  %1544 = vmatmul.mubr.bf16.gmra.mrb[0].mxu0 %v1438
  %v1545 = vpop.f32.mrb[0].mxu0
  %v1546 = vadd.f32 %v60, %v1545
  %v1547 = vpop.f32.mrb[0].mxu0
  %v1548 = vpop.f32.mrb[0].mxu0
  %v1549 = vadd.f32 %v60, %v1548
  %v1550 = vpop.f32.mrb[0].mxu0
  %1551 = vmatprep.mubr.bf16.mxu0 0
  %1552 = vmatmul.mubr.bf16.gmra.mrb[0].mxu0 %v1441
  %v1553 = vpop.f32.mrb[0].mxu0
  %v1554 = vadd.f32 %v60, %v1553
  %v1555 = vpop.f32.mrb[0].mxu0
  %v1556 = vpop.f32.mrb[0].mxu0
  %v1557 = vadd.f32 %v60, %v1556
  %v1558 = vpop.f32.mrb[0].mxu0
  %1559 = vmatprep.mubr.bf16.mxu0 0
  %1560 = vmatmul.mubr.bf16.gmra.mrb[0].mxu0 %v1444
  %v1561 = vpop.f32.mrb[0].mxu0
  %v1562 = vadd.f32 %v60, %v1561
  %v1563 = vpop.f32.mrb[0].mxu0
  %v1564 = vpop.f32.mrb[0].mxu0
  %v1565 = vadd.f32 %v60, %v1564
  %v1566 = vpop.f32.mrb[0].mxu0
  %1567 = vmatprep.mubr.bf16.mxu0 0
  %1568 = vmatmul.mubr.bf16.gmra.mrb[0].mxu0 %v1447
  %v1569 = vpop.f32.mrb[0].mxu0
  %v1570 = vadd.f32 %v60, %v1569
  %v1571 = vpop.f32.mrb[0].mxu0
  %v1572 = vpop.f32.mrb[0].mxu0
  %v1573 = vadd.f32 %v60, %v1572
  %v1574 = vpop.f32.mrb[0].mxu0
  %1575 = vmatprep.mubr.bf16.mxu0 0
  %1576 = vmatmul.mubr.bf16.gmra.mrb[0].mxu0 %v1450
  %v1577 = vpop.f32.mrb[0].mxu0
  %v1578 = vadd.f32 %v60, %v1577
  %v1579 = vpop.f32.mrb[0].mxu0
  %v1580 = vpop.f32.mrb[0].mxu0
  %v1581 = vadd.f32 %v60, %v1580
  %v1582 = vpop.f32.mrb[0].mxu0
  %1583 = vmatprep.mubr.bf16.mxu0 0
  %1584 = vmatmul.mubr.bf16.gmra.mrb[0].mxu0 %v1453
  %v1585 = vpop.f32.mrb[0].mxu0
  %v1586 = vadd.f32 %v60, %v1585
  %v1587 = vpop.f32.mrb[0].mxu0
  %v1588 = vpop.f32.mrb[0].mxu0
  %v1589 = vadd.f32 %v60, %v1588
  %v1590 = vpop.f32.mrb[0].mxu0
  %1591 = vmatprep.mubr.bf16.mxu0 0
  %1592 = vmatmul.mubr.bf16.gmra.mrb[0].mxu0 %v1456
  %v1593 = vpop.f32.mrb[0].mxu0
  %v1594 = vadd.f32 %v60, %v1593
  %v1595 = vpop.f32.mrb[0].mxu0
  %v1596 = vpop.f32.mrb[0].mxu0
  %v1597 = vadd.f32 %v60, %v1596
  %v1598 = vpop.f32.mrb[0].mxu0
  %1599 = vmatprep.mubr.bf16.mxu0 0
  %1600 = vmatmul.mubr.bf16.gmra.mrb[0].mxu0 %v1459
  %v1601 = vpop.f32.mrb[0].mxu0
  %v1602 = vadd.f32 %v60, %v1601
  %v1603 = vpop.f32.mrb[0].mxu0
  %v1604 = vpop.f32.mrb[0].mxu0
  %v1605 = vadd.f32 %v60, %v1604
  %v1606 = vpop.f32.mrb[0].mxu0
  %1607 = vmatprep.mubr.bf16.mxu0 0
  %1608 = vmatmul.mubr.bf16.gmra.mrb[0].mxu0 %v1462
  %v1609 = vpop.f32.mrb[0].mxu0
  %v1610 = vadd.f32 %v60, %v1609
  %v1611 = vpop.f32.mrb[0].mxu0
  %v1612 = vpop.f32.mrb[0].mxu0
  %v1613 = vadd.f32 %v60, %v1612
  %v1614 = vpop.f32.mrb[0].mxu0
  %1615 = vmatprep.mubr.bf16.mxu0 0
  %1616 = vmatmul.mubr.bf16.gmra.mrb[0].mxu0 %v1465
  %v1617 = vpop.f32.mrb[0].mxu0
  %v1618 = vadd.f32 %v60, %v1617
  %v1619 = vpop.f32.mrb[0].mxu0
  %v1620 = vpop.f32.mrb[0].mxu0
  %v1621 = vadd.f32 %v60, %v1620
  %v1622 = vpop.f32.mrb[0].mxu0
  %1623 = vmatprep.mubr.bf16.mxu0 0
  %1624 = vmatmul.mubr.bf16.gmra.mrb[0].mxu0 %v1468
  %v1625 = vpop.f32.mrb[0].mxu0
  %v1626 = vadd.f32 %v60, %v1625
  %v1627 = vpop.f32.mrb[0].mxu0
  %v1628 = vpop.f32.mrb[0].mxu0
  %v1629 = vadd.f32 %v60, %v1628
  %v1630 = vpop.f32.mrb[0].mxu0
  %1631 = vmatprep.mubr.bf16.mxu0 0
  %1632 = vmatmul.mubr.bf16.gmra.mrb[0].mxu0 %v1471
  %v1633 = vpop.f32.mrb[0].mxu0
  %v1634 = vadd.f32 %v60, %v1633
  %v1635 = vpop.f32.mrb[0].mxu0
  %v1636 = vpop.f32.mrb[0].mxu0
  %v1637 = vadd.f32 %v60, %v1636
  %v1638 = vpop.f32.mrb[0].mxu0
  %1639 = vmatprep.mubr.bf16.mxu0 0
  %1640 = vmatmul.mubr.bf16.gmra.mrb[0].mxu0 %v1474
  %v1641 = vpop.f32.mrb[0].mxu0
  %v1642 = vadd.f32 %v60, %v1641
  %v1643 = vpop.f32.mrb[0].mxu0
  %v1644 = vpop.f32.mrb[0].mxu0
  %v1645 = vadd.f32 %v60, %v1644
  %v1646 = vpop.f32.mrb[0].mxu0
  %1647 = vmatprep.mubr.bf16.mxu0 0
  %1648 = vmatmul.mubr.bf16.gmra.mrb[0].mxu0 %v1477
  %v1649 = vpop.f32.mrb[0].mxu0
  %v1650 = vadd.f32 %v60, %v1649
  %v1651 = vpop.f32.mrb[0].mxu0
  %v1652 = vpop.f32.mrb[0].mxu0
  %v1653 = vadd.f32 %v60, %v1652
  %v1654 = vpop.f32.mrb[0].mxu0
  %1655 = vdwg.mxu0
  %v1656 = vmax.f32 %v1514, 0.0
  %v1657 = vmax.f32 %v1517, 0.0
  %v1658 = vmax.f32 %v1522, 0.0
  %v1659 = vmax.f32 %v1525, 0.0
  %v1660 = vmax.f32 %v1530, 0.0
  %v1661 = vmax.f32 %v1533, 0.0
  %v1662 = vmax.f32 %v1538, 0.0
  %v1663 = vmax.f32 %v1541, 0.0
  %v1664 = vmax.f32 %v1546, 0.0
  %v1665 = vmax.f32 %v1549, 0.0
  %v1666 = vmax.f32 %v1554, 0.0
  %v1667 = vmax.f32 %v1557, 0.0
  %v1668 = vmax.f32 %v1562, 0.0
  %v1669 = vmax.f32 %v1565, 0.0
  %v1670 = vmax.f32 %v1570, 0.0
  %v1671 = vmax.f32 %v1573, 0.0
  %v1672 = vmax.f32 %v1578, 0.0
  %v1673 = vmax.f32 %v1581, 0.0
  %v1674 = vmax.f32 %v1586, 0.0
  %v1675 = vmax.f32 %v1589, 0.0
  %v1676 = vmax.f32 %v1594, 0.0
  %v1677 = vmax.f32 %v1597, 0.0
  %v1678 = vmax.f32 %v1602, 0.0
  %v1679 = vmax.f32 %v1605, 0.0
  %v1680 = vmax.f32 %v1610, 0.0
  %v1681 = vmax.f32 %v1613, 0.0
  %v1682 = vmax.f32 %v1618, 0.0
  %v1683 = vmax.f32 %v1621, 0.0
  %v1684 = vmax.f32 %v1626, 0.0
  %v1685 = vmax.f32 %v1629, 0.0
  %v1686 = vmax.f32 %v1634, 0.0
  %v1687 = vmax.f32 %v1637, 0.0
  %v1688 = vmax.f32 %v1642, 0.0
  %v1689 = vmax.f32 %v1645, 0.0
  %v1690 = vmax.f32 %v1650, 0.0
  %v1691 = vmax.f32 %v1653, 0.0
  %v1692 = vmax.f32 %v1262, %v1656
  %v1693 = vmax.f32 %v1263, %v1657
  %v1694 = vmax.f32 %v1264, %v1658
  %v1695 = vmax.f32 %v1265, %v1659
  %v1696 = vmax.f32 %v1266, %v1660
  %v1697 = vmax.f32 %v1267, %v1661
  %v1698 = vmax.f32 %v1268, %v1662
  %v1699 = vmax.f32 %v1269, %v1663
  %v1700 = vmax.f32 %v1270, %v1664
  %v1701 = vmax.f32 %v1271, %v1665
  %v1702 = vmax.f32 %v1272, %v1666
  %v1703 = vmax.f32 %v1273, %v1667
  %v1704 = vmax.f32 %v1274, %v1668
  %v1705 = vmax.f32 %v1275, %v1669
  %v1706 = vmax.f32 %v1276, %v1670
  %v1707 = vmax.f32 %v1277, %v1671
  %v1708 = vmax.f32 %v1278, %v1672
  %v1709 = vmax.f32 %v1279, %v1673
  %v1710 = vmax.f32 %v1280, %v1674
  %v1711 = vmax.f32 %v1281, %v1675
  %v1712 = vmax.f32 %v1282, %v1676
  %v1713 = vmax.f32 %v1283, %v1677
  %v1714 = vmax.f32 %v1284, %v1678
  %v1715 = vmax.f32 %v1285, %v1679
  %v1716 = vmax.f32 %v1286, %v1680
  %v1717 = vmax.f32 %v1287, %v1681
  %v1718 = vmax.f32 %v1288, %v1682
  %v1719 = vmax.f32 %v1289, %v1683
  %v1720 = vmax.f32 %v1290, %v1684
  %v1721 = vmax.f32 %v1291, %v1685
  %v1722 = vmax.f32 %v1292, %v1686
  %v1723 = vmax.f32 %v1293, %v1687
  %v1724 = vmax.f32 %v1294, %v1688
  %v1725 = vmax.f32 %v1295, %v1689
  %v1726 = vmax.f32 %v1296, %v1690
  %v1727 = vmax.f32 %v1297, %v1691
  %1728 = vst [vmem:[%s3] sm:$0xff] %v1692
  %1729 = vst [vmem:[%s3 + $0x8] sm:$0xff] %v1693
  %1730 = vst [vmem:[%s3 + $0x10] sm:$0xff] %v1694
  %1731 = vst [vmem:[%s3 + $0x18] sm:$0xff] %v1695
  %1732 = vst [vmem:[%s3 + $0x20] sm:$0xff] %v1696
  %1733 = vst [vmem:[%s3 + $0x28] sm:$0xff] %v1697
  %1734 = vst [vmem:[%s3 + $0x30] sm:$0xff] %v1698
  %1735 = vst [vmem:[%s3 + $0x38] sm:$0xff] %v1699
  %1736 = vst [vmem:[%s3 + $0x40] sm:$0xff] %v1700
  %1737 = vst [vmem:[%s3 + $0x48] sm:$0xff] %v1701
  %1738 = vst [vmem:[%s3 + $0x50] sm:$0xff] %v1702
  %1739 = vst [vmem:[%s3 + $0x58] sm:$0xff] %v1703
  %1740 = vst [vmem:[%s3 + $0x60] sm:$0xff] %v1704
  %1741 = vst [vmem:[%s3 + $0x68] sm:$0xff] %v1705
  %1742 = vst [vmem:[%s3 + $0x70] sm:$0xff] %v1706
  %1743 = vst [vmem:[%s3 + $0x78] sm:$0xff] %v1707
  %1744 = vst [vmem:[%s3 + $0x80] sm:$0xff] %v1708
  %1745 = vst [vmem:[%s3 + $0x88] sm:$0xff] %v1709
  %1746 = vst [vmem:[%s3 + $0x90] sm:$0xff] %v1710
  %1747 = vst [vmem:[%s3 + $0x98] sm:$0xff] %v1711
  %1748 = vst [vmem:[%s3 + $0xa0] sm:$0xff] %v1712
  %1749 = vst [vmem:[%s3 + $0xa8] sm:$0xff] %v1713
  %1750 = vst [vmem:[%s3 + $0xb0] sm:$0xff] %v1714
  %1751 = vst [vmem:[%s3 + $0xb8] sm:$0xff] %v1715
  %1752 = vst [vmem:[%s3 + $0xc0] sm:$0xff] %v1716
  %1753 = vst [vmem:[%s3 + $0xc8] sm:$0xff] %v1717
  %1754 = vst [vmem:[%s3 + $0xd0] sm:$0xff] %v1718
  %1755 = vst [vmem:[%s3 + $0xd8] sm:$0xff] %v1719
  %1756 = vst [vmem:[%s3 + $0xe0] sm:$0xff] %v1720
  %1757 = vst [vmem:[%s3 + $0xe8] sm:$0xff] %v1721
  %1758 = vst [vmem:[%s3 + $0xf0] sm:$0xff] %v1722
  %1759 = vst [vmem:[%s3 + $0xf8] sm:$0xff] %v1723
  %1760 = vst [vmem:[%s3 + $0x100] sm:$0xff] %v1724
  %1761 = vst [vmem:[%s3 + $0x108] sm:$0xff] %v1725
  %1762 = vst [vmem:[%s3 + $0x110] sm:$0xff] %v1726
  %1763 = vst [vmem:[%s3 + $0x118] sm:$0xff] %v1727
  // Predicated region
  $region14: #{lenet_forward.3} parent=0 // pred_check
    _
  $region15: #{lenet_forward.3} parent=0 // pred_check_branch
    %1765 = sbr.rel (0) target = $region17
  $region16: #{lenet_forward.3} parent=0 // pred_region
    _
  $region17: #{lenet_forward.3} parent=0 // pred_fallthru
    _
  // Predicated region
  $region18: #{lenet_forward.3} parent=0 // pred_check
    _
  $region19: #{lenet_forward.3} parent=0 // pred_check_branch
    %1767 = sbr.rel (0) target = $region21
  $region20: #{lenet_forward.3} parent=0 // pred_region
    _
  $region21: #{lenet_forward.3} parent=0 // pred_fallthru
    _

// kernel: lenet_forward.4
$region0: #{lenet_forward.4}
  #allocation0 [shape = 'u32[]', space=smem, size = 0x4, offset = 0x4, fixed_abs, tag = 'smem constant byte address 0x4 - core index']
  #allocation1 [shape = 'u32[144,128]{1,0:T(1,128)}', space=vmem, size = 0x12000, scoped, tag = 'internal scratch']
  %s0 = inlined_call_operand.vmem [shape: bf16[4,2,16,512], index: 0, kind: input, shape index: {}]
  %s1 = inlined_call_operand.vmem [shape: bf16[512,128], index: 1, kind: input, shape index: {}]
  %s2 = inlined_call_operand.vmem [shape: f32[1,128], index: 2, kind: input, shape index: {}]
  %s3 = inlined_call_operand.vmem [shape: f32[2,16,128], index: 3, kind: output, shape index: {}]
  %s4 = sld [smem:[#allocation0]]
  $region22: #{lenet_forward.4} parent=0
    _
  %s6 = ssub.s32 1, %s4
  %s7 = scalar_select 0, %s6, %s4
  // Predicated region
  $region2: #{lenet_forward.4} parent=0 // pred_check
    _
  $region3: #{lenet_forward.4} parent=0 // pred_check_branch
    %9 = sbr.rel (0) target = $region5
  $region4: #{lenet_forward.4} parent=0 // pred_region
    _
  $region5: #{lenet_forward.4} parent=0 // pred_fallthru
    _
  // Predicated region
  $region6: #{lenet_forward.4} parent=0 // pred_check
    _
  $region7: #{lenet_forward.4} parent=0 // pred_check_branch
    %11 = sbr.rel (0) target = $region9
  $region8: #{lenet_forward.4} parent=0 // pred_region
    _
  $region9: #{lenet_forward.4} parent=0 // pred_fallthru
    _
  // Predicated region
  $region10: #{lenet_forward.4} parent=0 // pred_check
    _
  $region11: #{lenet_forward.4} parent=0 // pred_check_branch
    %13 = sbr.rel (0) target = $region13
  $region12: #{lenet_forward.4} parent=0 // pred_region
    _
  $region13: #{lenet_forward.4} parent=0 // pred_fallthru
    _
  %v15 = vld [vmem:[%s1] sm:$0xf]
  %v16 = vld [vmem:[%s1 + $0x4] sm:$0xf]
  %v17 = vld [vmem:[%s1 + $0x8] sm:$0xf]
  %v18 = vld [vmem:[%s1 + $0xc] sm:$0xf]
  %v19 = vld [vmem:[%s1 + $0x10] sm:$0xf]
  %v20 = vld [vmem:[%s1 + $0x14] sm:$0xf]
  %v21 = vld [vmem:[%s1 + $0x18] sm:$0xf]
  %v22 = vld [vmem:[%s1 + $0x1c] sm:$0xf]
  %v23 = vld [vmem:[%s1 + $0x20] sm:$0xf]
  %v24 = vld [vmem:[%s1 + $0x24] sm:$0xf]
  %v25 = vld [vmem:[%s1 + $0x28] sm:$0xf]
  %v26 = vld [vmem:[%s1 + $0x2c] sm:$0xf]
  %v27 = vld [vmem:[%s1 + $0x30] sm:$0xf]
  %v28 = vld [vmem:[%s1 + $0x34] sm:$0xf]
  %v29 = vld [vmem:[%s1 + $0x38] sm:$0xf]
  %v30 = vld [vmem:[%s1 + $0x3c] sm:$0xf]
  %v31 = vld [vmem:[%s1 + $0x40] sm:$0xf]
  %v32 = vld [vmem:[%s1 + $0x44] sm:$0xf]
  %v33 = vld [vmem:[%s1 + $0x48] sm:$0xf]
  %v34 = vld [vmem:[%s1 + $0x4c] sm:$0xf]
  %v35 = vld [vmem:[%s1 + $0x50] sm:$0xf]
  %v36 = vld [vmem:[%s1 + $0x54] sm:$0xf]
  %v37 = vld [vmem:[%s1 + $0x58] sm:$0xf]
  %v38 = vld [vmem:[%s1 + $0x5c] sm:$0xf]
  %v39 = vld [vmem:[%s1 + $0x60] sm:$0xf]
  %v40 = vld [vmem:[%s1 + $0x64] sm:$0xf]
  %v41 = vld [vmem:[%s1 + $0x68] sm:$0xf]
  %v42 = vld [vmem:[%s1 + $0x6c] sm:$0xf]
  %v43 = vld [vmem:[%s1 + $0x70] sm:$0xf]
  %v44 = vld [vmem:[%s1 + $0x74] sm:$0xf]
  %v45 = vld [vmem:[%s1 + $0x78] sm:$0xf]
  %v46 = vld [vmem:[%s1 + $0x7c] sm:$0xf]
  %v47 = vld [vmem:[%s1 + $0x80] sm:$0xf]
  %v48 = vld [vmem:[%s1 + $0x84] sm:$0xf]
  %v49 = vld [vmem:[%s1 + $0x88] sm:$0xf]
  %v50 = vld [vmem:[%s1 + $0x8c] sm:$0xf]
  %v51 = vld [vmem:[%s1 + $0x90] sm:$0xf]
  %v52 = vld [vmem:[%s1 + $0x94] sm:$0xf]
  %v53 = vld [vmem:[%s1 + $0x98] sm:$0xf]
  %v54 = vld [vmem:[%s1 + $0x9c] sm:$0xf]
  %v55 = vld [vmem:[%s1 + $0xa0] sm:$0xf]
  %v56 = vld [vmem:[%s1 + $0xa4] sm:$0xf]
  %v57 = vld [vmem:[%s1 + $0xa8] sm:$0xf]
  %v58 = vld [vmem:[%s1 + $0xac] sm:$0xf]
  %v59 = vld [vmem:[%s1 + $0xb0] sm:$0xf]
  %v60 = vld [vmem:[%s1 + $0xb4] sm:$0xf]
  %v61 = vld [vmem:[%s1 + $0xb8] sm:$0xf]
  %v62 = vld [vmem:[%s1 + $0xbc] sm:$0xf]
  %v63 = vld [vmem:[%s1 + $0xc0] sm:$0xf]
  %v64 = vld [vmem:[%s1 + $0xc4] sm:$0xf]
  %v65 = vld [vmem:[%s1 + $0xc8] sm:$0xf]
  %v66 = vld [vmem:[%s1 + $0xcc] sm:$0xf]
  %v67 = vld [vmem:[%s1 + $0xd0] sm:$0xf]
  %v68 = vld [vmem:[%s1 + $0xd4] sm:$0xf]
  %v69 = vld [vmem:[%s1 + $0xd8] sm:$0xf]
  %v70 = vld [vmem:[%s1 + $0xdc] sm:$0xf]
  %v71 = vld [vmem:[%s1 + $0xe0] sm:$0xf]
  %v72 = vld [vmem:[%s1 + $0xe4] sm:$0xf]
  %v73 = vld [vmem:[%s1 + $0xe8] sm:$0xf]
  %v74 = vld [vmem:[%s1 + $0xec] sm:$0xf]
  %v75 = vld [vmem:[%s1 + $0xf0] sm:$0xf]
  %v76 = vld [vmem:[%s1 + $0xf4] sm:$0xf]
  %v77 = vld [vmem:[%s1 + $0xf8] sm:$0xf]
  %v78 = vld [vmem:[%s1 + $0xfc] sm:$0xf]
  %v79 = vld [vmem:[%s2] sm:$0x1]
  %v80 = vld [vmem:[%s0] sm:$0xff]
  %v81 = vld [vmem:[%s0 + $0x8] sm:$0xff]
  %v82 = vld [vmem:[%s0 + $0x10] sm:$0xff]
  %v83 = vld [vmem:[%s0 + $0x18] sm:$0xff]
  %v84 = vld [vmem:[%s0 + $0x20] sm:$0xff]
  %v85 = vld [vmem:[%s0 + $0x28] sm:$0xff]
  %v86 = vld [vmem:[%s0 + $0x30] sm:$0xff]
  %v87 = vld [vmem:[%s0 + $0x38] sm:$0xff]
  %v89 = vlaneseq
  %v90 = vshrl.u32 %v89, 7
  %v91 = vsub.s32 0, %v90
  %v92 = vrot.slane %v79, %v91
  %v102 = vunpack.c.l.b16 %v80
  %v103 = vunpack.c.h.b16 %v80
  %v104 = vunpack.c.l.b16 %v81
  %v105 = vunpack.c.h.b16 %v81
  %v106 = vunpack.c.l.b16 %v82
  %v107 = vunpack.c.h.b16 %v82
  %v108 = vunpack.c.l.b16 %v83
  %v109 = vunpack.c.h.b16 %v83
  %v110 = vunpack.c.l.b16 %v84
  %v111 = vunpack.c.h.b16 %v84
  %v112 = vunpack.c.l.b16 %v85
  %v113 = vunpack.c.h.b16 %v85
  %v114 = vunpack.c.l.b16 %v86
  %v115 = vunpack.c.h.b16 %v86
  %v116 = vunpack.c.l.b16 %v87
  %v117 = vunpack.c.h.b16 %v87
  %v118 = vpack.c.b16 %v106, %v102
  %v119 = vpack.c.b16 %v107, %v103
  %v120 = vpack.c.b16 %v108, %v104
  %v121 = vpack.c.b16 %v109, %v105
  %v122 = vpack.c.b16 %v114, %v110
  %v123 = vpack.c.b16 %v115, %v111
  %v124 = vpack.c.b16 %v116, %v112
  %v125 = vpack.c.b16 %v117, %v113
  %v198 = vunpack.c.l.b16 %v15
  %v199 = vunpack.c.l.b16 %v16
  %v200 = vunpack.c.l.b16 %v17
  %v201 = vunpack.c.l.b16 %v18
  %v202 = vunpack.c.l.b16 %v19
  %v203 = vunpack.c.l.b16 %v20
  %v204 = vunpack.c.l.b16 %v21
  %v205 = vunpack.c.l.b16 %v22
  %v206 = vunpack.c.l.b16 %v23
  %v207 = vunpack.c.l.b16 %v24
  %v208 = vunpack.c.l.b16 %v25
  %v209 = vunpack.c.l.b16 %v26
  %v210 = vunpack.c.l.b16 %v27
  %v211 = vunpack.c.l.b16 %v28
  %v212 = vunpack.c.l.b16 %v29
  %v213 = vunpack.c.l.b16 %v30
  %v214 = vunpack.c.l.b16 %v31
  %v215 = vunpack.c.l.b16 %v32
  %v216 = vunpack.c.l.b16 %v33
  %v217 = vunpack.c.l.b16 %v34
  %v218 = vunpack.c.l.b16 %v35
  %v219 = vunpack.c.l.b16 %v36
  %v220 = vunpack.c.l.b16 %v37
  %v221 = vunpack.c.l.b16 %v38
  %v222 = vunpack.c.l.b16 %v39
  %v223 = vunpack.c.l.b16 %v40
  %v224 = vunpack.c.l.b16 %v41
  %v225 = vunpack.c.l.b16 %v42
  %v226 = vunpack.c.l.b16 %v43
  %v227 = vunpack.c.l.b16 %v44
  %v228 = vunpack.c.l.b16 %v45
  %v229 = vunpack.c.l.b16 %v46
  %v230 = vunpack.c.l.b16 %v47
  %v231 = vunpack.c.l.b16 %v48
  %v232 = vunpack.c.l.b16 %v49
  %v233 = vunpack.c.l.b16 %v50
  %v234 = vunpack.c.l.b16 %v51
  %v235 = vunpack.c.l.b16 %v52
  %v236 = vunpack.c.l.b16 %v53
  %v237 = vunpack.c.l.b16 %v54
  %v238 = vunpack.c.l.b16 %v55
  %v239 = vunpack.c.l.b16 %v56
  %v240 = vunpack.c.l.b16 %v57
  %v241 = vunpack.c.l.b16 %v58
  %v242 = vunpack.c.l.b16 %v59
  %v243 = vunpack.c.l.b16 %v60
  %v244 = vunpack.c.l.b16 %v61
  %v245 = vunpack.c.l.b16 %v62
  %v246 = vunpack.c.l.b16 %v63
  %v247 = vunpack.c.l.b16 %v64
  %v248 = vunpack.c.l.b16 %v65
  %v249 = vunpack.c.l.b16 %v66
  %v250 = vunpack.c.l.b16 %v67
  %v251 = vunpack.c.l.b16 %v68
  %v252 = vunpack.c.l.b16 %v69
  %v253 = vunpack.c.l.b16 %v70
  %v254 = vunpack.c.l.b16 %v71
  %v255 = vunpack.c.l.b16 %v72
  %v256 = vunpack.c.l.b16 %v73
  %v257 = vunpack.c.l.b16 %v74
  %v258 = vunpack.c.l.b16 %v75
  %v259 = vunpack.c.l.b16 %v76
  %v260 = vunpack.c.l.b16 %v77
  %v261 = vunpack.c.l.b16 %v78
  %v262 = vpack.c.b16 %v199, %v198
  %v263 = vpack.c.b16 %v201, %v200
  %v264 = vpack.c.b16 %v203, %v202
  %v265 = vpack.c.b16 %v205, %v204
  %v266 = vpack.c.b16 %v207, %v206
  %v267 = vpack.c.b16 %v209, %v208
  %v268 = vpack.c.b16 %v211, %v210
  %v269 = vpack.c.b16 %v213, %v212
  %v270 = vpack.c.b16 %v215, %v214
  %v271 = vpack.c.b16 %v217, %v216
  %v272 = vpack.c.b16 %v219, %v218
  %v273 = vpack.c.b16 %v221, %v220
  %v274 = vpack.c.b16 %v223, %v222
  %v275 = vpack.c.b16 %v225, %v224
  %v276 = vpack.c.b16 %v227, %v226
  %v277 = vpack.c.b16 %v229, %v228
  %v278 = vpack.c.b16 %v231, %v230
  %v279 = vpack.c.b16 %v233, %v232
  %v280 = vpack.c.b16 %v235, %v234
  %v281 = vpack.c.b16 %v237, %v236
  %v282 = vpack.c.b16 %v239, %v238
  %v283 = vpack.c.b16 %v241, %v240
  %v284 = vpack.c.b16 %v243, %v242
  %v285 = vpack.c.b16 %v245, %v244
  %v286 = vpack.c.b16 %v247, %v246
  %v287 = vpack.c.b16 %v249, %v248
  %v288 = vpack.c.b16 %v251, %v250
  %v289 = vpack.c.b16 %v253, %v252
  %v290 = vpack.c.b16 %v255, %v254
  %v291 = vpack.c.b16 %v257, %v256
  %v292 = vpack.c.b16 %v259, %v258
  %v293 = vpack.c.b16 %v261, %v260
  %326 = vmatprep.subr.bf16.mxu0 0
  %327 = vmatpush1.bf16.msra.mxu0 %v262
  %328 = vmatprep.subr.bf16.mxu0 0
  %329 = vmatpush1.bf16.msra.mxu0 %v263
  %330 = vmatprep.subr.bf16.mxu0 0
  %331 = vmatpush1.bf16.msra.mxu0 %v264
  %332 = vmatprep.subr.bf16.mxu0 0
  %333 = vmatpush1.bf16.msra.mxu0 %v265
  %334 = vmatprep.subr.bf16.mxu0 0
  %335 = vmatpush1.bf16.msra.mxu0 %v266
  %336 = vmatprep.subr.bf16.mxu0 0
  %337 = vmatpush1.bf16.msra.mxu0 %v267
  %338 = vmatprep.subr.bf16.mxu0 0
  %339 = vmatpush1.bf16.msra.mxu0 %v268
  %340 = vmatprep.subr.bf16.mxu0 0
  %341 = vmatpush1.bf16.msra.mxu0 %v269
  %342 = vmatprep.subr.bf16.mxu0 0
  %343 = vmatpush1.bf16.msra.mxu0 %v270
  %344 = vmatprep.subr.bf16.mxu0 0
  %345 = vmatpush1.bf16.msra.mxu0 %v271
  %346 = vmatprep.subr.bf16.mxu0 0
  %347 = vmatpush1.bf16.msra.mxu0 %v272
  %348 = vmatprep.subr.bf16.mxu0 0
  %349 = vmatpush1.bf16.msra.mxu0 %v273
  %350 = vmatprep.subr.bf16.mxu0 0
  %351 = vmatpush1.bf16.msra.mxu0 %v274
  %352 = vmatprep.subr.bf16.mxu0 0
  %353 = vmatpush1.bf16.msra.mxu0 %v275
  %354 = vmatprep.subr.bf16.mxu0 0
  %355 = vmatpush1.bf16.msra.mxu0 %v276
  %356 = vmatprep.subr.bf16.mxu0 0
  %357 = vmatpush1.bf16.msra.mxu0 %v277
  %358 = vmatprep.mubr.bf16.mxu0 %v119
  %359 = vmatmul.mubr.bf16.gmra.mrb[0].mxu0 %v118
  %v360 = vpop.f32.mrb[0].mxu0
  %v361 = vadd.f32 %v92, %v360
  %v362 = vpop.f32.mrb[0].mxu0
  %v363 = vpop.f32.mrb[0].mxu0
  %v364 = vadd.f32 %v92, %v363
  %v365 = vpop.f32.mrb[0].mxu0
  %366 = vmatprep.mubr.bf16.mxu0 %v123
  %367 = vmatmul.mubr.bf16.gmra.mrb[0].mxu0 %v122
  %v368 = vpop.f32.mrb[0].mxu0
  %v369 = vadd.f32 %v92, %v368
  %v370 = vpop.f32.mrb[0].mxu0
  %v371 = vpop.f32.mrb[0].mxu0
  %v372 = vadd.f32 %v92, %v371
  %v373 = vpop.f32.mrb[0].mxu0
  %374 = vdwg.mxu0
  %375 = vmatprep.subr.bf16.mxu0 0
  %376 = vmatpush1.bf16.msra.mxu0 %v278
  %377 = vmatprep.subr.bf16.mxu0 0
  %378 = vmatpush1.bf16.msra.mxu0 %v279
  %379 = vmatprep.subr.bf16.mxu0 0
  %380 = vmatpush1.bf16.msra.mxu0 %v280
  %381 = vmatprep.subr.bf16.mxu0 0
  %382 = vmatpush1.bf16.msra.mxu0 %v281
  %383 = vmatprep.subr.bf16.mxu0 0
  %384 = vmatpush1.bf16.msra.mxu0 %v282
  %385 = vmatprep.subr.bf16.mxu0 0
  %386 = vmatpush1.bf16.msra.mxu0 %v283
  %387 = vmatprep.subr.bf16.mxu0 0
  %388 = vmatpush1.bf16.msra.mxu0 %v284
  %389 = vmatprep.subr.bf16.mxu0 0
  %390 = vmatpush1.bf16.msra.mxu0 %v285
  %391 = vmatprep.subr.bf16.mxu0 0
  %392 = vmatpush1.bf16.msra.mxu0 %v286
  %393 = vmatprep.subr.bf16.mxu0 0
  %394 = vmatpush1.bf16.msra.mxu0 %v287
  %395 = vmatprep.subr.bf16.mxu0 0
  %396 = vmatpush1.bf16.msra.mxu0 %v288
  %397 = vmatprep.subr.bf16.mxu0 0
  %398 = vmatpush1.bf16.msra.mxu0 %v289
  %399 = vmatprep.subr.bf16.mxu0 0
  %400 = vmatpush1.bf16.msra.mxu0 %v290
  %401 = vmatprep.subr.bf16.mxu0 0
  %402 = vmatpush1.bf16.msra.mxu0 %v291
  %403 = vmatprep.subr.bf16.mxu0 0
  %404 = vmatpush1.bf16.msra.mxu0 %v292
  %405 = vmatprep.subr.bf16.mxu0 0
  %406 = vmatpush1.bf16.msra.mxu0 %v293
  %407 = vmatprep.mubr.bf16.mxu0 %v121
  %408 = vmatmul.mubr.bf16.gmra.mrb[0].mxu0 %v120
  %v409 = vpop.f32.mrb[0].mxu0
  %v410 = vadd.f32 %v361, %v409
  %v411 = vpop.f32.mrb[0].mxu0
  %v412 = vpop.f32.mrb[0].mxu0
  %v413 = vadd.f32 %v364, %v412
  %v414 = vpop.f32.mrb[0].mxu0
  %415 = vmatprep.mubr.bf16.mxu0 %v125
  %416 = vmatmul.mubr.bf16.gmra.mrb[0].mxu0 %v124
  %v417 = vpop.f32.mrb[0].mxu0
  %v418 = vadd.f32 %v369, %v417
  %v419 = vpop.f32.mrb[0].mxu0
  %v420 = vpop.f32.mrb[0].mxu0
  %v421 = vadd.f32 %v372, %v420
  %v422 = vpop.f32.mrb[0].mxu0
  %423 = vdwg.mxu0
  %v424 = vmax.f32 %v410, 0.0
  %v425 = vmax.f32 %v413, 0.0
  %v426 = vmax.f32 %v418, 0.0
  %v427 = vmax.f32 %v421, 0.0
  %s428 = scalar_lea.vmem %s0, 64
  %v429 = vld [vmem:[%s428] sm:$0xff]
  %v430 = vld [vmem:[%s428 + $0x8] sm:$0xff]
  %v431 = vld [vmem:[%s428 + $0x10] sm:$0xff]
  %v432 = vld [vmem:[%s428 + $0x18] sm:$0xff]
  %v433 = vld [vmem:[%s428 + $0x20] sm:$0xff]
  %v434 = vld [vmem:[%s428 + $0x28] sm:$0xff]
  %v435 = vld [vmem:[%s428 + $0x30] sm:$0xff]
  %v436 = vld [vmem:[%s428 + $0x38] sm:$0xff]
  %v445 = vunpack.c.l.b16 %v429
  %v446 = vunpack.c.h.b16 %v429
  %v447 = vunpack.c.l.b16 %v430
  %v448 = vunpack.c.h.b16 %v430
  %v449 = vunpack.c.l.b16 %v431
  %v450 = vunpack.c.h.b16 %v431
  %v451 = vunpack.c.l.b16 %v432
  %v452 = vunpack.c.h.b16 %v432
  %v453 = vunpack.c.l.b16 %v433
  %v454 = vunpack.c.h.b16 %v433
  %v455 = vunpack.c.l.b16 %v434
  %v456 = vunpack.c.h.b16 %v434
  %v457 = vunpack.c.l.b16 %v435
  %v458 = vunpack.c.h.b16 %v435
  %v459 = vunpack.c.l.b16 %v436
  %v460 = vunpack.c.h.b16 %v436
  %v461 = vpack.c.b16 %v449, %v445
  %v462 = vpack.c.b16 %v450, %v446
  %v463 = vpack.c.b16 %v451, %v447
  %v464 = vpack.c.b16 %v452, %v448
  %v465 = vpack.c.b16 %v457, %v453
  %v466 = vpack.c.b16 %v458, %v454
  %v467 = vpack.c.b16 %v459, %v455
  %v468 = vpack.c.b16 %v460, %v456
  %477 = vmatprep.subr.bf16.mxu0 0
  %478 = vmatpush1.bf16.msra.mxu0 %v262
  %479 = vmatprep.subr.bf16.mxu0 0
  %480 = vmatpush1.bf16.msra.mxu0 %v263
  %481 = vmatprep.subr.bf16.mxu0 0
  %482 = vmatpush1.bf16.msra.mxu0 %v264
  %483 = vmatprep.subr.bf16.mxu0 0
  %484 = vmatpush1.bf16.msra.mxu0 %v265
  %485 = vmatprep.subr.bf16.mxu0 0
  %486 = vmatpush1.bf16.msra.mxu0 %v266
  %487 = vmatprep.subr.bf16.mxu0 0
  %488 = vmatpush1.bf16.msra.mxu0 %v267
  %489 = vmatprep.subr.bf16.mxu0 0
  %490 = vmatpush1.bf16.msra.mxu0 %v268
  %491 = vmatprep.subr.bf16.mxu0 0
  %492 = vmatpush1.bf16.msra.mxu0 %v269
  %493 = vmatprep.subr.bf16.mxu0 0
  %494 = vmatpush1.bf16.msra.mxu0 %v270
  %495 = vmatprep.subr.bf16.mxu0 0
  %496 = vmatpush1.bf16.msra.mxu0 %v271
  %497 = vmatprep.subr.bf16.mxu0 0
  %498 = vmatpush1.bf16.msra.mxu0 %v272
  %499 = vmatprep.subr.bf16.mxu0 0
  %500 = vmatpush1.bf16.msra.mxu0 %v273
  %501 = vmatprep.subr.bf16.mxu0 0
  %502 = vmatpush1.bf16.msra.mxu0 %v274
  %503 = vmatprep.subr.bf16.mxu0 0
  %504 = vmatpush1.bf16.msra.mxu0 %v275
  %505 = vmatprep.subr.bf16.mxu0 0
  %506 = vmatpush1.bf16.msra.mxu0 %v276
  %507 = vmatprep.subr.bf16.mxu0 0
  %508 = vmatpush1.bf16.msra.mxu0 %v277
  %509 = vmatprep.mubr.bf16.mxu0 %v462
  %510 = vmatmul.mubr.bf16.gmra.mrb[0].mxu0 %v461
  %v511 = vpop.f32.mrb[0].mxu0
  %v512 = vadd.f32 %v92, %v511
  %v513 = vpop.f32.mrb[0].mxu0
  %v514 = vpop.f32.mrb[0].mxu0
  %v515 = vadd.f32 %v92, %v514
  %v516 = vpop.f32.mrb[0].mxu0
  %517 = vmatprep.mubr.bf16.mxu0 %v466
  %518 = vmatmul.mubr.bf16.gmra.mrb[0].mxu0 %v465
  %v519 = vpop.f32.mrb[0].mxu0
  %v520 = vadd.f32 %v92, %v519
  %v521 = vpop.f32.mrb[0].mxu0
  %v522 = vpop.f32.mrb[0].mxu0
  %v523 = vadd.f32 %v92, %v522
  %v524 = vpop.f32.mrb[0].mxu0
  %525 = vdwg.mxu0
  %526 = vmatprep.subr.bf16.mxu0 0
  %527 = vmatpush1.bf16.msra.mxu0 %v278
  %528 = vmatprep.subr.bf16.mxu0 0
  %529 = vmatpush1.bf16.msra.mxu0 %v279
  %530 = vmatprep.subr.bf16.mxu0 0
  %531 = vmatpush1.bf16.msra.mxu0 %v280
  %532 = vmatprep.subr.bf16.mxu0 0
  %533 = vmatpush1.bf16.msra.mxu0 %v281
  %534 = vmatprep.subr.bf16.mxu0 0
  %535 = vmatpush1.bf16.msra.mxu0 %v282
  %536 = vmatprep.subr.bf16.mxu0 0
  %537 = vmatpush1.bf16.msra.mxu0 %v283
  %538 = vmatprep.subr.bf16.mxu0 0
  %539 = vmatpush1.bf16.msra.mxu0 %v284
  %540 = vmatprep.subr.bf16.mxu0 0
  %541 = vmatpush1.bf16.msra.mxu0 %v285
  %542 = vmatprep.subr.bf16.mxu0 0
  %543 = vmatpush1.bf16.msra.mxu0 %v286
  %544 = vmatprep.subr.bf16.mxu0 0
  %545 = vmatpush1.bf16.msra.mxu0 %v287
  %546 = vmatprep.subr.bf16.mxu0 0
  %547 = vmatpush1.bf16.msra.mxu0 %v288
  %548 = vmatprep.subr.bf16.mxu0 0
  %549 = vmatpush1.bf16.msra.mxu0 %v289
  %550 = vmatprep.subr.bf16.mxu0 0
  %551 = vmatpush1.bf16.msra.mxu0 %v290
  %552 = vmatprep.subr.bf16.mxu0 0
  %553 = vmatpush1.bf16.msra.mxu0 %v291
  %554 = vmatprep.subr.bf16.mxu0 0
  %555 = vmatpush1.bf16.msra.mxu0 %v292
  %556 = vmatprep.subr.bf16.mxu0 0
  %557 = vmatpush1.bf16.msra.mxu0 %v293
  %558 = vmatprep.mubr.bf16.mxu0 %v464
  %559 = vmatmul.mubr.bf16.gmra.mrb[0].mxu0 %v463
  %v560 = vpop.f32.mrb[0].mxu0
  %v561 = vadd.f32 %v512, %v560
  %v562 = vpop.f32.mrb[0].mxu0
  %v563 = vpop.f32.mrb[0].mxu0
  %v564 = vadd.f32 %v515, %v563
  %v565 = vpop.f32.mrb[0].mxu0
  %566 = vmatprep.mubr.bf16.mxu0 %v468
  %567 = vmatmul.mubr.bf16.gmra.mrb[0].mxu0 %v467
  %v568 = vpop.f32.mrb[0].mxu0
  %v569 = vadd.f32 %v520, %v568
  %v570 = vpop.f32.mrb[0].mxu0
  %v571 = vpop.f32.mrb[0].mxu0
  %v572 = vadd.f32 %v523, %v571
  %v573 = vpop.f32.mrb[0].mxu0
  %574 = vdwg.mxu0
  %v575 = vmax.f32 %v561, 0.0
  %v576 = vmax.f32 %v564, 0.0
  %v577 = vmax.f32 %v569, 0.0
  %v578 = vmax.f32 %v572, 0.0
  %v579 = vmax.f32 %v424, %v575
  %v580 = vmax.f32 %v425, %v576
  %v581 = vmax.f32 %v426, %v577
  %v582 = vmax.f32 %v427, %v578
  %s583 = scalar_lea.vmem %s0, 128
  %v584 = vld [vmem:[%s583] sm:$0xff]
  %v585 = vld [vmem:[%s583 + $0x8] sm:$0xff]
  %v586 = vld [vmem:[%s583 + $0x10] sm:$0xff]
  %v587 = vld [vmem:[%s583 + $0x18] sm:$0xff]
  %v588 = vld [vmem:[%s583 + $0x20] sm:$0xff]
  %v589 = vld [vmem:[%s583 + $0x28] sm:$0xff]
  %v590 = vld [vmem:[%s583 + $0x30] sm:$0xff]
  %v591 = vld [vmem:[%s583 + $0x38] sm:$0xff]
  %v600 = vunpack.c.l.b16 %v584
  %v601 = vunpack.c.h.b16 %v584
  %v602 = vunpack.c.l.b16 %v585
  %v603 = vunpack.c.h.b16 %v585
  %v604 = vunpack.c.l.b16 %v586
  %v605 = vunpack.c.h.b16 %v586
  %v606 = vunpack.c.l.b16 %v587
  %v607 = vunpack.c.h.b16 %v587
  %v608 = vunpack.c.l.b16 %v588
  %v609 = vunpack.c.h.b16 %v588
  %v610 = vunpack.c.l.b16 %v589
  %v611 = vunpack.c.h.b16 %v589
  %v612 = vunpack.c.l.b16 %v590
  %v613 = vunpack.c.h.b16 %v590
  %v614 = vunpack.c.l.b16 %v591
  %v615 = vunpack.c.h.b16 %v591
  %v616 = vpack.c.b16 %v604, %v600
  %v617 = vpack.c.b16 %v605, %v601
  %v618 = vpack.c.b16 %v606, %v602
  %v619 = vpack.c.b16 %v607, %v603
  %v620 = vpack.c.b16 %v612, %v608
  %v621 = vpack.c.b16 %v613, %v609
  %v622 = vpack.c.b16 %v614, %v610
  %v623 = vpack.c.b16 %v615, %v611
  %632 = vmatprep.subr.bf16.mxu0 0
  %633 = vmatpush1.bf16.msra.mxu0 %v262
  %634 = vmatprep.subr.bf16.mxu0 0
  %635 = vmatpush1.bf16.msra.mxu0 %v263
  %636 = vmatprep.subr.bf16.mxu0 0
  %637 = vmatpush1.bf16.msra.mxu0 %v264
  %638 = vmatprep.subr.bf16.mxu0 0
  %639 = vmatpush1.bf16.msra.mxu0 %v265
  %640 = vmatprep.subr.bf16.mxu0 0
  %641 = vmatpush1.bf16.msra.mxu0 %v266
  %642 = vmatprep.subr.bf16.mxu0 0
  %643 = vmatpush1.bf16.msra.mxu0 %v267
  %644 = vmatprep.subr.bf16.mxu0 0
  %645 = vmatpush1.bf16.msra.mxu0 %v268
  %646 = vmatprep.subr.bf16.mxu0 0
  %647 = vmatpush1.bf16.msra.mxu0 %v269
  %648 = vmatprep.subr.bf16.mxu0 0
  %649 = vmatpush1.bf16.msra.mxu0 %v270
  %650 = vmatprep.subr.bf16.mxu0 0
  %651 = vmatpush1.bf16.msra.mxu0 %v271
  %652 = vmatprep.subr.bf16.mxu0 0
  %653 = vmatpush1.bf16.msra.mxu0 %v272
  %654 = vmatprep.subr.bf16.mxu0 0
  %655 = vmatpush1.bf16.msra.mxu0 %v273
  %656 = vmatprep.subr.bf16.mxu0 0
  %657 = vmatpush1.bf16.msra.mxu0 %v274
  %658 = vmatprep.subr.bf16.mxu0 0
  %659 = vmatpush1.bf16.msra.mxu0 %v275
  %660 = vmatprep.subr.bf16.mxu0 0
  %661 = vmatpush1.bf16.msra.mxu0 %v276
  %662 = vmatprep.subr.bf16.mxu0 0
  %663 = vmatpush1.bf16.msra.mxu0 %v277
  %664 = vmatprep.mubr.bf16.mxu0 %v617
  %665 = vmatmul.mubr.bf16.gmra.mrb[0].mxu0 %v616
  %v666 = vpop.f32.mrb[0].mxu0
  %v667 = vadd.f32 %v92, %v666
  %v668 = vpop.f32.mrb[0].mxu0
  %v669 = vpop.f32.mrb[0].mxu0
  %v670 = vadd.f32 %v92, %v669
  %v671 = vpop.f32.mrb[0].mxu0
  %672 = vmatprep.mubr.bf16.mxu0 %v621
  %673 = vmatmul.mubr.bf16.gmra.mrb[0].mxu0 %v620
  %v674 = vpop.f32.mrb[0].mxu0
  %v675 = vadd.f32 %v92, %v674
  %v676 = vpop.f32.mrb[0].mxu0
  %v677 = vpop.f32.mrb[0].mxu0
  %v678 = vadd.f32 %v92, %v677
  %v679 = vpop.f32.mrb[0].mxu0
  %680 = vdwg.mxu0
  %681 = vmatprep.subr.bf16.mxu0 0
  %682 = vmatpush1.bf16.msra.mxu0 %v278
  %683 = vmatprep.subr.bf16.mxu0 0
  %684 = vmatpush1.bf16.msra.mxu0 %v279
  %685 = vmatprep.subr.bf16.mxu0 0
  %686 = vmatpush1.bf16.msra.mxu0 %v280
  %687 = vmatprep.subr.bf16.mxu0 0
  %688 = vmatpush1.bf16.msra.mxu0 %v281
  %689 = vmatprep.subr.bf16.mxu0 0
  %690 = vmatpush1.bf16.msra.mxu0 %v282
  %691 = vmatprep.subr.bf16.mxu0 0
  %692 = vmatpush1.bf16.msra.mxu0 %v283
  %693 = vmatprep.subr.bf16.mxu0 0
  %694 = vmatpush1.bf16.msra.mxu0 %v284
  %695 = vmatprep.subr.bf16.mxu0 0
  %696 = vmatpush1.bf16.msra.mxu0 %v285
  %697 = vmatprep.subr.bf16.mxu0 0
  %698 = vmatpush1.bf16.msra.mxu0 %v286
  %699 = vmatprep.subr.bf16.mxu0 0
  %700 = vmatpush1.bf16.msra.mxu0 %v287
  %701 = vmatprep.subr.bf16.mxu0 0
  %702 = vmatpush1.bf16.msra.mxu0 %v288
  %703 = vmatprep.subr.bf16.mxu0 0
  %704 = vmatpush1.bf16.msra.mxu0 %v289
  %705 = vmatprep.subr.bf16.mxu0 0
  %706 = vmatpush1.bf16.msra.mxu0 %v290
  %707 = vmatprep.subr.bf16.mxu0 0
  %708 = vmatpush1.bf16.msra.mxu0 %v291
  %709 = vmatprep.subr.bf16.mxu0 0
  %710 = vmatpush1.bf16.msra.mxu0 %v292
  %711 = vmatprep.subr.bf16.mxu0 0
  %712 = vmatpush1.bf16.msra.mxu0 %v293
  %713 = vmatprep.mubr.bf16.mxu0 %v619
  %714 = vmatmul.mubr.bf16.gmra.mrb[0].mxu0 %v618
  %v715 = vpop.f32.mrb[0].mxu0
  %v716 = vadd.f32 %v667, %v715
  %v717 = vpop.f32.mrb[0].mxu0
  %v718 = vpop.f32.mrb[0].mxu0
  %v719 = vadd.f32 %v670, %v718
  %v720 = vpop.f32.mrb[0].mxu0
  %721 = vmatprep.mubr.bf16.mxu0 %v623
  %722 = vmatmul.mubr.bf16.gmra.mrb[0].mxu0 %v622
  %v723 = vpop.f32.mrb[0].mxu0
  %v724 = vadd.f32 %v675, %v723
  %v725 = vpop.f32.mrb[0].mxu0
  %v726 = vpop.f32.mrb[0].mxu0
  %v727 = vadd.f32 %v678, %v726
  %v728 = vpop.f32.mrb[0].mxu0
  %729 = vdwg.mxu0
  %v730 = vmax.f32 %v716, 0.0
  %v731 = vmax.f32 %v719, 0.0
  %v732 = vmax.f32 %v724, 0.0
  %v733 = vmax.f32 %v727, 0.0
  %v734 = vmax.f32 %v579, %v730
  %v735 = vmax.f32 %v580, %v731
  %v736 = vmax.f32 %v581, %v732
  %v737 = vmax.f32 %v582, %v733
  %s738 = scalar_lea.vmem %s0, 192
  %v739 = vld [vmem:[%s738] sm:$0xff]
  %v740 = vld [vmem:[%s738 + $0x8] sm:$0xff]
  %v741 = vld [vmem:[%s738 + $0x10] sm:$0xff]
  %v742 = vld [vmem:[%s738 + $0x18] sm:$0xff]
  %v743 = vld [vmem:[%s738 + $0x20] sm:$0xff]
  %v744 = vld [vmem:[%s738 + $0x28] sm:$0xff]
  %v745 = vld [vmem:[%s738 + $0x30] sm:$0xff]
  %v746 = vld [vmem:[%s738 + $0x38] sm:$0xff]
  %v755 = vunpack.c.l.b16 %v739
  %v756 = vunpack.c.h.b16 %v739
  %v757 = vunpack.c.l.b16 %v740
  %v758 = vunpack.c.h.b16 %v740
  %v759 = vunpack.c.l.b16 %v741
  %v760 = vunpack.c.h.b16 %v741
  %v761 = vunpack.c.l.b16 %v742
  %v762 = vunpack.c.h.b16 %v742
  %v763 = vunpack.c.l.b16 %v743
  %v764 = vunpack.c.h.b16 %v743
  %v765 = vunpack.c.l.b16 %v744
  %v766 = vunpack.c.h.b16 %v744
  %v767 = vunpack.c.l.b16 %v745
  %v768 = vunpack.c.h.b16 %v745
  %v769 = vunpack.c.l.b16 %v746
  %v770 = vunpack.c.h.b16 %v746
  %v771 = vpack.c.b16 %v759, %v755
  %v772 = vpack.c.b16 %v760, %v756
  %v773 = vpack.c.b16 %v761, %v757
  %v774 = vpack.c.b16 %v762, %v758
  %v775 = vpack.c.b16 %v767, %v763
  %v776 = vpack.c.b16 %v768, %v764
  %v777 = vpack.c.b16 %v769, %v765
  %v778 = vpack.c.b16 %v770, %v766
  %787 = vmatprep.subr.bf16.mxu0 0
  %788 = vmatpush1.bf16.msra.mxu0 %v262
  %789 = vmatprep.subr.bf16.mxu0 0
  %790 = vmatpush1.bf16.msra.mxu0 %v263
  %791 = vmatprep.subr.bf16.mxu0 0
  %792 = vmatpush1.bf16.msra.mxu0 %v264
  %793 = vmatprep.subr.bf16.mxu0 0
  %794 = vmatpush1.bf16.msra.mxu0 %v265
  %795 = vmatprep.subr.bf16.mxu0 0
  %796 = vmatpush1.bf16.msra.mxu0 %v266
  %797 = vmatprep.subr.bf16.mxu0 0
  %798 = vmatpush1.bf16.msra.mxu0 %v267
  %799 = vmatprep.subr.bf16.mxu0 0
  %800 = vmatpush1.bf16.msra.mxu0 %v268
  %801 = vmatprep.subr.bf16.mxu0 0
  %802 = vmatpush1.bf16.msra.mxu0 %v269
  %803 = vmatprep.subr.bf16.mxu0 0
  %804 = vmatpush1.bf16.msra.mxu0 %v270
  %805 = vmatprep.subr.bf16.mxu0 0
  %806 = vmatpush1.bf16.msra.mxu0 %v271
  %807 = vmatprep.subr.bf16.mxu0 0
  %808 = vmatpush1.bf16.msra.mxu0 %v272
  %809 = vmatprep.subr.bf16.mxu0 0
  %810 = vmatpush1.bf16.msra.mxu0 %v273
  %811 = vmatprep.subr.bf16.mxu0 0
  %812 = vmatpush1.bf16.msra.mxu0 %v274
  %813 = vmatprep.subr.bf16.mxu0 0
  %814 = vmatpush1.bf16.msra.mxu0 %v275
  %815 = vmatprep.subr.bf16.mxu0 0
  %816 = vmatpush1.bf16.msra.mxu0 %v276
  %817 = vmatprep.subr.bf16.mxu0 0
  %818 = vmatpush1.bf16.msra.mxu0 %v277
  %819 = vmatprep.mubr.bf16.mxu0 %v772
  %820 = vmatmul.mubr.bf16.gmra.mrb[0].mxu0 %v771
  %v821 = vpop.f32.mrb[0].mxu0
  %v822 = vadd.f32 %v92, %v821
  %v823 = vpop.f32.mrb[0].mxu0
  %v824 = vpop.f32.mrb[0].mxu0
  %v825 = vadd.f32 %v92, %v824
  %v826 = vpop.f32.mrb[0].mxu0
  %827 = vmatprep.mubr.bf16.mxu0 %v776
  %828 = vmatmul.mubr.bf16.gmra.mrb[0].mxu0 %v775
  %v829 = vpop.f32.mrb[0].mxu0
  %v830 = vadd.f32 %v92, %v829
  %v831 = vpop.f32.mrb[0].mxu0
  %v832 = vpop.f32.mrb[0].mxu0
  %v833 = vadd.f32 %v92, %v832
  %v834 = vpop.f32.mrb[0].mxu0
  %835 = vdwg.mxu0
  %836 = vmatprep.subr.bf16.mxu0 0
  %837 = vmatpush1.bf16.msra.mxu0 %v278
  %838 = vmatprep.subr.bf16.mxu0 0
  %839 = vmatpush1.bf16.msra.mxu0 %v279
  %840 = vmatprep.subr.bf16.mxu0 0
  %841 = vmatpush1.bf16.msra.mxu0 %v280
  %842 = vmatprep.subr.bf16.mxu0 0
  %843 = vmatpush1.bf16.msra.mxu0 %v281
  %844 = vmatprep.subr.bf16.mxu0 0
  %845 = vmatpush1.bf16.msra.mxu0 %v282
  %846 = vmatprep.subr.bf16.mxu0 0
  %847 = vmatpush1.bf16.msra.mxu0 %v283
  %848 = vmatprep.subr.bf16.mxu0 0
  %849 = vmatpush1.bf16.msra.mxu0 %v284
  %850 = vmatprep.subr.bf16.mxu0 0
  %851 = vmatpush1.bf16.msra.mxu0 %v285
  %852 = vmatprep.subr.bf16.mxu0 0
  %853 = vmatpush1.bf16.msra.mxu0 %v286
  %854 = vmatprep.subr.bf16.mxu0 0
  %855 = vmatpush1.bf16.msra.mxu0 %v287
  %856 = vmatprep.subr.bf16.mxu0 0
  %857 = vmatpush1.bf16.msra.mxu0 %v288
  %858 = vmatprep.subr.bf16.mxu0 0
  %859 = vmatpush1.bf16.msra.mxu0 %v289
  %860 = vmatprep.subr.bf16.mxu0 0
  %861 = vmatpush1.bf16.msra.mxu0 %v290
  %862 = vmatprep.subr.bf16.mxu0 0
  %863 = vmatpush1.bf16.msra.mxu0 %v291
  %864 = vmatprep.subr.bf16.mxu0 0
  %865 = vmatpush1.bf16.msra.mxu0 %v292
  %866 = vmatprep.subr.bf16.mxu0 0
  %867 = vmatpush1.bf16.msra.mxu0 %v293
  %868 = vmatprep.mubr.bf16.mxu0 %v774
  %869 = vmatmul.mubr.bf16.gmra.mrb[0].mxu0 %v773
  %v870 = vpop.f32.mrb[0].mxu0
  %v871 = vadd.f32 %v822, %v870
  %v872 = vpop.f32.mrb[0].mxu0
  %v873 = vpop.f32.mrb[0].mxu0
  %v874 = vadd.f32 %v825, %v873
  %v875 = vpop.f32.mrb[0].mxu0
  %876 = vmatprep.mubr.bf16.mxu0 %v778
  %877 = vmatmul.mubr.bf16.gmra.mrb[0].mxu0 %v777
  %v878 = vpop.f32.mrb[0].mxu0
  %v879 = vadd.f32 %v830, %v878
  %v880 = vpop.f32.mrb[0].mxu0
  %v881 = vpop.f32.mrb[0].mxu0
  %v882 = vadd.f32 %v833, %v881
  %v883 = vpop.f32.mrb[0].mxu0
  %884 = vdwg.mxu0
  %v885 = vmax.f32 %v871, 0.0
  %v886 = vmax.f32 %v874, 0.0
  %v887 = vmax.f32 %v879, 0.0
  %v888 = vmax.f32 %v882, 0.0
  %v889 = vmax.f32 %v734, %v885
  %v890 = vmax.f32 %v735, %v886
  %v891 = vmax.f32 %v736, %v887
  %v892 = vmax.f32 %v737, %v888
  %893 = vst [vmem:[%s3] sm:$0xff] %v889
  %894 = vst [vmem:[%s3 + $0x8] sm:$0xff] %v890
  %895 = vst [vmem:[%s3 + $0x10] sm:$0xff] %v891
  %896 = vst [vmem:[%s3 + $0x18] sm:$0xff] %v892
  // Predicated region
  $region14: #{lenet_forward.4} parent=0 // pred_check
    _
  $region15: #{lenet_forward.4} parent=0 // pred_check_branch
    %898 = sbr.rel (0) target = $region17
  $region16: #{lenet_forward.4} parent=0 // pred_region
    _
  $region17: #{lenet_forward.4} parent=0 // pred_fallthru
    _
  // Predicated region
  $region18: #{lenet_forward.4} parent=0 // pred_check
    _
  $region19: #{lenet_forward.4} parent=0 // pred_check_branch
    %900 = sbr.rel (0) target = $region21
  $region20: #{lenet_forward.4} parent=0 // pred_region
    _
  $region21: #{lenet_forward.4} parent=0 // pred_fallthru
    _

// kernel: lenet_forward.5
$region0: #{lenet_forward.5}
  #allocation0 [shape = 'u32[]', space=smem, size = 0x4, offset = 0x4, fixed_abs, tag = 'smem constant byte address 0x4 - core index']
  #allocation1 [shape = 'u32[144,128]{1,0:T(1,128)}', space=vmem, size = 0x12000, scoped, tag = 'internal scratch']
  %s0 = inlined_call_operand.vmem [shape: bf16[2,896], index: 0, kind: input, shape index: {}]
  %s1 = inlined_call_operand.vmem [shape: bf16[896,128], index: 1, kind: input, shape index: {}]
  %s2 = inlined_call_operand.vmem [shape: f32[1,128], index: 2, kind: input, shape index: {}]
  %s3 = inlined_call_operand.vmem [shape: bf16[128,128], index: 3, kind: input, shape index: {}]
  %s4 = inlined_call_operand.vmem [shape: f32[1,128], index: 4, kind: input, shape index: {}]
  %s5 = inlined_call_operand.vmem [shape: bf16[128,128], index: 5, kind: input, shape index: {}]
  %s6 = inlined_call_operand.vmem [shape: f32[1,128], index: 6, kind: input, shape index: {}]
  %s7 = inlined_call_operand.hbm [shape: f32[2,128], index: 7, kind: output, shape index: {}]
  %s8 = sld [smem:[#allocation0]]
  $region38: #{lenet_forward.5} parent=0
    _
  %s10 = ssub.s32 1, %s8
  %s11 = scalar_select 0, %s10, %s8
  $region1: #{lenet_forward.5} parent=0
    #allocation2 [shape = 'u8[1024]{0}', space=vmem, size = 0x400, scoped, tag = 'output window, operand 0, single buffered']
    #allocation3 [shape = 's32[1]{0}', space=sflag, size = 0x4, scoped, tag = 'scoped memory for lenet_forward.5']
    %12 = vsyncpa [#allocation3], 0
    // Predicated region
    $region2: #{lenet_forward.5} parent=1 // pred_check
      _
    $region3: #{lenet_forward.5} parent=1 // pred_check_branch
      %14 = sbr.rel (0) target = $region5
    $region4: #{lenet_forward.5} parent=1 // pred_region
      _
    $region5: #{lenet_forward.5} parent=1 // pred_fallthru
      _
    // Predicated region
    $region6: #{lenet_forward.5} parent=1 // pred_check
      _
    $region7: #{lenet_forward.5} parent=1 // pred_check_branch
      %16 = sbr.rel (0) target = $region9
    $region8: #{lenet_forward.5} parent=1 // pred_region
      _
    $region9: #{lenet_forward.5} parent=1 // pred_fallthru
      _
    // Predicated region
    $region10: #{lenet_forward.5} parent=1 // pred_check
      _
    $region11: #{lenet_forward.5} parent=1 // pred_check_branch
      %18 = sbr.rel (0) target = $region13
    $region12: #{lenet_forward.5} parent=1 // pred_region
      _
    $region13: #{lenet_forward.5} parent=1 // pred_fallthru
      _
    // Predicated region
    $region14: #{lenet_forward.5} parent=1 // pred_check
      _
    $region15: #{lenet_forward.5} parent=1 // pred_check_branch
      %20 = sbr.rel (0) target = $region17
    $region16: #{lenet_forward.5} parent=1 // pred_region
      _
    $region17: #{lenet_forward.5} parent=1 // pred_fallthru
      _
    // Predicated region
    $region18: #{lenet_forward.5} parent=1 // pred_check
      _
    $region19: #{lenet_forward.5} parent=1 // pred_check_branch
      %22 = sbr.rel (0) target = $region21
    $region20: #{lenet_forward.5} parent=1 // pred_region
      _
    $region21: #{lenet_forward.5} parent=1 // pred_fallthru
      _
    // Predicated region
    $region22: #{lenet_forward.5} parent=1 // pred_check
      _
    $region23: #{lenet_forward.5} parent=1 // pred_check_branch
      %24 = sbr.rel (0) target = $region25
    $region24: #{lenet_forward.5} parent=1 // pred_region
      _
    $region25: #{lenet_forward.5} parent=1 // pred_fallthru
      _
    // Predicated region
    $region26: #{lenet_forward.5} parent=1 // pred_check
      _
    $region27: #{lenet_forward.5} parent=1 // pred_check_branch
      %26 = sbr.rel (0) target = $region29
    $region28: #{lenet_forward.5} parent=1 // pred_region
      _
    $region29: #{lenet_forward.5} parent=1 // pred_fallthru
      _
    %v28 = vld [vmem:[%s0] sm:$0x7f]
    %v29 = vld [vmem:[%s1] sm:$0xf]
    %v30 = vld [vmem:[%s1 + $0x4] sm:$0xf]
    %v31 = vld [vmem:[%s1 + $0x8] sm:$0xf]
    %v32 = vld [vmem:[%s1 + $0xc] sm:$0xf]
    %v33 = vld [vmem:[%s1 + $0x10] sm:$0xf]
    %v34 = vld [vmem:[%s1 + $0x14] sm:$0xf]
    %v35 = vld [vmem:[%s1 + $0x18] sm:$0xf]
    %v36 = vld [vmem:[%s1 + $0x1c] sm:$0xf]
    %v37 = vld [vmem:[%s1 + $0x20] sm:$0xf]
    %v38 = vld [vmem:[%s1 + $0x24] sm:$0xf]
    %v39 = vld [vmem:[%s1 + $0x28] sm:$0xf]
    %v40 = vld [vmem:[%s1 + $0x2c] sm:$0xf]
    %v41 = vld [vmem:[%s1 + $0x30] sm:$0xf]
    %v42 = vld [vmem:[%s1 + $0x34] sm:$0xf]
    %v43 = vld [vmem:[%s1 + $0x38] sm:$0xf]
    %v44 = vld [vmem:[%s1 + $0x3c] sm:$0xf]
    %v45 = vld [vmem:[%s1 + $0x40] sm:$0xf]
    %v46 = vld [vmem:[%s1 + $0x44] sm:$0xf]
    %v47 = vld [vmem:[%s1 + $0x48] sm:$0xf]
    %v48 = vld [vmem:[%s1 + $0x4c] sm:$0xf]
    %v49 = vld [vmem:[%s1 + $0x50] sm:$0xf]
    %v50 = vld [vmem:[%s1 + $0x54] sm:$0xf]
    %v51 = vld [vmem:[%s1 + $0x58] sm:$0xf]
    %v52 = vld [vmem:[%s1 + $0x5c] sm:$0xf]
    %v53 = vld [vmem:[%s1 + $0x60] sm:$0xf]
    %v54 = vld [vmem:[%s1 + $0x64] sm:$0xf]
    %v55 = vld [vmem:[%s1 + $0x68] sm:$0xf]
    %v56 = vld [vmem:[%s1 + $0x6c] sm:$0xf]
    %v57 = vld [vmem:[%s1 + $0x70] sm:$0xf]
    %v58 = vld [vmem:[%s1 + $0x74] sm:$0xf]
    %v59 = vld [vmem:[%s1 + $0x78] sm:$0xf]
    %v60 = vld [vmem:[%s1 + $0x7c] sm:$0xf]
    %v61 = vld [vmem:[%s1 + $0x80] sm:$0xf]
    %v62 = vld [vmem:[%s1 + $0x84] sm:$0xf]
    %v63 = vld [vmem:[%s1 + $0x88] sm:$0xf]
    %v64 = vld [vmem:[%s1 + $0x8c] sm:$0xf]
    %v65 = vld [vmem:[%s1 + $0x90] sm:$0xf]
    %v66 = vld [vmem:[%s1 + $0x94] sm:$0xf]
    %v67 = vld [vmem:[%s1 + $0x98] sm:$0xf]
    %v68 = vld [vmem:[%s1 + $0x9c] sm:$0xf]
    %v69 = vld [vmem:[%s1 + $0xa0] sm:$0xf]
    %v70 = vld [vmem:[%s1 + $0xa4] sm:$0xf]
    %v71 = vld [vmem:[%s1 + $0xa8] sm:$0xf]
    %v72 = vld [vmem:[%s1 + $0xac] sm:$0xf]
    %v73 = vld [vmem:[%s1 + $0xb0] sm:$0xf]
    %v74 = vld [vmem:[%s1 + $0xb4] sm:$0xf]
    %v75 = vld [vmem:[%s1 + $0xb8] sm:$0xf]
    %v76 = vld [vmem:[%s1 + $0xbc] sm:$0xf]
    %v77 = vld [vmem:[%s1 + $0xc0] sm:$0xf]
    %v78 = vld [vmem:[%s1 + $0xc4] sm:$0xf]
    %v79 = vld [vmem:[%s1 + $0xc8] sm:$0xf]
    %v80 = vld [vmem:[%s1 + $0xcc] sm:$0xf]
    %v81 = vld [vmem:[%s1 + $0xd0] sm:$0xf]
    %v82 = vld [vmem:[%s1 + $0xd4] sm:$0xf]
    %v83 = vld [vmem:[%s1 + $0xd8] sm:$0xf]
    %v84 = vld [vmem:[%s1 + $0xdc] sm:$0xf]
    %v85 = vld [vmem:[%s1 + $0xe0] sm:$0xf]
    %v86 = vld [vmem:[%s1 + $0xe4] sm:$0xf]
    %v87 = vld [vmem:[%s1 + $0xe8] sm:$0xf]
    %v88 = vld [vmem:[%s1 + $0xec] sm:$0xf]
    %v89 = vld [vmem:[%s1 + $0xf0] sm:$0xf]
    %v90 = vld [vmem:[%s1 + $0xf4] sm:$0xf]
    %v91 = vld [vmem:[%s1 + $0xf8] sm:$0xf]
    %v92 = vld [vmem:[%s1 + $0xfc] sm:$0xf]
    %v93 = vld [vmem:[%s1 + $0x100] sm:$0xf]
    %v94 = vld [vmem:[%s1 + $0x104] sm:$0xf]
    %v95 = vld [vmem:[%s1 + $0x108] sm:$0xf]
    %v96 = vld [vmem:[%s1 + $0x10c] sm:$0xf]
    %v97 = vld [vmem:[%s1 + $0x110] sm:$0xf]
    %v98 = vld [vmem:[%s1 + $0x114] sm:$0xf]
    %v99 = vld [vmem:[%s1 + $0x118] sm:$0xf]
    %v100 = vld [vmem:[%s1 + $0x11c] sm:$0xf]
    %v101 = vld [vmem:[%s1 + $0x120] sm:$0xf]
    %v102 = vld [vmem:[%s1 + $0x124] sm:$0xf]
    %v103 = vld [vmem:[%s1 + $0x128] sm:$0xf]
    %v104 = vld [vmem:[%s1 + $0x12c] sm:$0xf]
    %v105 = vld [vmem:[%s1 + $0x130] sm:$0xf]
    %v106 = vld [vmem:[%s1 + $0x134] sm:$0xf]
    %v107 = vld [vmem:[%s1 + $0x138] sm:$0xf]
    %v108 = vld [vmem:[%s1 + $0x13c] sm:$0xf]
    %v109 = vld [vmem:[%s1 + $0x140] sm:$0xf]
    %v110 = vld [vmem:[%s1 + $0x144] sm:$0xf]
    %v111 = vld [vmem:[%s1 + $0x148] sm:$0xf]
    %v112 = vld [vmem:[%s1 + $0x14c] sm:$0xf]
    %v113 = vld [vmem:[%s1 + $0x150] sm:$0xf]
    %v114 = vld [vmem:[%s1 + $0x154] sm:$0xf]
    %v115 = vld [vmem:[%s1 + $0x158] sm:$0xf]
    %v116 = vld [vmem:[%s1 + $0x15c] sm:$0xf]
    %v117 = vld [vmem:[%s1 + $0x160] sm:$0xf]
    %v118 = vld [vmem:[%s1 + $0x164] sm:$0xf]
    %v119 = vld [vmem:[%s1 + $0x168] sm:$0xf]
    %v120 = vld [vmem:[%s1 + $0x16c] sm:$0xf]
    %v121 = vld [vmem:[%s1 + $0x170] sm:$0xf]
    %v122 = vld [vmem:[%s1 + $0x174] sm:$0xf]
    %v123 = vld [vmem:[%s1 + $0x178] sm:$0xf]
    %v124 = vld [vmem:[%s1 + $0x17c] sm:$0xf]
    %v125 = vld [vmem:[%s1 + $0x180] sm:$0xf]
    %v126 = vld [vmem:[%s1 + $0x184] sm:$0xf]
    %v127 = vld [vmem:[%s1 + $0x188] sm:$0xf]
    %v128 = vld [vmem:[%s1 + $0x18c] sm:$0xf]
    %v129 = vld [vmem:[%s1 + $0x190] sm:$0xf]
    %v130 = vld [vmem:[%s1 + $0x194] sm:$0xf]
    %v131 = vld [vmem:[%s1 + $0x198] sm:$0xf]
    %v132 = vld [vmem:[%s1 + $0x19c] sm:$0xf]
    %v133 = vld [vmem:[%s1 + $0x1a0] sm:$0xf]
    %v134 = vld [vmem:[%s1 + $0x1a4] sm:$0xf]
    %v135 = vld [vmem:[%s1 + $0x1a8] sm:$0xf]
    %v136 = vld [vmem:[%s1 + $0x1ac] sm:$0xf]
    %v137 = vld [vmem:[%s1 + $0x1b0] sm:$0xf]
    %v138 = vld [vmem:[%s1 + $0x1b4] sm:$0xf]
    %v139 = vld [vmem:[%s1 + $0x1b8] sm:$0xf]
    %v140 = vld [vmem:[%s1 + $0x1bc] sm:$0xf]
    %v141 = vld [vmem:[%s2] sm:$0x1]
    %v143 = vlaneseq
    %v144 = vshrl.u32 %v143, 7
    %v145 = vsub.s32 0, %v144
    %v146 = vrot.slane %v141, %v145
    %v149 = vcombine.high %v28, %v28
    %v151 = vunpack.c.l.s4 1966171168
    %v152 = vunpack.c.0.s8 %v151
    %v153 = vlaneseq
    %v154 = vshrl.u32 %v153, 7
    %v155 = vsub.s32 %v152, %v154
    %v156 = vrot.slane %v28, %v155
    %v158 = vunpack.c.l.s4 1966171168
    %v159 = vunpack.c.0.s8 %v158
    %v160 = vlaneseq
    %v161 = vshrl.u32 %v160, 7
    %v162 = vsub.s32 %v159, %v161
    %v163 = vrot.slane %v149, %v162
    %v164 = vcombine.high %v156, %v156
    %v165 = vcombine.high %v163, %v163
    %v167 = vunpack.c.l.s4 1966171168
    %v168 = vunpack.c.0.s8 %v167
    %v169 = vlaneseq
    %v170 = vshrl.u32 %v169, 7
    %v171 = vsub.s32 %v168, %v170
    %v172 = vrot.slane %v156, %v171
    %v174 = vunpack.c.l.s4 1966171168
    %v175 = vunpack.c.0.s8 %v174
    %v176 = vlaneseq
    %v177 = vshrl.u32 %v176, 7
    %v178 = vsub.s32 %v175, %v177
    %v179 = vrot.slane %v163, %v178
    %v181 = vunpack.c.l.s4 1966171168
    %v182 = vunpack.c.0.s8 %v181
    %v183 = vlaneseq
    %v184 = vshrl.u32 %v183, 7
    %v185 = vsub.s32 %v182, %v184
    %v186 = vrot.slane %v164, %v185
    %v188 = vunpack.c.l.s4 1966171168
    %v189 = vunpack.c.0.s8 %v188
    %v190 = vlaneseq
    %v191 = vshrl.u32 %v190, 7
    %v192 = vsub.s32 %v189, %v191
    %v193 = vrot.slane %v165, %v192
    %v194 = vcombine.high %v172, %v172
    %v195 = vcombine.high %v179, %v179
    %v196 = vcombine.high %v186, %v186
    %v316 = vunpack.c.l.b16 %v29
    %v317 = vunpack.c.l.b16 %v30
    %v318 = vunpack.c.l.b16 %v31
    %v319 = vunpack.c.l.b16 %v32
    %v320 = vunpack.c.l.b16 %v33
    %v321 = vunpack.c.l.b16 %v34
    %v322 = vunpack.c.l.b16 %v35
    %v323 = vunpack.c.l.b16 %v36
    %v324 = vunpack.c.l.b16 %v37
    %v325 = vunpack.c.l.b16 %v38
    %v326 = vunpack.c.l.b16 %v39
    %v327 = vunpack.c.l.b16 %v40
    %v328 = vunpack.c.l.b16 %v41
    %v329 = vunpack.c.l.b16 %v42
    %v330 = vunpack.c.l.b16 %v43
    %v331 = vunpack.c.l.b16 %v44
    %v332 = vunpack.c.l.b16 %v45
    %v333 = vunpack.c.l.b16 %v46
    %v334 = vunpack.c.l.b16 %v47
    %v335 = vunpack.c.l.b16 %v48
    %v336 = vunpack.c.l.b16 %v49
    %v337 = vunpack.c.l.b16 %v50
    %v338 = vunpack.c.l.b16 %v51
    %v339 = vunpack.c.l.b16 %v52
    %v340 = vunpack.c.l.b16 %v53
    %v341 = vunpack.c.l.b16 %v54
    %v342 = vunpack.c.l.b16 %v55
    %v343 = vunpack.c.l.b16 %v56
    %v344 = vunpack.c.l.b16 %v57
    %v345 = vunpack.c.l.b16 %v58
    %v346 = vunpack.c.l.b16 %v59
    %v347 = vunpack.c.l.b16 %v60
    %v348 = vunpack.c.l.b16 %v61
    %v349 = vunpack.c.l.b16 %v62
    %v350 = vunpack.c.l.b16 %v63
    %v351 = vunpack.c.l.b16 %v64
    %v352 = vunpack.c.l.b16 %v65
    %v353 = vunpack.c.l.b16 %v66
    %v354 = vunpack.c.l.b16 %v67
    %v355 = vunpack.c.l.b16 %v68
    %v356 = vunpack.c.l.b16 %v69
    %v357 = vunpack.c.l.b16 %v70
    %v358 = vunpack.c.l.b16 %v71
    %v359 = vunpack.c.l.b16 %v72
    %v360 = vunpack.c.l.b16 %v73
    %v361 = vunpack.c.l.b16 %v74
    %v362 = vunpack.c.l.b16 %v75
    %v363 = vunpack.c.l.b16 %v76
    %v364 = vunpack.c.l.b16 %v77
    %v365 = vunpack.c.l.b16 %v78
    %v366 = vunpack.c.l.b16 %v79
    %v367 = vunpack.c.l.b16 %v80
    %v368 = vunpack.c.l.b16 %v81
    %v369 = vunpack.c.l.b16 %v82
    %v370 = vunpack.c.l.b16 %v83
    %v371 = vunpack.c.l.b16 %v84
    %v372 = vunpack.c.l.b16 %v85
    %v373 = vunpack.c.l.b16 %v86
    %v374 = vunpack.c.l.b16 %v87
    %v375 = vunpack.c.l.b16 %v88
    %v376 = vunpack.c.l.b16 %v89
    %v377 = vunpack.c.l.b16 %v90
    %v378 = vunpack.c.l.b16 %v91
    %v379 = vunpack.c.l.b16 %v92
    %v380 = vunpack.c.l.b16 %v93
    %v381 = vunpack.c.l.b16 %v94
    %v382 = vunpack.c.l.b16 %v95
    %v383 = vunpack.c.l.b16 %v96
    %v384 = vunpack.c.l.b16 %v97
    %v385 = vunpack.c.l.b16 %v98
    %v386 = vunpack.c.l.b16 %v99
    %v387 = vunpack.c.l.b16 %v100
    %v388 = vunpack.c.l.b16 %v101
    %v389 = vunpack.c.l.b16 %v102
    %v390 = vunpack.c.l.b16 %v103
    %v391 = vunpack.c.l.b16 %v104
    %v392 = vunpack.c.l.b16 %v105
    %v393 = vunpack.c.l.b16 %v106
    %v394 = vunpack.c.l.b16 %v107
    %v395 = vunpack.c.l.b16 %v108
    %v396 = vunpack.c.l.b16 %v109
    %v397 = vunpack.c.l.b16 %v110
    %v398 = vunpack.c.l.b16 %v111
    %v399 = vunpack.c.l.b16 %v112
    %v400 = vunpack.c.l.b16 %v113
    %v401 = vunpack.c.l.b16 %v114
    %v402 = vunpack.c.l.b16 %v115
    %v403 = vunpack.c.l.b16 %v116
    %v404 = vunpack.c.l.b16 %v117
    %v405 = vunpack.c.l.b16 %v118
    %v406 = vunpack.c.l.b16 %v119
    %v407 = vunpack.c.l.b16 %v120
    %v408 = vunpack.c.l.b16 %v121
    %v409 = vunpack.c.l.b16 %v122
    %v410 = vunpack.c.l.b16 %v123
    %v411 = vunpack.c.l.b16 %v124
    %v412 = vunpack.c.l.b16 %v125
    %v413 = vunpack.c.l.b16 %v126
    %v414 = vunpack.c.l.b16 %v127
    %v415 = vunpack.c.l.b16 %v128
    %v416 = vunpack.c.l.b16 %v129
    %v417 = vunpack.c.l.b16 %v130
    %v418 = vunpack.c.l.b16 %v131
    %v419 = vunpack.c.l.b16 %v132
    %v420 = vunpack.c.l.b16 %v133
    %v421 = vunpack.c.l.b16 %v134
    %v422 = vunpack.c.l.b16 %v135
    %v423 = vunpack.c.l.b16 %v136
    %v424 = vunpack.c.l.b16 %v137
    %v425 = vunpack.c.l.b16 %v138
    %v426 = vunpack.c.l.b16 %v139
    %v427 = vunpack.c.l.b16 %v140
    %v428 = vpack.c.b16 %v317, %v316
    %v429 = vpack.c.b16 %v319, %v318
    %v430 = vpack.c.b16 %v321, %v320
    %v431 = vpack.c.b16 %v323, %v322
    %v432 = vpack.c.b16 %v325, %v324
    %v433 = vpack.c.b16 %v327, %v326
    %v434 = vpack.c.b16 %v329, %v328
    %v435 = vpack.c.b16 %v331, %v330
    %v436 = vpack.c.b16 %v333, %v332
    %v437 = vpack.c.b16 %v335, %v334
    %v438 = vpack.c.b16 %v337, %v336
    %v439 = vpack.c.b16 %v339, %v338
    %v440 = vpack.c.b16 %v341, %v340
    %v441 = vpack.c.b16 %v343, %v342
    %v442 = vpack.c.b16 %v345, %v344
    %v443 = vpack.c.b16 %v347, %v346
    %v444 = vpack.c.b16 %v349, %v348
    %v445 = vpack.c.b16 %v351, %v350
    %v446 = vpack.c.b16 %v353, %v352
    %v447 = vpack.c.b16 %v355, %v354
    %v448 = vpack.c.b16 %v357, %v356
    %v449 = vpack.c.b16 %v359, %v358
    %v450 = vpack.c.b16 %v361, %v360
    %v451 = vpack.c.b16 %v363, %v362
    %v452 = vpack.c.b16 %v365, %v364
    %v453 = vpack.c.b16 %v367, %v366
    %v454 = vpack.c.b16 %v369, %v368
    %v455 = vpack.c.b16 %v371, %v370
    %v456 = vpack.c.b16 %v373, %v372
    %v457 = vpack.c.b16 %v375, %v374
    %v458 = vpack.c.b16 %v377, %v376
    %v459 = vpack.c.b16 %v379, %v378
    %v460 = vpack.c.b16 %v381, %v380
    %v461 = vpack.c.b16 %v383, %v382
    %v462 = vpack.c.b16 %v385, %v384
    %v463 = vpack.c.b16 %v387, %v386
    %v464 = vpack.c.b16 %v389, %v388
    %v465 = vpack.c.b16 %v391, %v390
    %v466 = vpack.c.b16 %v393, %v392
    %v467 = vpack.c.b16 %v395, %v394
    %v468 = vpack.c.b16 %v397, %v396
    %v469 = vpack.c.b16 %v399, %v398
    %v470 = vpack.c.b16 %v401, %v400
    %v471 = vpack.c.b16 %v403, %v402
    %v472 = vpack.c.b16 %v405, %v404
    %v473 = vpack.c.b16 %v407, %v406
    %v474 = vpack.c.b16 %v409, %v408
    %v475 = vpack.c.b16 %v411, %v410
    %v476 = vpack.c.b16 %v413, %v412
    %v477 = vpack.c.b16 %v415, %v414
    %v478 = vpack.c.b16 %v417, %v416
    %v479 = vpack.c.b16 %v419, %v418
    %v480 = vpack.c.b16 %v421, %v420
    %v481 = vpack.c.b16 %v423, %v422
    %v482 = vpack.c.b16 %v425, %v424
    %v483 = vpack.c.b16 %v427, %v426
    %540 = vmatprep.subr.bf16.mxu0 0
    %541 = vmatpush1.bf16.msra.mxu0 %v428
    %542 = vmatprep.subr.bf16.mxu0 0
    %543 = vmatpush1.bf16.msra.mxu0 %v429
    %544 = vmatprep.subr.bf16.mxu0 0
    %545 = vmatpush1.bf16.msra.mxu0 %v430
    %546 = vmatprep.subr.bf16.mxu0 0
    %547 = vmatpush1.bf16.msra.mxu0 %v431
    %548 = vmatprep.subr.bf16.mxu0 0
    %549 = vmatpush1.bf16.msra.mxu0 %v432
    %550 = vmatprep.subr.bf16.mxu0 0
    %551 = vmatpush1.bf16.msra.mxu0 %v433
    %552 = vmatprep.subr.bf16.mxu0 0
    %553 = vmatpush1.bf16.msra.mxu0 %v434
    %554 = vmatprep.subr.bf16.mxu0 0
    %555 = vmatpush1.bf16.msra.mxu0 %v435
    %556 = vmatprep.subr.bf16.mxu0 0
    %557 = vmatpush1.bf16.msra.mxu0 %v436
    %558 = vmatprep.subr.bf16.mxu0 0
    %559 = vmatpush1.bf16.msra.mxu0 %v437
    %560 = vmatprep.subr.bf16.mxu0 0
    %561 = vmatpush1.bf16.msra.mxu0 %v438
    %562 = vmatprep.subr.bf16.mxu0 0
    %563 = vmatpush1.bf16.msra.mxu0 %v439
    %564 = vmatprep.subr.bf16.mxu0 0
    %565 = vmatpush1.bf16.msra.mxu0 %v440
    %566 = vmatprep.subr.bf16.mxu0 0
    %567 = vmatpush1.bf16.msra.mxu0 %v441
    %568 = vmatprep.subr.bf16.mxu0 0
    %569 = vmatpush1.bf16.msra.mxu0 %v442
    %570 = vmatprep.subr.bf16.mxu0 0
    %571 = vmatpush1.bf16.msra.mxu0 %v443
    %572 = vmatprep.mubr.bf16.mxu0 %v186
    %573 = vmatmul.mubr.bf16.gmra.mrb[0].mxu0 %v172
    %v574 = vpop.f32.mrb[0].mxu0
    %v575 = vadd.f32 %v146, %v574
    %v576 = vpop.f32.mrb[0].mxu0
    %v577 = vpop.f32.mrb[0].mxu0
    %v578 = vpop.f32.mrb[0].mxu0
    %579 = vdwg.mxu0
    %580 = vmatprep.subr.bf16.mxu0 0
    %581 = vmatpush1.bf16.msra.mxu0 %v444
    %582 = vmatprep.subr.bf16.mxu0 0
    %583 = vmatpush1.bf16.msra.mxu0 %v445
    %584 = vmatprep.subr.bf16.mxu0 0
    %585 = vmatpush1.bf16.msra.mxu0 %v446
    %586 = vmatprep.subr.bf16.mxu0 0
    %587 = vmatpush1.bf16.msra.mxu0 %v447
    %588 = vmatprep.subr.bf16.mxu0 0
    %589 = vmatpush1.bf16.msra.mxu0 %v448
    %590 = vmatprep.subr.bf16.mxu0 0
    %591 = vmatpush1.bf16.msra.mxu0 %v449
    %592 = vmatprep.subr.bf16.mxu0 0
    %593 = vmatpush1.bf16.msra.mxu0 %v450
    %594 = vmatprep.subr.bf16.mxu0 0
    %595 = vmatpush1.bf16.msra.mxu0 %v451
    %596 = vmatprep.subr.bf16.mxu0 0
    %597 = vmatpush1.bf16.msra.mxu0 %v452
    %598 = vmatprep.subr.bf16.mxu0 0
    %599 = vmatpush1.bf16.msra.mxu0 %v453
    %600 = vmatprep.subr.bf16.mxu0 0
    %601 = vmatpush1.bf16.msra.mxu0 %v454
    %602 = vmatprep.subr.bf16.mxu0 0
    %603 = vmatpush1.bf16.msra.mxu0 %v455
    %604 = vmatprep.subr.bf16.mxu0 0
    %605 = vmatpush1.bf16.msra.mxu0 %v456
    %606 = vmatprep.subr.bf16.mxu0 0
    %607 = vmatpush1.bf16.msra.mxu0 %v457
    %608 = vmatprep.subr.bf16.mxu0 0
    %609 = vmatpush1.bf16.msra.mxu0 %v458
    %610 = vmatprep.subr.bf16.mxu0 0
    %611 = vmatpush1.bf16.msra.mxu0 %v459
    %612 = vmatprep.mubr.bf16.mxu0 %v196
    %613 = vmatmul.mubr.bf16.gmra.mrb[0].mxu0 %v194
    %v614 = vpop.f32.mrb[0].mxu0
    %v615 = vadd.f32 %v575, %v614
    %v616 = vpop.f32.mrb[0].mxu0
    %v617 = vpop.f32.mrb[0].mxu0
    %v618 = vpop.f32.mrb[0].mxu0
    %619 = vdwg.mxu0
    %620 = vmatprep.subr.bf16.mxu0 0
    %621 = vmatpush1.bf16.msra.mxu0 %v460
    %622 = vmatprep.subr.bf16.mxu0 0
    %623 = vmatpush1.bf16.msra.mxu0 %v461
    %624 = vmatprep.subr.bf16.mxu0 0
    %625 = vmatpush1.bf16.msra.mxu0 %v462
    %626 = vmatprep.subr.bf16.mxu0 0
    %627 = vmatpush1.bf16.msra.mxu0 %v463
    %628 = vmatprep.subr.bf16.mxu0 0
    %629 = vmatpush1.bf16.msra.mxu0 %v464
    %630 = vmatprep.subr.bf16.mxu0 0
    %631 = vmatpush1.bf16.msra.mxu0 %v465
    %632 = vmatprep.subr.bf16.mxu0 0
    %633 = vmatpush1.bf16.msra.mxu0 %v466
    %634 = vmatprep.subr.bf16.mxu0 0
    %635 = vmatpush1.bf16.msra.mxu0 %v467
    %636 = vmatprep.subr.bf16.mxu0 0
    %637 = vmatpush1.bf16.msra.mxu0 %v468
    %638 = vmatprep.subr.bf16.mxu0 0
    %639 = vmatpush1.bf16.msra.mxu0 %v469
    %640 = vmatprep.subr.bf16.mxu0 0
    %641 = vmatpush1.bf16.msra.mxu0 %v470
    %642 = vmatprep.subr.bf16.mxu0 0
    %643 = vmatpush1.bf16.msra.mxu0 %v471
    %644 = vmatprep.subr.bf16.mxu0 0
    %645 = vmatpush1.bf16.msra.mxu0 %v472
    %646 = vmatprep.subr.bf16.mxu0 0
    %647 = vmatpush1.bf16.msra.mxu0 %v473
    %648 = vmatprep.subr.bf16.mxu0 0
    %649 = vmatpush1.bf16.msra.mxu0 %v474
    %650 = vmatprep.subr.bf16.mxu0 0
    %651 = vmatpush1.bf16.msra.mxu0 %v475
    %652 = vmatprep.mubr.bf16.mxu0 %v193
    %653 = vmatmul.mubr.bf16.gmra.mrb[0].mxu0 %v179
    %v654 = vpop.f32.mrb[0].mxu0
    %v655 = vadd.f32 %v615, %v654
    %v656 = vpop.f32.mrb[0].mxu0
    %v657 = vpop.f32.mrb[0].mxu0
    %v658 = vpop.f32.mrb[0].mxu0
    %659 = vdwg.mxu0
    %660 = vmatprep.subr.bf16.mxu0 0
    %661 = vmatpush1.bf16.msra.mxu0 %v476
    %662 = vmatprep.subr.bf16.mxu0 0
    %663 = vmatpush1.bf16.msra.mxu0 %v477
    %664 = vmatprep.subr.bf16.mxu0 0
    %665 = vmatpush1.bf16.msra.mxu0 %v478
    %666 = vmatprep.subr.bf16.mxu0 0
    %667 = vmatpush1.bf16.msra.mxu0 %v479
    %668 = vmatprep.subr.bf16.mxu0 0
    %669 = vmatpush1.bf16.msra.mxu0 %v480
    %670 = vmatprep.subr.bf16.mxu0 0
    %671 = vmatpush1.bf16.msra.mxu0 %v481
    %672 = vmatprep.subr.bf16.mxu0 0
    %673 = vmatpush1.bf16.msra.mxu0 %v482
    %674 = vmatprep.subr.bf16.mxu0 0
    %675 = vmatpush1.bf16.msra.mxu0 %v483
    %676 = vmatprep.subr.bf16.mxu0 0
    %677 = vmatpush1.bf16.msra.mxu0 0
    %678 = vmatprep.subr.bf16.mxu0 0
    %679 = vmatpush1.bf16.msra.mxu0 0
    %680 = vmatprep.subr.bf16.mxu0 0
    %681 = vmatpush1.bf16.msra.mxu0 0
    %682 = vmatprep.subr.bf16.mxu0 0
    %683 = vmatpush1.bf16.msra.mxu0 0
    %684 = vmatprep.subr.bf16.mxu0 0
    %685 = vmatpush1.bf16.msra.mxu0 0
    %686 = vmatprep.subr.bf16.mxu0 0
    %687 = vmatpush1.bf16.msra.mxu0 0
    %688 = vmatprep.subr.bf16.mxu0 0
    %689 = vmatpush1.bf16.msra.mxu0 0
    %690 = vmatprep.subr.bf16.mxu0 0
    %691 = vmatpush1.bf16.msra.mxu0 0
    %692 = vmatprep.mubr.bf16.mxu0 0
    %693 = vmatmul.mubr.bf16.gmra.mrb[0].mxu0 %v195
    %v694 = vpop.f32.mrb[0].mxu0
    %v695 = vadd.f32 %v655, %v694
    %v696 = vpop.f32.mrb[0].mxu0
    %v697 = vpop.f32.mrb[0].mxu0
    %v698 = vpop.f32.mrb[0].mxu0
    %699 = vdwg.mxu0
    %v700 = vmax.f32 %v695, 0.0
    %v701 = vpack.c.bf16 %v700, %v700
    %v702 = vld [vmem:[%s3] sm:$0xf]
    %v703 = vld [vmem:[%s3 + $0x4] sm:$0xf]
    %v704 = vld [vmem:[%s3 + $0x8] sm:$0xf]
    %v705 = vld [vmem:[%s3 + $0xc] sm:$0xf]
    %v706 = vld [vmem:[%s3 + $0x10] sm:$0xf]
    %v707 = vld [vmem:[%s3 + $0x14] sm:$0xf]
    %v708 = vld [vmem:[%s3 + $0x18] sm:$0xf]
    %v709 = vld [vmem:[%s3 + $0x1c] sm:$0xf]
    %v710 = vld [vmem:[%s3 + $0x20] sm:$0xf]
    %v711 = vld [vmem:[%s3 + $0x24] sm:$0xf]
    %v712 = vld [vmem:[%s3 + $0x28] sm:$0xf]
    %v713 = vld [vmem:[%s3 + $0x2c] sm:$0xf]
    %v714 = vld [vmem:[%s3 + $0x30] sm:$0xf]
    %v715 = vld [vmem:[%s3 + $0x34] sm:$0xf]
    %v716 = vld [vmem:[%s3 + $0x38] sm:$0xf]
    %v717 = vld [vmem:[%s3 + $0x3c] sm:$0xf]
    %v718 = vld [vmem:[%s4] sm:$0x1]
    %v720 = vlaneseq
    %v721 = vshrl.u32 %v720, 7
    %v722 = vsub.s32 0, %v721
    %v723 = vrot.slane %v718, %v722
    %v741 = vunpack.c.l.b16 %v702
    %v742 = vunpack.c.l.b16 %v703
    %v743 = vunpack.c.l.b16 %v704
    %v744 = vunpack.c.l.b16 %v705
    %v745 = vunpack.c.l.b16 %v706
    %v746 = vunpack.c.l.b16 %v707
    %v747 = vunpack.c.l.b16 %v708
    %v748 = vunpack.c.l.b16 %v709
    %v749 = vunpack.c.l.b16 %v710
    %v750 = vunpack.c.l.b16 %v711
    %v751 = vunpack.c.l.b16 %v712
    %v752 = vunpack.c.l.b16 %v713
    %v753 = vunpack.c.l.b16 %v714
    %v754 = vunpack.c.l.b16 %v715
    %v755 = vunpack.c.l.b16 %v716
    %v756 = vunpack.c.l.b16 %v717
    %v757 = vpack.c.b16 %v742, %v741
    %v758 = vpack.c.b16 %v744, %v743
    %v759 = vpack.c.b16 %v746, %v745
    %v760 = vpack.c.b16 %v748, %v747
    %v761 = vpack.c.b16 %v750, %v749
    %v762 = vpack.c.b16 %v752, %v751
    %v763 = vpack.c.b16 %v754, %v753
    %v764 = vpack.c.b16 %v756, %v755
    %773 = vmatprep.subr.bf16.mxu0 0
    %774 = vmatpush1.bf16.msra.mxu0 %v757
    %775 = vmatprep.subr.bf16.mxu0 0
    %776 = vmatpush1.bf16.msra.mxu0 %v758
    %777 = vmatprep.subr.bf16.mxu0 0
    %778 = vmatpush1.bf16.msra.mxu0 %v759
    %779 = vmatprep.subr.bf16.mxu0 0
    %780 = vmatpush1.bf16.msra.mxu0 %v760
    %781 = vmatprep.subr.bf16.mxu0 0
    %782 = vmatpush1.bf16.msra.mxu0 %v761
    %783 = vmatprep.subr.bf16.mxu0 0
    %784 = vmatpush1.bf16.msra.mxu0 %v762
    %785 = vmatprep.subr.bf16.mxu0 0
    %786 = vmatpush1.bf16.msra.mxu0 %v763
    %787 = vmatprep.subr.bf16.mxu0 0
    %788 = vmatpush1.bf16.msra.mxu0 %v764
    %789 = vmatprep.subr.bf16.mxu0 0
    %790 = vmatpush1.bf16.msra.mxu0 0
    %791 = vmatprep.subr.bf16.mxu0 0
    %792 = vmatpush1.bf16.msra.mxu0 0
    %793 = vmatprep.subr.bf16.mxu0 0
    %794 = vmatpush1.bf16.msra.mxu0 0
    %795 = vmatprep.subr.bf16.mxu0 0
    %796 = vmatpush1.bf16.msra.mxu0 0
    %797 = vmatprep.subr.bf16.mxu0 0
    %798 = vmatpush1.bf16.msra.mxu0 0
    %799 = vmatprep.subr.bf16.mxu0 0
    %800 = vmatpush1.bf16.msra.mxu0 0
    %801 = vmatprep.subr.bf16.mxu0 0
    %802 = vmatpush1.bf16.msra.mxu0 0
    %803 = vmatprep.subr.bf16.mxu0 0
    %804 = vmatpush1.bf16.msra.mxu0 0
    %805 = vmatprep.mubr.bf16.mxu0 0
    %806 = vmatmul.mubr.bf16.gmra.mrb[0].mxu0 %v701
    %v807 = vpop.f32.mrb[0].mxu0
    %v808 = vadd.f32 %v723, %v807
    %v809 = vpop.f32.mrb[0].mxu0
    %v810 = vpop.f32.mrb[0].mxu0
    %v811 = vpop.f32.mrb[0].mxu0
    %812 = vdwg.mxu0
    %v813 = vmax.f32 %v808, 0.0
    %v814 = vpack.c.bf16 %v813, %v813
    %v815 = vld [vmem:[%s5] sm:$0xf]
    %v816 = vld [vmem:[%s5 + $0x4] sm:$0xf]
    %v817 = vld [vmem:[%s5 + $0x8] sm:$0xf]
    %v818 = vld [vmem:[%s5 + $0xc] sm:$0xf]
    %v819 = vld [vmem:[%s5 + $0x10] sm:$0xf]
    %v820 = vld [vmem:[%s5 + $0x14] sm:$0xf]
    %v821 = vld [vmem:[%s5 + $0x18] sm:$0xf]
    %v822 = vld [vmem:[%s5 + $0x1c] sm:$0xf]
    %v823 = vld [vmem:[%s5 + $0x20] sm:$0xf]
    %v824 = vld [vmem:[%s5 + $0x24] sm:$0xf]
    %v825 = vld [vmem:[%s5 + $0x28] sm:$0xf]
    %v826 = vld [vmem:[%s5 + $0x2c] sm:$0xf]
    %v827 = vld [vmem:[%s5 + $0x30] sm:$0xf]
    %v828 = vld [vmem:[%s5 + $0x34] sm:$0xf]
    %v829 = vld [vmem:[%s5 + $0x38] sm:$0xf]
    %v830 = vld [vmem:[%s5 + $0x3c] sm:$0xf]
    %v831 = vld [vmem:[%s6] sm:$0x1]
    %v833 = vlaneseq
    %v834 = vshrl.u32 %v833, 7
    %v835 = vsub.s32 0, %v834
    %v836 = vrot.slane %v831, %v835
    %v854 = vunpack.c.l.b16 %v815
    %v855 = vunpack.c.l.b16 %v816
    %v856 = vunpack.c.l.b16 %v817
    %v857 = vunpack.c.l.b16 %v818
    %v858 = vunpack.c.l.b16 %v819
    %v859 = vunpack.c.l.b16 %v820
    %v860 = vunpack.c.l.b16 %v821
    %v861 = vunpack.c.l.b16 %v822
    %v862 = vunpack.c.l.b16 %v823
    %v863 = vunpack.c.l.b16 %v824
    %v864 = vunpack.c.l.b16 %v825
    %v865 = vunpack.c.l.b16 %v826
    %v866 = vunpack.c.l.b16 %v827
    %v867 = vunpack.c.l.b16 %v828
    %v868 = vunpack.c.l.b16 %v829
    %v869 = vunpack.c.l.b16 %v830
    %v870 = vpack.c.b16 %v855, %v854
    %v871 = vpack.c.b16 %v857, %v856
    %v872 = vpack.c.b16 %v859, %v858
    %v873 = vpack.c.b16 %v861, %v860
    %v874 = vpack.c.b16 %v863, %v862
    %v875 = vpack.c.b16 %v865, %v864
    %v876 = vpack.c.b16 %v867, %v866
    %v877 = vpack.c.b16 %v869, %v868
    %886 = vmatprep.subr.bf16.mxu0 0
    %887 = vmatpush1.bf16.msra.mxu0 %v870
    %888 = vmatprep.subr.bf16.mxu0 0
    %889 = vmatpush1.bf16.msra.mxu0 %v871
    %890 = vmatprep.subr.bf16.mxu0 0
    %891 = vmatpush1.bf16.msra.mxu0 %v872
    %892 = vmatprep.subr.bf16.mxu0 0
    %893 = vmatpush1.bf16.msra.mxu0 %v873
    %894 = vmatprep.subr.bf16.mxu0 0
    %895 = vmatpush1.bf16.msra.mxu0 %v874
    %896 = vmatprep.subr.bf16.mxu0 0
    %897 = vmatpush1.bf16.msra.mxu0 %v875
    %898 = vmatprep.subr.bf16.mxu0 0
    %899 = vmatpush1.bf16.msra.mxu0 %v876
    %900 = vmatprep.subr.bf16.mxu0 0
    %901 = vmatpush1.bf16.msra.mxu0 %v877
    %902 = vmatprep.subr.bf16.mxu0 0
    %903 = vmatpush1.bf16.msra.mxu0 0
    %904 = vmatprep.subr.bf16.mxu0 0
    %905 = vmatpush1.bf16.msra.mxu0 0
    %906 = vmatprep.subr.bf16.mxu0 0
    %907 = vmatpush1.bf16.msra.mxu0 0
    %908 = vmatprep.subr.bf16.mxu0 0
    %909 = vmatpush1.bf16.msra.mxu0 0
    %910 = vmatprep.subr.bf16.mxu0 0
    %911 = vmatpush1.bf16.msra.mxu0 0
    %912 = vmatprep.subr.bf16.mxu0 0
    %913 = vmatpush1.bf16.msra.mxu0 0
    %914 = vmatprep.subr.bf16.mxu0 0
    %915 = vmatpush1.bf16.msra.mxu0 0
    %916 = vmatprep.subr.bf16.mxu0 0
    %917 = vmatpush1.bf16.msra.mxu0 0
    %918 = vmatprep.mubr.bf16.mxu0 0
    %919 = vmatmul.mubr.bf16.gmra.mrb[0].mxu0 %v814
    %v920 = vpop.f32.mrb[0].mxu0
    %v921 = vadd.f32 %v836, %v920
    %v922 = vpop.f32.mrb[0].mxu0
    %v923 = vpop.f32.mrb[0].mxu0
    %v924 = vpop.f32.mrb[0].mxu0
    %925 = vdwg.mxu0
    %926 = vst [vmem:[#allocation2] sm:$0x3] %v921
    // Predicated region
    $region30: #{lenet_forward.5} parent=1 // pred_check
      _
    $region31: #{lenet_forward.5} parent=1 // pred_check_branch
      %928 = sbr.rel (0) target = $region33
    $region32: #{lenet_forward.5} parent=1 // pred_region
      %s930 = ssub.s32 32, 32
      %931 = vsyncadd [#allocation3], %s930
      %s933 = sshll.u32 [#allocation2], 4
      %s934 = int_to_ptr.vmem [resolvable:$true] %s933
      %936 = dma.vmem_to_hbm [thread:$0]  %s934, 32, %s7, [#allocation3]
    $region33: #{lenet_forward.5} parent=1 // pred_fallthru
      _
    // Predicated region
    $region34: #{lenet_forward.5} parent=1 // pred_check
      _
    $region35: #{lenet_forward.5} parent=1 // pred_check_branch
      %938 = sbr.rel (0) target = $region37
    $region36: #{lenet_forward.5} parent=1 // pred_region
      %939 = dma.done [#allocation3], 32
    $region37: #{lenet_forward.5} parent=1 // pred_fallthru
      _
    %940 = vsyncpa [#allocation3], 1

</llo_original>
